<compile_context>
chip_gen: v7x
topology: tpu7x:2x2x1
jax: 0.10.0
libtpu: 0.0.40
codegen_flags: <defaults>
</compile_context>

<pallas_src>
import jax
import jax.numpy as jnp
import numpy as np
from jax.experimental import pallas as pl
from jax.experimental.pallas import tpu as pltpu


# --------------------------- fused forward kernel ----------------------------
def _hybrid_kernel(x_ref, a_ref, wg1_ref, bg1_ref, wg2_ref, bg2_ref,
                   b1_ref, b2_ref, wfc_ref, bfc_ref,
                   wih1_hbm, wcomb_hbm,
                   o_ref,
                   wih1_buf, wcomb_buf, dma_sem):
    B = o_ref.shape[0]
    SB = x_ref.shape[0]                 # rows are time-major: row = s*B + b
    S = SB // B
    H = wfc_ref.shape[0]
    H4 = 4 * H

    # Kick off the LSTM weight DMAs so they overlap the GCN preamble (with no
    # grid there is no auto-pipelining; default VMEM specs would serialize the
    # ~1.1 MB copy before any compute).
    cp_ih1 = pltpu.make_async_copy(wih1_hbm, wih1_buf, dma_sem.at[0])
    cp_cmb = pltpu.make_async_copy(wcomb_hbm, wcomb_buf, dma_sem.at[1])
    cp_ih1.start()
    cp_cmb.start()

    # ---- GCN stack: relu(A(X W1) + b1) -> relu(A(. W2) + b2), whole batch ---
    a = a_ref[...]                      # [S*B, S*B] == kron(A_hat, I_B)
    xw = jnp.dot(x_ref[...], wg1_ref[...], preferred_element_type=jnp.float32)
    h = jnp.maximum(jnp.dot(a, xw, preferred_element_type=jnp.float32)
                    + bg1_ref[...], 0.0)
    hw = jnp.dot(h, wg2_ref[...], preferred_element_type=jnp.float32)
    g = jnp.maximum(jnp.dot(a, hw, preferred_element_type=jnp.float32)
                    + bg2_ref[...], 0.0)                  # [S*B, G], time-major

    # ---- LSTM layer-1 input projection (time-invariant) + folded bias -------
    cp_ih1.wait()
    gates_x = (jnp.dot(g, wih1_buf[...], preferred_element_type=jnp.float32)
               + b1_ref[...])                             # [S*B, 4H]

    cp_cmb.wait()
    wcomb = wcomb_buf[...]              # [2H, 8H] = [[Whh1, Wih2], [0, Whh2]]

    b2b = jnp.broadcast_to(b2_ref[...], (B, H4))          # hoisted bias broadcast

    # Pre-slice gates_x per step and pre-build the per-step fused addends so
    # any sublane-alignment shuffles stay OFF the serial recurrence.
    gx = [gates_x[t * B:(t + 1) * B, :] for t in range(S)]
    adds = [jnp.concatenate([gx[t + 1], b2b], axis=1) for t in range(S - 1)]

    # g-gate columns were pre-scaled by 2 at prep time, so one sigmoid over the
    # whole gate tensor suffices; tanh(x) == 2*sigmoid(2x) - 1.
    def cell(gt, c):                                      # single LSTM cell
        s = jax.nn.sigmoid(gt)                            # 1 EUP pass, width 4H
        i, f = s[:, 0:H], s[:, H:2 * H]
        gg = 2.0 * s[:, 2 * H:3 * H] - 1.0
        o = s[:, 3 * H:4 * H]
        c_new = f * c + i * gg
        h_new = o * (2.0 * jax.nn.sigmoid(2.0 * c_new) - 1.0)   # 1 EUP pass
        return h_new, c_new

    def double_cell(gt8, c_a, c_b):                       # two cells, one pass
        s = jax.nn.sigmoid(gt8)                           # 1 EUP pass, width 8H
        i_a, f_a = s[:, 0:H], s[:, H:2 * H]
        g_a = 2.0 * s[:, 2 * H:3 * H] - 1.0
        o_a = s[:, 3 * H:4 * H]
        i_b, f_b = s[:, H4:H4 + H], s[:, H4 + H:H4 + 2 * H]
        g_b = 2.0 * s[:, H4 + 2 * H:H4 + 3 * H] - 1.0
        o_b = s[:, H4 + 3 * H:H4 + 4 * H]
        ca = f_a * c_a + i_a * g_a
        cb = f_b * c_b + i_b * g_b
        t = 2.0 * jax.nn.sigmoid(
            2.0 * jnp.concatenate([ca, cb], axis=1)) - 1.0      # 1 EUP pass, 2H
        return o_a * t[:, 0:H], ca, o_b * t[:, H:2 * H], cb

    # ---- software-pipelined 2-layer LSTM recurrence --------------------------
    # Prologue: layer-1 step 0 (initial h1 == 0 => recurrent matmul vanishes).
    h1, c1 = cell(gx[0], jnp.zeros((B, H), jnp.float32))
    h2 = jnp.zeros((B, H), jnp.float32)
    c2 = jnp.zeros((B, H), jnp.float32)

    # Main: each round computes layer-2 step t AND layer-1 step t+1 off ONE
    # fused matmul (LHS = [h1(t), h2(t-1)], K = 2H) + ONE nonlinearity pass.
    # TODO(synk): on v5e (128x128 MXU) split this into two accumulating dots
    #   (h1 @ [Whh1|Wih2] + h2 @ [0|Whh2]) to drop the per-step lane concat.
    # TODO(synk): optionally keep wcomb resident in the MXU across the unrolled
    #   loop with pltpu.matmul_push_rhs/acc_lhs/pop once staging capacity for
    #   the [2H, 8H] RHS is verified across v5e/v6e/v7x.
    for t in range(S - 1):                                # static unroll, S small
        fused = jnp.dot(jnp.concatenate([h1, h2], axis=1), wcomb,
                        preferred_element_type=jnp.float32)     # [B, 8H]
        h1, c1, h2, c2 = double_cell(fused + adds[t], c1, c2)

    # Epilogue: layer-2 step S-1.
    fused = jnp.dot(jnp.concatenate([h1, h2], axis=1), wcomb,
                    preferred_element_type=jnp.float32)
    h2, c2 = cell(fused[:, H4:2 * H4] + b2b, c2)

    # fc(rnn_out[:, -1, :])
    o_ref[...] = (jnp.dot(h2, wfc_ref[...], preferred_element_type=jnp.float32)
                  + bfc_ref[...])


# --------------------------------- wrapper -----------------------------------
@jax.jit
def hybrid_gnn_rnn_forward(prep, x):
    """Hot path: only the x transpose + the fused pallas_call."""
    B, S, F = x.shape
    G = prep["w_gnn1"].shape[1]
    H = prep["w_fc"].shape[0]
    O = prep["w_fc"].shape[1]
    # time-major rows (s, b): row s*B + b == x[b, s, :]
    x_tm = jnp.transpose(x, (1, 0, 2)).reshape(S * B, F)

    vmem = pl.BlockSpec(memory_space=pltpu.MemorySpace.VMEM)
    hbm = pl.BlockSpec(memory_space=pl.ANY)

    return pl.pallas_call(
        _hybrid_kernel,
        out_shape=jax.ShapeDtypeStruct((B, O), jnp.float32),
        in_specs=[vmem] * 10 + [hbm, hbm],
        out_specs=vmem,
        scratch_shapes=[
            pltpu.VMEM((G, 4 * H), jnp.float32),       # w_ih1 staging buffer
            pltpu.VMEM((2 * H, 8 * H), jnp.float32),   # combined recurrent weight
            pltpu.SemaphoreType.DMA((2,)),
        ],
        compiler_params=pltpu.CompilerParams(vmem_limit_bytes=32 * 1024 * 1024),
    )(x_tm, prep["a_blk"],
      prep["w_gnn1"], prep["b_gnn1"], prep["w_gnn2"], prep["b_gnn2"],
      prep["b1"], prep["b2"], prep["w_fc"], prep["b_fc"],
      prep["w_ih1"], prep["wcomb"])


# -------------------- one-time constant prep (off hot path) ------------------
def prepare_model(params, a_hat, batch_size):
    """Hoists all per-call constant prep out of the jitted forward:
    block adjacency, fused recurrent weight and g-gate pre-scaling."""
    H = params["w_hh1"].shape[0]

    def scale_g(w):    # scale the g-gate columns (PyTorch order i,f,g,o) by 2
        return w.at[..., 2 * H:3 * H].multiply(2.0)

    wih1 = scale_g(params["w_ih1"])
    whh1 = scale_g(params["w_hh1"])
    b1 = scale_g(params["b1"])
    wih2 = scale_g(params["w_ih2"])
    whh2 = scale_g(params["w_hh2"])
    b2 = scale_g(params["b2"])

    # combined recurrent weight: [h1 | h2] @ [[Whh1, Wih2], [0, Whh2]]
    wcomb = jnp.concatenate(
        [jnp.concatenate([whh1, wih2], axis=1),
         jnp.concatenate([jnp.zeros_like(whh2), whh2], axis=1)], axis=0)

    a_blk = jnp.kron(a_hat, jnp.eye(batch_size, dtype=jnp.float32))

    return dict(
        a_blk=a_blk,
        w_gnn1=params["w_gnn1"], b_gnn1=params["b_gnn1"],
        w_gnn2=params["w_gnn2"], b_gnn2=params["b_gnn2"],
        w_ih1=wih1, b1=b1, wcomb=wcomb, b2=b2,
        w_fc=params["w_fc"], b_fc=params["b_fc"],
    )


# ---------------------------------- glue -------------------------------------
def gcn_norm_adj(edge_index, num_nodes):
    """Dense GCN-normalized adjacency: D^{-1/2} (A + I) D^{-1/2}."""
    src, dst = edge_index[0], edge_index[1]
    a = jnp.zeros((num_nodes, num_nodes), jnp.float32)
    a = a.at[dst, src].add(1.0)                 # scatter-add like PyG
    a = a + jnp.eye(num_nodes, dtype=jnp.float32)   # add self loops
    deg = a.sum(axis=1)
    d = jnp.where(deg > 0, 1.0 / jnp.sqrt(deg), 0.0)
    return d[:, None] * a * d[None, :]


def init_params(key, input_dim, gnn_hidden, rnn_hidden, output_dim):
    ks = jax.random.split(key, 10)

    def g(k, shape, fan_in):
        return (jax.random.normal(k, shape, jnp.float32)
                / jnp.sqrt(jnp.float32(fan_in))).astype(jnp.float32)

    H4 = 4 * rnn_hidden
    return dict(
        w_gnn1=g(ks[0], (input_dim, gnn_hidden), input_dim),
        b_gnn1=jnp.zeros((1, gnn_hidden), jnp.float32),
        w_gnn2=g(ks[1], (gnn_hidden, gnn_hidden), gnn_hidden),
        b_gnn2=jnp.zeros((1, gnn_hidden), jnp.float32),
        # LSTM layer 1 (weights stored transposed: [in, 4H]); b = b_ih + b_hh
        w_ih1=g(ks[2], (gnn_hidden, H4), gnn_hidden),
        w_hh1=g(ks[3], (rnn_hidden, H4), rnn_hidden),
        b1=0.01 * g(ks[4], (1, H4), 1.0),
        # LSTM layer 2
        w_ih2=g(ks[5], (rnn_hidden, H4), rnn_hidden),
        w_hh2=g(ks[6], (rnn_hidden, H4), rnn_hidden),
        b2=0.01 * g(ks[7], (1, H4), 1.0),
        # final Linear
        w_fc=g(ks[8], (rnn_hidden, output_dim), rnn_hidden),
        b_fc=jnp.zeros((1, output_dim), jnp.float32),
    )


# ------------------------- pure-JAX reference check --------------------------
def reference_forward(params, x, a_hat):
    B, S, F = x.shape
    H = params["w_hh1"].shape[0]

    def gcn(xb, w, b):
        return jax.nn.relu(a_hat @ (xb @ w) + b)

    h = jax.vmap(lambda xb: gcn(xb, params["w_gnn1"], params["b_gnn1"]))(x)
    g = jax.vmap(lambda hb: gcn(hb, params["w_gnn2"], params["b_gnn2"]))(h)

    def cell(x_t, hp, cp, wih, whh, b):
        gt = x_t @ wih + hp @ whh + b
        i = jax.nn.sigmoid(gt[:, 0:H])
        f = jax.nn.sigmoid(gt[:, H:2 * H])
        gg = jnp.tanh(gt[:, 2 * H:3 * H])
        o = jax.nn.sigmoid(gt[:, 3 * H:4 * H])
        c = f * cp + i * gg
        return o * jnp.tanh(c), c

    h1 = c1 = h2 = c2 = jnp.zeros((B, H), jnp.float32)
    for t in range(S):
        h1, c1 = cell(g[:, t, :], h1, c1,
                      params["w_ih1"], params["w_hh1"], params["b1"])
        h2, c2 = cell(h1, h2, c2,
                      params["w_ih2"], params["w_hh2"], params["b2"])
    return h2 @ params["w_fc"] + params["b_fc"]


if __name__ == "__main__":
    B, S, F_in = 2, 8, 16          # batch, seq_length (== num graph nodes), input_dim
    G, H, O = 64, 128, 7           # gnn_hidden_dim, rnn_hidden_dim, output_dim

    key = jax.random.PRNGKey(0)
    kx, kp = jax.random.split(key)

    x = jax.random.normal(kx, (B, S, F_in), jnp.float32)

    # undirected ring graph over the S nodes -> edge_index [2, 2S]
    idx = jnp.arange(S)
    src = jnp.concatenate([idx, (idx + 1) % S])
    dst = jnp.concatenate([(idx + 1) % S, idx])
    edge_index = jnp.stack([src, dst]).astype(jnp.int32)

    a_hat = gcn_norm_adj(edge_index, S)
    params = init_params(kp, F_in, G, H, O)
    prep = prepare_model(params, a_hat, B)     # one-time, off the hot path

    out = hybrid_gnn_rnn_forward(prep, x)
    out = jax.block_until_ready(out)
    assert out.shape == (B, O) and out.dtype == jnp.float32

    # Loose functional check vs pure-JAX reference (MXU f32 decomposition vs
    # XLA default matmul precision + tanh-as-sigmoid rewrite differ slightly).
    ref = jax.block_until_ready(reference_forward(params, x, a_hat))
    np.testing.assert_allclose(np.asarray(out), np.asarray(ref),
                               rtol=5e-2, atol=5e-2)

    print("KERNEL_OK")
</pallas_src>

<mosaic_0001>
module attributes {stable_mosaic.version = 11 : i64} {
  func.func @_hybrid_kernel(%arg0: memref<16x16xf32, #tpu.memory_space<vmem>>, %arg1: memref<16x16xf32, #tpu.memory_space<vmem>>, %arg2: memref<16x64xf32, #tpu.memory_space<vmem>>, %arg3: memref<1x64xf32, #tpu.memory_space<vmem>>, %arg4: memref<64x64xf32, #tpu.memory_space<vmem>>, %arg5: memref<1x64xf32, #tpu.memory_space<vmem>>, %arg6: memref<1x512xf32, #tpu.memory_space<vmem>>, %arg7: memref<1x512xf32, #tpu.memory_space<vmem>>, %arg8: memref<128x7xf32, #tpu.memory_space<vmem>>, %arg9: memref<1x7xf32, #tpu.memory_space<vmem>>, %arg10: memref<64x512xf32, #tpu.memory_space<any>>, %arg11: memref<256x1024xf32, #tpu.memory_space<any>>, %arg12: memref<2x7xf32, #tpu.memory_space<vmem>>, %arg13: memref<64x512xf32, #tpu.memory_space<vmem>>, %arg14: memref<256x1024xf32, #tpu.memory_space<vmem>>, %arg15: memref<2x!tpu.dma_semaphore, #tpu.memory_space<semaphore_mem>>) attributes {dimension_semantics = [], scalar_prefetch = 0 : i64, scratch_operands = 3 : i64, tpu.core_type = #tpu.core_type<tc>} {
    %c0_i32 = arith.constant 0 : i32
    %0 = tpu.memref_slice %arg15[%c0_i32] : memref<2x!tpu.dma_semaphore, #tpu.memory_space<semaphore_mem>> -> memref<1x!tpu.dma_semaphore, #tpu.memory_space<semaphore_mem>>
    %1 = tpu.memref_squeeze %0 : memref<1x!tpu.dma_semaphore, #tpu.memory_space<semaphore_mem>> -> memref<!tpu.dma_semaphore, #tpu.memory_space<semaphore_mem>>
    tpu.enqueue_dma source(%arg10 : memref<64x512xf32, #tpu.memory_space<any>>) target(%arg13 : memref<64x512xf32, #tpu.memory_space<vmem>>) target_semaphore(%1 : memref<!tpu.dma_semaphore, #tpu.memory_space<semaphore_mem>>)
    %c1_i32 = arith.constant 1 : i32
    %2 = tpu.memref_slice %arg15[%c1_i32] : memref<2x!tpu.dma_semaphore, #tpu.memory_space<semaphore_mem>> -> memref<1x!tpu.dma_semaphore, #tpu.memory_space<semaphore_mem>>
    %3 = tpu.memref_squeeze %2 : memref<1x!tpu.dma_semaphore, #tpu.memory_space<semaphore_mem>> -> memref<!tpu.dma_semaphore, #tpu.memory_space<semaphore_mem>>
    tpu.enqueue_dma source(%arg11 : memref<256x1024xf32, #tpu.memory_space<any>>) target(%arg14 : memref<256x1024xf32, #tpu.memory_space<vmem>>) target_semaphore(%3 : memref<!tpu.dma_semaphore, #tpu.memory_space<semaphore_mem>>)
    %c0 = arith.constant 0 : index
    %c0_0 = arith.constant 0 : index
    %4 = vector.load %arg1[%c0, %c0_0] : memref<16x16xf32, #tpu.memory_space<vmem>>, vector<16x16xf32>
    %c0_1 = arith.constant 0 : index
    %c0_2 = arith.constant 0 : index
    %5 = vector.load %arg0[%c0_1, %c0_2] : memref<16x16xf32, #tpu.memory_space<vmem>>, vector<16x16xf32>
    %c0_3 = arith.constant 0 : index
    %c0_4 = arith.constant 0 : index
    %6 = vector.load %arg2[%c0_3, %c0_4] : memref<16x64xf32, #tpu.memory_space<vmem>>, vector<16x64xf32>
    %cst = arith.constant dense<0.000000e+00> : vector<16x64xf32>
    %7 = tpu.matmul %5, %6, %cst {dimension_numbers = #tpu.dot_dimension_numbers<[1], [0], [0], [1], [0, 0, 1, 1], [], []>} : vector<16x16xf32>, vector<16x64xf32>, vector<16x64xf32> -> vector<16x64xf32>
    %cst_5 = arith.constant dense<0.000000e+00> : vector<16x64xf32>
    %8 = tpu.matmul %4, %7, %cst_5 {dimension_numbers = #tpu.dot_dimension_numbers<[1], [0], [0], [1], [0, 0, 1, 1], [], []>} : vector<16x16xf32>, vector<16x64xf32>, vector<16x64xf32> -> vector<16x64xf32>
    %c0_6 = arith.constant 0 : index
    %c0_7 = arith.constant 0 : index
    %9 = vector.load %arg3[%c0_6, %c0_7] : memref<1x64xf32, #tpu.memory_space<vmem>>, vector<1x64xf32>
    %10 = vector.broadcast %9 : vector<1x64xf32> to vector<16x64xf32>
    %11 = arith.addf %8, %10 : vector<16x64xf32>
    %cst_8 = arith.constant 0.000000e+00 : f32
    %12 = vector.broadcast %cst_8 : f32 to vector<16x64xf32>
    %13 = arith.maximumf %11, %12 : vector<16x64xf32>
    %c0_9 = arith.constant 0 : index
    %c0_10 = arith.constant 0 : index
    %14 = vector.load %arg4[%c0_9, %c0_10] : memref<64x64xf32, #tpu.memory_space<vmem>>, vector<64x64xf32>
    %cst_11 = arith.constant dense<0.000000e+00> : vector<16x64xf32>
    %15 = tpu.matmul %13, %14, %cst_11 {dimension_numbers = #tpu.dot_dimension_numbers<[1], [0], [0], [1], [0, 0, 1, 1], [], []>} : vector<16x64xf32>, vector<64x64xf32>, vector<16x64xf32> -> vector<16x64xf32>
    %cst_12 = arith.constant dense<0.000000e+00> : vector<16x64xf32>
    %16 = tpu.matmul %4, %15, %cst_12 {dimension_numbers = #tpu.dot_dimension_numbers<[1], [0], [0], [1], [0, 0, 1, 1], [], []>} : vector<16x16xf32>, vector<16x64xf32>, vector<16x64xf32> -> vector<16x64xf32>
    %c0_13 = arith.constant 0 : index
    %c0_14 = arith.constant 0 : index
    %17 = vector.load %arg5[%c0_13, %c0_14] : memref<1x64xf32, #tpu.memory_space<vmem>>, vector<1x64xf32>
    %18 = vector.broadcast %17 : vector<1x64xf32> to vector<16x64xf32>
    %19 = arith.addf %16, %18 : vector<16x64xf32>
    %cst_15 = arith.constant 0.000000e+00 : f32
    %20 = vector.broadcast %cst_15 : f32 to vector<16x64xf32>
    %21 = arith.maximumf %19, %20 : vector<16x64xf32>
    %c0_i32_16 = arith.constant 0 : i32
    %22 = tpu.memref_slice %arg15[%c0_i32_16] : memref<2x!tpu.dma_semaphore, #tpu.memory_space<semaphore_mem>> -> memref<1x!tpu.dma_semaphore, #tpu.memory_space<semaphore_mem>>
    %23 = tpu.memref_squeeze %22 : memref<1x!tpu.dma_semaphore, #tpu.memory_space<semaphore_mem>> -> memref<!tpu.dma_semaphore, #tpu.memory_space<semaphore_mem>>
    tpu.wait_dma2 semaphore(%23 : memref<!tpu.dma_semaphore, #tpu.memory_space<semaphore_mem>>) src(%arg10 : memref<64x512xf32, #tpu.memory_space<any>>) dst(%arg13 : memref<64x512xf32, #tpu.memory_space<vmem>>)
    %c0_17 = arith.constant 0 : index
    %c0_18 = arith.constant 0 : index
    %24 = vector.load %arg13[%c0_17, %c0_18] : memref<64x512xf32, #tpu.memory_space<vmem>>, vector<64x512xf32>
    %cst_19 = arith.constant dense<0.000000e+00> : vector<16x512xf32>
    %25 = tpu.matmul %21, %24, %cst_19 {dimension_numbers = #tpu.dot_dimension_numbers<[1], [0], [0], [1], [0, 0, 1, 1], [], []>} : vector<16x64xf32>, vector<64x512xf32>, vector<16x512xf32> -> vector<16x512xf32>
    %c0_20 = arith.constant 0 : index
    %c0_21 = arith.constant 0 : index
    %26 = vector.load %arg6[%c0_20, %c0_21] : memref<1x512xf32, #tpu.memory_space<vmem>>, vector<1x512xf32>
    %27 = vector.broadcast %26 : vector<1x512xf32> to vector<16x512xf32>
    %28 = arith.addf %25, %27 : vector<16x512xf32>
    %c1_i32_22 = arith.constant 1 : i32
    %29 = tpu.memref_slice %arg15[%c1_i32_22] : memref<2x!tpu.dma_semaphore, #tpu.memory_space<semaphore_mem>> -> memref<1x!tpu.dma_semaphore, #tpu.memory_space<semaphore_mem>>
    %30 = tpu.memref_squeeze %29 : memref<1x!tpu.dma_semaphore, #tpu.memory_space<semaphore_mem>> -> memref<!tpu.dma_semaphore, #tpu.memory_space<semaphore_mem>>
    tpu.wait_dma2 semaphore(%30 : memref<!tpu.dma_semaphore, #tpu.memory_space<semaphore_mem>>) src(%arg11 : memref<256x1024xf32, #tpu.memory_space<any>>) dst(%arg14 : memref<256x1024xf32, #tpu.memory_space<vmem>>)
    %c0_23 = arith.constant 0 : index
    %c0_24 = arith.constant 0 : index
    %31 = vector.load %arg14[%c0_23, %c0_24] : memref<256x1024xf32, #tpu.memory_space<vmem>>, vector<256x1024xf32>
    %c0_25 = arith.constant 0 : index
    %c0_26 = arith.constant 0 : index
    %32 = vector.load %arg7[%c0_25, %c0_26] : memref<1x512xf32, #tpu.memory_space<vmem>>, vector<1x512xf32>
    %33 = vector.shape_cast %32 : vector<1x512xf32> to vector<1x512xf32>
    %34 = vector.broadcast %33 : vector<1x512xf32> to vector<2x512xf32>
    %35 = vector.extract_strided_slice %28 {offsets = [0, 0], sizes = [2, 512], strides = [1, 1]} : vector<16x512xf32> to vector<2x512xf32>
    %36 = vector.extract_strided_slice %28 {offsets = [2, 0], sizes = [2, 512], strides = [1, 1]} : vector<16x512xf32> to vector<2x512xf32>
    %37 = vector.extract_strided_slice %28 {offsets = [4, 0], sizes = [2, 512], strides = [1, 1]} : vector<16x512xf32> to vector<2x512xf32>
    %38 = vector.extract_strided_slice %28 {offsets = [6, 0], sizes = [2, 512], strides = [1, 1]} : vector<16x512xf32> to vector<2x512xf32>
    %39 = vector.extract_strided_slice %28 {offsets = [8, 0], sizes = [2, 512], strides = [1, 1]} : vector<16x512xf32> to vector<2x512xf32>
    %40 = vector.extract_strided_slice %28 {offsets = [10, 0], sizes = [2, 512], strides = [1, 1]} : vector<16x512xf32> to vector<2x512xf32>
    %41 = vector.extract_strided_slice %28 {offsets = [12, 0], sizes = [2, 512], strides = [1, 1]} : vector<16x512xf32> to vector<2x512xf32>
    %42 = vector.extract_strided_slice %28 {offsets = [14, 0], sizes = [2, 512], strides = [1, 1]} : vector<16x512xf32> to vector<2x512xf32>
    %43 = tpu.concatenate %36, %34 in 1 : vector<2x512xf32>, vector<2x512xf32> -> vector<2x1024xf32>
    %44 = tpu.concatenate %37, %34 in 1 : vector<2x512xf32>, vector<2x512xf32> -> vector<2x1024xf32>
    %45 = tpu.concatenate %38, %34 in 1 : vector<2x512xf32>, vector<2x512xf32> -> vector<2x1024xf32>
    %46 = tpu.concatenate %39, %34 in 1 : vector<2x512xf32>, vector<2x512xf32> -> vector<2x1024xf32>
    %47 = tpu.concatenate %40, %34 in 1 : vector<2x512xf32>, vector<2x512xf32> -> vector<2x1024xf32>
    %48 = tpu.concatenate %41, %34 in 1 : vector<2x512xf32>, vector<2x512xf32> -> vector<2x1024xf32>
    %49 = tpu.concatenate %42, %34 in 1 : vector<2x512xf32>, vector<2x512xf32> -> vector<2x1024xf32>
    %cst_27 = arith.constant 0.000000e+00 : f32
    %50 = vector.broadcast %cst_27 : f32 to vector<2x128xf32>
    %51 = arith.negf %35 : vector<2x512xf32>
    %52 = math.exp %51 : vector<2x512xf32>
    %cst_28 = arith.constant 1.000000e+00 : f32
    %53 = vector.broadcast %cst_28 : f32 to vector<2x512xf32>
    %54 = arith.addf %53, %52 : vector<2x512xf32>
    %55 = arith.divf %53, %54 : vector<2x512xf32>
    %56 = vector.extract_strided_slice %55 {offsets = [0, 0], sizes = [2, 128], strides = [1, 1]} : vector<2x512xf32> to vector<2x128xf32>
    %57 = vector.extract_strided_slice %55 {offsets = [0, 128], sizes = [2, 128], strides = [1, 1]} : vector<2x512xf32> to vector<2x128xf32>
    %58 = vector.extract_strided_slice %55 {offsets = [0, 256], sizes = [2, 128], strides = [1, 1]} : vector<2x512xf32> to vector<2x128xf32>
    %cst_29 = arith.constant 2.000000e+00 : f32
    %59 = vector.broadcast %cst_29 : f32 to vector<2x128xf32>
    %60 = arith.mulf %59, %58 : vector<2x128xf32>
    %cst_30 = arith.constant 1.000000e+00 : f32
    %61 = vector.broadcast %cst_30 : f32 to vector<2x128xf32>
    %62 = arith.subf %60, %61 : vector<2x128xf32>
    %63 = vector.extract_strided_slice %55 {offsets = [0, 384], sizes = [2, 128], strides = [1, 1]} : vector<2x512xf32> to vector<2x128xf32>
    %64 = arith.mulf %57, %50 : vector<2x128xf32>
    %65 = arith.mulf %56, %62 : vector<2x128xf32>
    %66 = arith.addf %64, %65 : vector<2x128xf32>
    %cst_31 = arith.constant 2.000000e+00 : f32
    %67 = vector.broadcast %cst_31 : f32 to vector<2x128xf32>
    %68 = arith.mulf %67, %66 : vector<2x128xf32>
    %69 = arith.negf %68 : vector<2x128xf32>
    %70 = math.exp %69 : vector<2x128xf32>
    %cst_32 = arith.constant 1.000000e+00 : f32
    %71 = vector.broadcast %cst_32 : f32 to vector<2x128xf32>
    %72 = arith.addf %71, %70 : vector<2x128xf32>
    %73 = arith.divf %71, %72 : vector<2x128xf32>
    %cst_33 = arith.constant 2.000000e+00 : f32
    %74 = vector.broadcast %cst_33 : f32 to vector<2x128xf32>
    %75 = arith.mulf %74, %73 : vector<2x128xf32>
    %cst_34 = arith.constant 1.000000e+00 : f32
    %76 = vector.broadcast %cst_34 : f32 to vector<2x128xf32>
    %77 = arith.subf %75, %76 : vector<2x128xf32>
    %78 = arith.mulf %63, %77 : vector<2x128xf32>
    %cst_35 = arith.constant 0.000000e+00 : f32
    %79 = vector.broadcast %cst_35 : f32 to vector<2x128xf32>
    %cst_36 = arith.constant 0.000000e+00 : f32
    %80 = vector.broadcast %cst_36 : f32 to vector<2x128xf32>
    %81 = tpu.concatenate %78, %79 in 1 : vector<2x128xf32>, vector<2x128xf32> -> vector<2x256xf32>
    %cst_37 = arith.constant dense<0.000000e+00> : vector<2x1024xf32>
    %82 = tpu.matmul %81, %31, %cst_37 {dimension_numbers = #tpu.dot_dimension_numbers<[1], [0], [0], [1], [0, 0, 1, 1], [], []>} : vector<2x256xf32>, vector<256x1024xf32>, vector<2x1024xf32> -> vector<2x1024xf32>
    %83 = arith.addf %82, %43 : vector<2x1024xf32>
    %84 = arith.negf %83 : vector<2x1024xf32>
    %85 = math.exp %84 : vector<2x1024xf32>
    %cst_38 = arith.constant 1.000000e+00 : f32
    %86 = vector.broadcast %cst_38 : f32 to vector<2x1024xf32>
    %87 = arith.addf %86, %85 : vector<2x1024xf32>
    %88 = arith.divf %86, %87 : vector<2x1024xf32>
    %89 = vector.extract_strided_slice %88 {offsets = [0, 0], sizes = [2, 128], strides = [1, 1]} : vector<2x1024xf32> to vector<2x128xf32>
    %90 = vector.extract_strided_slice %88 {offsets = [0, 128], sizes = [2, 128], strides = [1, 1]} : vector<2x1024xf32> to vector<2x128xf32>
    %91 = vector.extract_strided_slice %88 {offsets = [0, 256], sizes = [2, 128], strides = [1, 1]} : vector<2x1024xf32> to vector<2x128xf32>
    %cst_39 = arith.constant 2.000000e+00 : f32
    %92 = vector.broadcast %cst_39 : f32 to vector<2x128xf32>
    %93 = arith.mulf %92, %91 : vector<2x128xf32>
    %cst_40 = arith.constant 1.000000e+00 : f32
    %94 = vector.broadcast %cst_40 : f32 to vector<2x128xf32>
    %95 = arith.subf %93, %94 : vector<2x128xf32>
    %96 = vector.extract_strided_slice %88 {offsets = [0, 384], sizes = [2, 128], strides = [1, 1]} : vector<2x1024xf32> to vector<2x128xf32>
    %97 = vector.extract_strided_slice %88 {offsets = [0, 512], sizes = [2, 128], strides = [1, 1]} : vector<2x1024xf32> to vector<2x128xf32>
    %98 = vector.extract_strided_slice %88 {offsets = [0, 640], sizes = [2, 128], strides = [1, 1]} : vector<2x1024xf32> to vector<2x128xf32>
    %99 = vector.extract_strided_slice %88 {offsets = [0, 768], sizes = [2, 128], strides = [1, 1]} : vector<2x1024xf32> to vector<2x128xf32>
    %cst_41 = arith.constant 2.000000e+00 : f32
    %100 = vector.broadcast %cst_41 : f32 to vector<2x128xf32>
    %101 = arith.mulf %100, %99 : vector<2x128xf32>
    %cst_42 = arith.constant 1.000000e+00 : f32
    %102 = vector.broadcast %cst_42 : f32 to vector<2x128xf32>
    %103 = arith.subf %101, %102 : vector<2x128xf32>
    %104 = vector.extract_strided_slice %88 {offsets = [0, 896], sizes = [2, 128], strides = [1, 1]} : vector<2x1024xf32> to vector<2x128xf32>
    %105 = arith.mulf %90, %66 : vector<2x128xf32>
    %106 = arith.mulf %89, %95 : vector<2x128xf32>
    %107 = arith.addf %105, %106 : vector<2x128xf32>
    %108 = arith.mulf %98, %80 : vector<2x128xf32>
    %109 = arith.mulf %97, %103 : vector<2x128xf32>
    %110 = arith.addf %108, %109 : vector<2x128xf32>
    %111 = tpu.concatenate %107, %110 in 1 : vector<2x128xf32>, vector<2x128xf32> -> vector<2x256xf32>
    %cst_43 = arith.constant 2.000000e+00 : f32
    %112 = vector.broadcast %cst_43 : f32 to vector<2x256xf32>
    %113 = arith.mulf %112, %111 : vector<2x256xf32>
    %114 = arith.negf %113 : vector<2x256xf32>
    %115 = math.exp %114 : vector<2x256xf32>
    %cst_44 = arith.constant 1.000000e+00 : f32
    %116 = vector.broadcast %cst_44 : f32 to vector<2x256xf32>
    %117 = arith.addf %116, %115 : vector<2x256xf32>
    %118 = arith.divf %116, %117 : vector<2x256xf32>
    %cst_45 = arith.constant 2.000000e+00 : f32
    %119 = vector.broadcast %cst_45 : f32 to vector<2x256xf32>
    %120 = arith.mulf %119, %118 : vector<2x256xf32>
    %cst_46 = arith.constant 1.000000e+00 : f32
    %121 = vector.broadcast %cst_46 : f32 to vector<2x256xf32>
    %122 = arith.subf %120, %121 : vector<2x256xf32>
    %123 = vector.extract_strided_slice %122 {offsets = [0, 0], sizes = [2, 128], strides = [1, 1]} : vector<2x256xf32> to vector<2x128xf32>
    %124 = arith.mulf %96, %123 : vector<2x128xf32>
    %125 = vector.extract_strided_slice %122 {offsets = [0, 128], sizes = [2, 128], strides = [1, 1]} : vector<2x256xf32> to vector<2x128xf32>
    %126 = arith.mulf %104, %125 : vector<2x128xf32>
    %127 = tpu.concatenate %124, %126 in 1 : vector<2x128xf32>, vector<2x128xf32> -> vector<2x256xf32>
    %cst_47 = arith.constant dense<0.000000e+00> : vector<2x1024xf32>
    %128 = tpu.matmul %127, %31, %cst_47 {dimension_numbers = #tpu.dot_dimension_numbers<[1], [0], [0], [1], [0, 0, 1, 1], [], []>} : vector<2x256xf32>, vector<256x1024xf32>, vector<2x1024xf32> -> vector<2x1024xf32>
    %129 = arith.addf %128, %44 : vector<2x1024xf32>
    %130 = arith.negf %129 : vector<2x1024xf32>
    %131 = math.exp %130 : vector<2x1024xf32>
    %cst_48 = arith.constant 1.000000e+00 : f32
    %132 = vector.broadcast %cst_48 : f32 to vector<2x1024xf32>
    %133 = arith.addf %132, %131 : vector<2x1024xf32>
    %134 = arith.divf %132, %133 : vector<2x1024xf32>
    %135 = vector.extract_strided_slice %134 {offsets = [0, 0], sizes = [2, 128], strides = [1, 1]} : vector<2x1024xf32> to vector<2x128xf32>
    %136 = vector.extract_strided_slice %134 {offsets = [0, 128], sizes = [2, 128], strides = [1, 1]} : vector<2x1024xf32> to vector<2x128xf32>
    %137 = vector.extract_strided_slice %134 {offsets = [0, 256], sizes = [2, 128], strides = [1, 1]} : vector<2x1024xf32> to vector<2x128xf32>
    %cst_49 = arith.constant 2.000000e+00 : f32
    %138 = vector.broadcast %cst_49 : f32 to vector<2x128xf32>
    %139 = arith.mulf %138, %137 : vector<2x128xf32>
    %cst_50 = arith.constant 1.000000e+00 : f32
    %140 = vector.broadcast %cst_50 : f32 to vector<2x128xf32>
    %141 = arith.subf %139, %140 : vector<2x128xf32>
    %142 = vector.extract_strided_slice %134 {offsets = [0, 384], sizes = [2, 128], strides = [1, 1]} : vector<2x1024xf32> to vector<2x128xf32>
    %143 = vector.extract_strided_slice %134 {offsets = [0, 512], sizes = [2, 128], strides = [1, 1]} : vector<2x1024xf32> to vector<2x128xf32>
    %144 = vector.extract_strided_slice %134 {offsets = [0, 640], sizes = [2, 128], strides = [1, 1]} : vector<2x1024xf32> to vector<2x128xf32>
    %145 = vector.extract_strided_slice %134 {offsets = [0, 768], sizes = [2, 128], strides = [1, 1]} : vector<2x1024xf32> to vector<2x128xf32>
    %cst_51 = arith.constant 2.000000e+00 : f32
    %146 = vector.broadcast %cst_51 : f32 to vector<2x128xf32>
    %147 = arith.mulf %146, %145 : vector<2x128xf32>
    %cst_52 = arith.constant 1.000000e+00 : f32
    %148 = vector.broadcast %cst_52 : f32 to vector<2x128xf32>
    %149 = arith.subf %147, %148 : vector<2x128xf32>
    %150 = vector.extract_strided_slice %134 {offsets = [0, 896], sizes = [2, 128], strides = [1, 1]} : vector<2x1024xf32> to vector<2x128xf32>
    %151 = arith.mulf %136, %107 : vector<2x128xf32>
    %152 = arith.mulf %135, %141 : vector<2x128xf32>
    %153 = arith.addf %151, %152 : vector<2x128xf32>
    %154 = arith.mulf %144, %110 : vector<2x128xf32>
    %155 = arith.mulf %143, %149 : vector<2x128xf32>
    %156 = arith.addf %154, %155 : vector<2x128xf32>
    %157 = tpu.concatenate %153, %156 in 1 : vector<2x128xf32>, vector<2x128xf32> -> vector<2x256xf32>
    %cst_53 = arith.constant 2.000000e+00 : f32
    %158 = vector.broadcast %cst_53 : f32 to vector<2x256xf32>
    %159 = arith.mulf %158, %157 : vector<2x256xf32>
    %160 = arith.negf %159 : vector<2x256xf32>
    %161 = math.exp %160 : vector<2x256xf32>
    %cst_54 = arith.constant 1.000000e+00 : f32
    %162 = vector.broadcast %cst_54 : f32 to vector<2x256xf32>
    %163 = arith.addf %162, %161 : vector<2x256xf32>
    %164 = arith.divf %162, %163 : vector<2x256xf32>
    %cst_55 = arith.constant 2.000000e+00 : f32
    %165 = vector.broadcast %cst_55 : f32 to vector<2x256xf32>
    %166 = arith.mulf %165, %164 : vector<2x256xf32>
    %cst_56 = arith.constant 1.000000e+00 : f32
    %167 = vector.broadcast %cst_56 : f32 to vector<2x256xf32>
    %168 = arith.subf %166, %167 : vector<2x256xf32>
    %169 = vector.extract_strided_slice %168 {offsets = [0, 0], sizes = [2, 128], strides = [1, 1]} : vector<2x256xf32> to vector<2x128xf32>
    %170 = arith.mulf %142, %169 : vector<2x128xf32>
    %171 = vector.extract_strided_slice %168 {offsets = [0, 128], sizes = [2, 128], strides = [1, 1]} : vector<2x256xf32> to vector<2x128xf32>
    %172 = arith.mulf %150, %171 : vector<2x128xf32>
    %173 = tpu.concatenate %170, %172 in 1 : vector<2x128xf32>, vector<2x128xf32> -> vector<2x256xf32>
    %cst_57 = arith.constant dense<0.000000e+00> : vector<2x1024xf32>
    %174 = tpu.matmul %173, %31, %cst_57 {dimension_numbers = #tpu.dot_dimension_numbers<[1], [0], [0], [1], [0, 0, 1, 1], [], []>} : vector<2x256xf32>, vector<256x1024xf32>, vector<2x1024xf32> -> vector<2x1024xf32>
    %175 = arith.addf %174, %45 : vector<2x1024xf32>
    %176 = arith.negf %175 : vector<2x1024xf32>
    %177 = math.exp %176 : vector<2x1024xf32>
    %cst_58 = arith.constant 1.000000e+00 : f32
    %178 = vector.broadcast %cst_58 : f32 to vector<2x1024xf32>
    %179 = arith.addf %178, %177 : vector<2x1024xf32>
    %180 = arith.divf %178, %179 : vector<2x1024xf32>
    %181 = vector.extract_strided_slice %180 {offsets = [0, 0], sizes = [2, 128], strides = [1, 1]} : vector<2x1024xf32> to vector<2x128xf32>
    %182 = vector.extract_strided_slice %180 {offsets = [0, 128], sizes = [2, 128], strides = [1, 1]} : vector<2x1024xf32> to vector<2x128xf32>
    %183 = vector.extract_strided_slice %180 {offsets = [0, 256], sizes = [2, 128], strides = [1, 1]} : vector<2x1024xf32> to vector<2x128xf32>
    %cst_59 = arith.constant 2.000000e+00 : f32
    %184 = vector.broadcast %cst_59 : f32 to vector<2x128xf32>
    %185 = arith.mulf %184, %183 : vector<2x128xf32>
    %cst_60 = arith.constant 1.000000e+00 : f32
    %186 = vector.broadcast %cst_60 : f32 to vector<2x128xf32>
    %187 = arith.subf %185, %186 : vector<2x128xf32>
    %188 = vector.extract_strided_slice %180 {offsets = [0, 384], sizes = [2, 128], strides = [1, 1]} : vector<2x1024xf32> to vector<2x128xf32>
    %189 = vector.extract_strided_slice %180 {offsets = [0, 512], sizes = [2, 128], strides = [1, 1]} : vector<2x1024xf32> to vector<2x128xf32>
    %190 = vector.extract_strided_slice %180 {offsets = [0, 640], sizes = [2, 128], strides = [1, 1]} : vector<2x1024xf32> to vector<2x128xf32>
    %191 = vector.extract_strided_slice %180 {offsets = [0, 768], sizes = [2, 128], strides = [1, 1]} : vector<2x1024xf32> to vector<2x128xf32>
    %cst_61 = arith.constant 2.000000e+00 : f32
    %192 = vector.broadcast %cst_61 : f32 to vector<2x128xf32>
    %193 = arith.mulf %192, %191 : vector<2x128xf32>
    %cst_62 = arith.constant 1.000000e+00 : f32
    %194 = vector.broadcast %cst_62 : f32 to vector<2x128xf32>
    %195 = arith.subf %193, %194 : vector<2x128xf32>
    %196 = vector.extract_strided_slice %180 {offsets = [0, 896], sizes = [2, 128], strides = [1, 1]} : vector<2x1024xf32> to vector<2x128xf32>
    %197 = arith.mulf %182, %153 : vector<2x128xf32>
    %198 = arith.mulf %181, %187 : vector<2x128xf32>
    %199 = arith.addf %197, %198 : vector<2x128xf32>
    %200 = arith.mulf %190, %156 : vector<2x128xf32>
    %201 = arith.mulf %189, %195 : vector<2x128xf32>
    %202 = arith.addf %200, %201 : vector<2x128xf32>
    %203 = tpu.concatenate %199, %202 in 1 : vector<2x128xf32>, vector<2x128xf32> -> vector<2x256xf32>
    %cst_63 = arith.constant 2.000000e+00 : f32
    %204 = vector.broadcast %cst_63 : f32 to vector<2x256xf32>
    %205 = arith.mulf %204, %203 : vector<2x256xf32>
    %206 = arith.negf %205 : vector<2x256xf32>
    %207 = math.exp %206 : vector<2x256xf32>
    %cst_64 = arith.constant 1.000000e+00 : f32
    %208 = vector.broadcast %cst_64 : f32 to vector<2x256xf32>
    %209 = arith.addf %208, %207 : vector<2x256xf32>
    %210 = arith.divf %208, %209 : vector<2x256xf32>
    %cst_65 = arith.constant 2.000000e+00 : f32
    %211 = vector.broadcast %cst_65 : f32 to vector<2x256xf32>
    %212 = arith.mulf %211, %210 : vector<2x256xf32>
    %cst_66 = arith.constant 1.000000e+00 : f32
    %213 = vector.broadcast %cst_66 : f32 to vector<2x256xf32>
    %214 = arith.subf %212, %213 : vector<2x256xf32>
    %215 = vector.extract_strided_slice %214 {offsets = [0, 0], sizes = [2, 128], strides = [1, 1]} : vector<2x256xf32> to vector<2x128xf32>
    %216 = arith.mulf %188, %215 : vector<2x128xf32>
    %217 = vector.extract_strided_slice %214 {offsets = [0, 128], sizes = [2, 128], strides = [1, 1]} : vector<2x256xf32> to vector<2x128xf32>
    %218 = arith.mulf %196, %217 : vector<2x128xf32>
    %219 = tpu.concatenate %216, %218 in 1 : vector<2x128xf32>, vector<2x128xf32> -> vector<2x256xf32>
    %cst_67 = arith.constant dense<0.000000e+00> : vector<2x1024xf32>
    %220 = tpu.matmul %219, %31, %cst_67 {dimension_numbers = #tpu.dot_dimension_numbers<[1], [0], [0], [1], [0, 0, 1, 1], [], []>} : vector<2x256xf32>, vector<256x1024xf32>, vector<2x1024xf32> -> vector<2x1024xf32>
    %221 = arith.addf %220, %46 : vector<2x1024xf32>
    %222 = arith.negf %221 : vector<2x1024xf32>
    %223 = math.exp %222 : vector<2x1024xf32>
    %cst_68 = arith.constant 1.000000e+00 : f32
    %224 = vector.broadcast %cst_68 : f32 to vector<2x1024xf32>
    %225 = arith.addf %224, %223 : vector<2x1024xf32>
    %226 = arith.divf %224, %225 : vector<2x1024xf32>
    %227 = vector.extract_strided_slice %226 {offsets = [0, 0], sizes = [2, 128], strides = [1, 1]} : vector<2x1024xf32> to vector<2x128xf32>
    %228 = vector.extract_strided_slice %226 {offsets = [0, 128], sizes = [2, 128], strides = [1, 1]} : vector<2x1024xf32> to vector<2x128xf32>
    %229 = vector.extract_strided_slice %226 {offsets = [0, 256], sizes = [2, 128], strides = [1, 1]} : vector<2x1024xf32> to vector<2x128xf32>
    %cst_69 = arith.constant 2.000000e+00 : f32
    %230 = vector.broadcast %cst_69 : f32 to vector<2x128xf32>
    %231 = arith.mulf %230, %229 : vector<2x128xf32>
    %cst_70 = arith.constant 1.000000e+00 : f32
    %232 = vector.broadcast %cst_70 : f32 to vector<2x128xf32>
    %233 = arith.subf %231, %232 : vector<2x128xf32>
    %234 = vector.extract_strided_slice %226 {offsets = [0, 384], sizes = [2, 128], strides = [1, 1]} : vector<2x1024xf32> to vector<2x128xf32>
    %235 = vector.extract_strided_slice %226 {offsets = [0, 512], sizes = [2, 128], strides = [1, 1]} : vector<2x1024xf32> to vector<2x128xf32>
    %236 = vector.extract_strided_slice %226 {offsets = [0, 640], sizes = [2, 128], strides = [1, 1]} : vector<2x1024xf32> to vector<2x128xf32>
    %237 = vector.extract_strided_slice %226 {offsets = [0, 768], sizes = [2, 128], strides = [1, 1]} : vector<2x1024xf32> to vector<2x128xf32>
    %cst_71 = arith.constant 2.000000e+00 : f32
    %238 = vector.broadcast %cst_71 : f32 to vector<2x128xf32>
    %239 = arith.mulf %238, %237 : vector<2x128xf32>
    %cst_72 = arith.constant 1.000000e+00 : f32
    %240 = vector.broadcast %cst_72 : f32 to vector<2x128xf32>
    %241 = arith.subf %239, %240 : vector<2x128xf32>
    %242 = vector.extract_strided_slice %226 {offsets = [0, 896], sizes = [2, 128], strides = [1, 1]} : vector<2x1024xf32> to vector<2x128xf32>
    %243 = arith.mulf %228, %199 : vector<2x128xf32>
    %244 = arith.mulf %227, %233 : vector<2x128xf32>
    %245 = arith.addf %243, %244 : vector<2x128xf32>
    %246 = arith.mulf %236, %202 : vector<2x128xf32>
    %247 = arith.mulf %235, %241 : vector<2x128xf32>
    %248 = arith.addf %246, %247 : vector<2x128xf32>
    %249 = tpu.concatenate %245, %248 in 1 : vector<2x128xf32>, vector<2x128xf32> -> vector<2x256xf32>
    %cst_73 = arith.constant 2.000000e+00 : f32
    %250 = vector.broadcast %cst_73 : f32 to vector<2x256xf32>
    %251 = arith.mulf %250, %249 : vector<2x256xf32>
    %252 = arith.negf %251 : vector<2x256xf32>
    %253 = math.exp %252 : vector<2x256xf32>
    %cst_74 = arith.constant 1.000000e+00 : f32
    %254 = vector.broadcast %cst_74 : f32 to vector<2x256xf32>
    %255 = arith.addf %254, %253 : vector<2x256xf32>
    %256 = arith.divf %254, %255 : vector<2x256xf32>
    %cst_75 = arith.constant 2.000000e+00 : f32
    %257 = vector.broadcast %cst_75 : f32 to vector<2x256xf32>
    %258 = arith.mulf %257, %256 : vector<2x256xf32>
    %cst_76 = arith.constant 1.000000e+00 : f32
    %259 = vector.broadcast %cst_76 : f32 to vector<2x256xf32>
    %260 = arith.subf %258, %259 : vector<2x256xf32>
    %261 = vector.extract_strided_slice %260 {offsets = [0, 0], sizes = [2, 128], strides = [1, 1]} : vector<2x256xf32> to vector<2x128xf32>
    %262 = arith.mulf %234, %261 : vector<2x128xf32>
    %263 = vector.extract_strided_slice %260 {offsets = [0, 128], sizes = [2, 128], strides = [1, 1]} : vector<2x256xf32> to vector<2x128xf32>
    %264 = arith.mulf %242, %263 : vector<2x128xf32>
    %265 = tpu.concatenate %262, %264 in 1 : vector<2x128xf32>, vector<2x128xf32> -> vector<2x256xf32>
    %cst_77 = arith.constant dense<0.000000e+00> : vector<2x1024xf32>
    %266 = tpu.matmul %265, %31, %cst_77 {dimension_numbers = #tpu.dot_dimension_numbers<[1], [0], [0], [1], [0, 0, 1, 1], [], []>} : vector<2x256xf32>, vector<256x1024xf32>, vector<2x1024xf32> -> vector<2x1024xf32>
    %267 = arith.addf %266, %47 : vector<2x1024xf32>
    %268 = arith.negf %267 : vector<2x1024xf32>
    %269 = math.exp %268 : vector<2x1024xf32>
    %cst_78 = arith.constant 1.000000e+00 : f32
    %270 = vector.broadcast %cst_78 : f32 to vector<2x1024xf32>
    %271 = arith.addf %270, %269 : vector<2x1024xf32>
    %272 = arith.divf %270, %271 : vector<2x1024xf32>
    %273 = vector.extract_strided_slice %272 {offsets = [0, 0], sizes = [2, 128], strides = [1, 1]} : vector<2x1024xf32> to vector<2x128xf32>
    %274 = vector.extract_strided_slice %272 {offsets = [0, 128], sizes = [2, 128], strides = [1, 1]} : vector<2x1024xf32> to vector<2x128xf32>
    %275 = vector.extract_strided_slice %272 {offsets = [0, 256], sizes = [2, 128], strides = [1, 1]} : vector<2x1024xf32> to vector<2x128xf32>
    %cst_79 = arith.constant 2.000000e+00 : f32
    %276 = vector.broadcast %cst_79 : f32 to vector<2x128xf32>
    %277 = arith.mulf %276, %275 : vector<2x128xf32>
    %cst_80 = arith.constant 1.000000e+00 : f32
    %278 = vector.broadcast %cst_80 : f32 to vector<2x128xf32>
    %279 = arith.subf %277, %278 : vector<2x128xf32>
    %280 = vector.extract_strided_slice %272 {offsets = [0, 384], sizes = [2, 128], strides = [1, 1]} : vector<2x1024xf32> to vector<2x128xf32>
    %281 = vector.extract_strided_slice %272 {offsets = [0, 512], sizes = [2, 128], strides = [1, 1]} : vector<2x1024xf32> to vector<2x128xf32>
    %282 = vector.extract_strided_slice %272 {offsets = [0, 640], sizes = [2, 128], strides = [1, 1]} : vector<2x1024xf32> to vector<2x128xf32>
    %283 = vector.extract_strided_slice %272 {offsets = [0, 768], sizes = [2, 128], strides = [1, 1]} : vector<2x1024xf32> to vector<2x128xf32>
    %cst_81 = arith.constant 2.000000e+00 : f32
    %284 = vector.broadcast %cst_81 : f32 to vector<2x128xf32>
    %285 = arith.mulf %284, %283 : vector<2x128xf32>
    %cst_82 = arith.constant 1.000000e+00 : f32
    %286 = vector.broadcast %cst_82 : f32 to vector<2x128xf32>
    %287 = arith.subf %285, %286 : vector<2x128xf32>
    %288 = vector.extract_strided_slice %272 {offsets = [0, 896], sizes = [2, 128], strides = [1, 1]} : vector<2x1024xf32> to vector<2x128xf32>
    %289 = arith.mulf %274, %245 : vector<2x128xf32>
    %290 = arith.mulf %273, %279 : vector<2x128xf32>
    %291 = arith.addf %289, %290 : vector<2x128xf32>
    %292 = arith.mulf %282, %248 : vector<2x128xf32>
    %293 = arith.mulf %281, %287 : vector<2x128xf32>
    %294 = arith.addf %292, %293 : vector<2x128xf32>
    %295 = tpu.concatenate %291, %294 in 1 : vector<2x128xf32>, vector<2x128xf32> -> vector<2x256xf32>
    %cst_83 = arith.constant 2.000000e+00 : f32
    %296 = vector.broadcast %cst_83 : f32 to vector<2x256xf32>
    %297 = arith.mulf %296, %295 : vector<2x256xf32>
    %298 = arith.negf %297 : vector<2x256xf32>
    %299 = math.exp %298 : vector<2x256xf32>
    %cst_84 = arith.constant 1.000000e+00 : f32
    %300 = vector.broadcast %cst_84 : f32 to vector<2x256xf32>
    %301 = arith.addf %300, %299 : vector<2x256xf32>
    %302 = arith.divf %300, %301 : vector<2x256xf32>
    %cst_85 = arith.constant 2.000000e+00 : f32
    %303 = vector.broadcast %cst_85 : f32 to vector<2x256xf32>
    %304 = arith.mulf %303, %302 : vector<2x256xf32>
    %cst_86 = arith.constant 1.000000e+00 : f32
    %305 = vector.broadcast %cst_86 : f32 to vector<2x256xf32>
    %306 = arith.subf %304, %305 : vector<2x256xf32>
    %307 = vector.extract_strided_slice %306 {offsets = [0, 0], sizes = [2, 128], strides = [1, 1]} : vector<2x256xf32> to vector<2x128xf32>
    %308 = arith.mulf %280, %307 : vector<2x128xf32>
    %309 = vector.extract_strided_slice %306 {offsets = [0, 128], sizes = [2, 128], strides = [1, 1]} : vector<2x256xf32> to vector<2x128xf32>
    %310 = arith.mulf %288, %309 : vector<2x128xf32>
    %311 = tpu.concatenate %308, %310 in 1 : vector<2x128xf32>, vector<2x128xf32> -> vector<2x256xf32>
    %cst_87 = arith.constant dense<0.000000e+00> : vector<2x1024xf32>
    %312 = tpu.matmul %311, %31, %cst_87 {dimension_numbers = #tpu.dot_dimension_numbers<[1], [0], [0], [1], [0, 0, 1, 1], [], []>} : vector<2x256xf32>, vector<256x1024xf32>, vector<2x1024xf32> -> vector<2x1024xf32>
    %313 = arith.addf %312, %48 : vector<2x1024xf32>
    %314 = arith.negf %313 : vector<2x1024xf32>
    %315 = math.exp %314 : vector<2x1024xf32>
    %cst_88 = arith.constant 1.000000e+00 : f32
    %316 = vector.broadcast %cst_88 : f32 to vector<2x1024xf32>
    %317 = arith.addf %316, %315 : vector<2x1024xf32>
    %318 = arith.divf %316, %317 : vector<2x1024xf32>
    %319 = vector.extract_strided_slice %318 {offsets = [0, 0], sizes = [2, 128], strides = [1, 1]} : vector<2x1024xf32> to vector<2x128xf32>
    %320 = vector.extract_strided_slice %318 {offsets = [0, 128], sizes = [2, 128], strides = [1, 1]} : vector<2x1024xf32> to vector<2x128xf32>
    %321 = vector.extract_strided_slice %318 {offsets = [0, 256], sizes = [2, 128], strides = [1, 1]} : vector<2x1024xf32> to vector<2x128xf32>
    %cst_89 = arith.constant 2.000000e+00 : f32
    %322 = vector.broadcast %cst_89 : f32 to vector<2x128xf32>
    %323 = arith.mulf %322, %321 : vector<2x128xf32>
    %cst_90 = arith.constant 1.000000e+00 : f32
    %324 = vector.broadcast %cst_90 : f32 to vector<2x128xf32>
    %325 = arith.subf %323, %324 : vector<2x128xf32>
    %326 = vector.extract_strided_slice %318 {offsets = [0, 384], sizes = [2, 128], strides = [1, 1]} : vector<2x1024xf32> to vector<2x128xf32>
    %327 = vector.extract_strided_slice %318 {offsets = [0, 512], sizes = [2, 128], strides = [1, 1]} : vector<2x1024xf32> to vector<2x128xf32>
    %328 = vector.extract_strided_slice %318 {offsets = [0, 640], sizes = [2, 128], strides = [1, 1]} : vector<2x1024xf32> to vector<2x128xf32>
    %329 = vector.extract_strided_slice %318 {offsets = [0, 768], sizes = [2, 128], strides = [1, 1]} : vector<2x1024xf32> to vector<2x128xf32>
    %cst_91 = arith.constant 2.000000e+00 : f32
    %330 = vector.broadcast %cst_91 : f32 to vector<2x128xf32>
    %331 = arith.mulf %330, %329 : vector<2x128xf32>
    %cst_92 = arith.constant 1.000000e+00 : f32
    %332 = vector.broadcast %cst_92 : f32 to vector<2x128xf32>
    %333 = arith.subf %331, %332 : vector<2x128xf32>
    %334 = vector.extract_strided_slice %318 {offsets = [0, 896], sizes = [2, 128], strides = [1, 1]} : vector<2x1024xf32> to vector<2x128xf32>
    %335 = arith.mulf %320, %291 : vector<2x128xf32>
    %336 = arith.mulf %319, %325 : vector<2x128xf32>
    %337 = arith.addf %335, %336 : vector<2x128xf32>
    %338 = arith.mulf %328, %294 : vector<2x128xf32>
    %339 = arith.mulf %327, %333 : vector<2x128xf32>
    %340 = arith.addf %338, %339 : vector<2x128xf32>
    %341 = tpu.concatenate %337, %340 in 1 : vector<2x128xf32>, vector<2x128xf32> -> vector<2x256xf32>
    %cst_93 = arith.constant 2.000000e+00 : f32
    %342 = vector.broadcast %cst_93 : f32 to vector<2x256xf32>
    %343 = arith.mulf %342, %341 : vector<2x256xf32>
    %344 = arith.negf %343 : vector<2x256xf32>
    %345 = math.exp %344 : vector<2x256xf32>
    %cst_94 = arith.constant 1.000000e+00 : f32
    %346 = vector.broadcast %cst_94 : f32 to vector<2x256xf32>
    %347 = arith.addf %346, %345 : vector<2x256xf32>
    %348 = arith.divf %346, %347 : vector<2x256xf32>
    %cst_95 = arith.constant 2.000000e+00 : f32
    %349 = vector.broadcast %cst_95 : f32 to vector<2x256xf32>
    %350 = arith.mulf %349, %348 : vector<2x256xf32>
    %cst_96 = arith.constant 1.000000e+00 : f32
    %351 = vector.broadcast %cst_96 : f32 to vector<2x256xf32>
    %352 = arith.subf %350, %351 : vector<2x256xf32>
    %353 = vector.extract_strided_slice %352 {offsets = [0, 0], sizes = [2, 128], strides = [1, 1]} : vector<2x256xf32> to vector<2x128xf32>
    %354 = arith.mulf %326, %353 : vector<2x128xf32>
    %355 = vector.extract_strided_slice %352 {offsets = [0, 128], sizes = [2, 128], strides = [1, 1]} : vector<2x256xf32> to vector<2x128xf32>
    %356 = arith.mulf %334, %355 : vector<2x128xf32>
    %357 = tpu.concatenate %354, %356 in 1 : vector<2x128xf32>, vector<2x128xf32> -> vector<2x256xf32>
    %cst_97 = arith.constant dense<0.000000e+00> : vector<2x1024xf32>
    %358 = tpu.matmul %357, %31, %cst_97 {dimension_numbers = #tpu.dot_dimension_numbers<[1], [0], [0], [1], [0, 0, 1, 1], [], []>} : vector<2x256xf32>, vector<256x1024xf32>, vector<2x1024xf32> -> vector<2x1024xf32>
    %359 = arith.addf %358, %49 : vector<2x1024xf32>
    %360 = arith.negf %359 : vector<2x1024xf32>
    %361 = math.exp %360 : vector<2x1024xf32>
    %cst_98 = arith.constant 1.000000e+00 : f32
    %362 = vector.broadcast %cst_98 : f32 to vector<2x1024xf32>
    %363 = arith.addf %362, %361 : vector<2x1024xf32>
    %364 = arith.divf %362, %363 : vector<2x1024xf32>
    %365 = vector.extract_strided_slice %364 {offsets = [0, 0], sizes = [2, 128], strides = [1, 1]} : vector<2x1024xf32> to vector<2x128xf32>
    %366 = vector.extract_strided_slice %364 {offsets = [0, 128], sizes = [2, 128], strides = [1, 1]} : vector<2x1024xf32> to vector<2x128xf32>
    %367 = vector.extract_strided_slice %364 {offsets = [0, 256], sizes = [2, 128], strides = [1, 1]} : vector<2x1024xf32> to vector<2x128xf32>
    %cst_99 = arith.constant 2.000000e+00 : f32
    %368 = vector.broadcast %cst_99 : f32 to vector<2x128xf32>
    %369 = arith.mulf %368, %367 : vector<2x128xf32>
    %cst_100 = arith.constant 1.000000e+00 : f32
    %370 = vector.broadcast %cst_100 : f32 to vector<2x128xf32>
    %371 = arith.subf %369, %370 : vector<2x128xf32>
    %372 = vector.extract_strided_slice %364 {offsets = [0, 384], sizes = [2, 128], strides = [1, 1]} : vector<2x1024xf32> to vector<2x128xf32>
    %373 = vector.extract_strided_slice %364 {offsets = [0, 512], sizes = [2, 128], strides = [1, 1]} : vector<2x1024xf32> to vector<2x128xf32>
    %374 = vector.extract_strided_slice %364 {offsets = [0, 640], sizes = [2, 128], strides = [1, 1]} : vector<2x1024xf32> to vector<2x128xf32>
    %375 = vector.extract_strided_slice %364 {offsets = [0, 768], sizes = [2, 128], strides = [1, 1]} : vector<2x1024xf32> to vector<2x128xf32>
    %cst_101 = arith.constant 2.000000e+00 : f32
    %376 = vector.broadcast %cst_101 : f32 to vector<2x128xf32>
    %377 = arith.mulf %376, %375 : vector<2x128xf32>
    %cst_102 = arith.constant 1.000000e+00 : f32
    %378 = vector.broadcast %cst_102 : f32 to vector<2x128xf32>
    %379 = arith.subf %377, %378 : vector<2x128xf32>
    %380 = vector.extract_strided_slice %364 {offsets = [0, 896], sizes = [2, 128], strides = [1, 1]} : vector<2x1024xf32> to vector<2x128xf32>
    %381 = arith.mulf %366, %337 : vector<2x128xf32>
    %382 = arith.mulf %365, %371 : vector<2x128xf32>
    %383 = arith.addf %381, %382 : vector<2x128xf32>
    %384 = arith.mulf %374, %340 : vector<2x128xf32>
    %385 = arith.mulf %373, %379 : vector<2x128xf32>
    %386 = arith.addf %384, %385 : vector<2x128xf32>
    %387 = tpu.concatenate %383, %386 in 1 : vector<2x128xf32>, vector<2x128xf32> -> vector<2x256xf32>
    %cst_103 = arith.constant 2.000000e+00 : f32
    %388 = vector.broadcast %cst_103 : f32 to vector<2x256xf32>
    %389 = arith.mulf %388, %387 : vector<2x256xf32>
    %390 = arith.negf %389 : vector<2x256xf32>
    %391 = math.exp %390 : vector<2x256xf32>
    %cst_104 = arith.constant 1.000000e+00 : f32
    %392 = vector.broadcast %cst_104 : f32 to vector<2x256xf32>
    %393 = arith.addf %392, %391 : vector<2x256xf32>
    %394 = arith.divf %392, %393 : vector<2x256xf32>
    %cst_105 = arith.constant 2.000000e+00 : f32
    %395 = vector.broadcast %cst_105 : f32 to vector<2x256xf32>
    %396 = arith.mulf %395, %394 : vector<2x256xf32>
    %cst_106 = arith.constant 1.000000e+00 : f32
    %397 = vector.broadcast %cst_106 : f32 to vector<2x256xf32>
    %398 = arith.subf %396, %397 : vector<2x256xf32>
    %399 = vector.extract_strided_slice %398 {offsets = [0, 0], sizes = [2, 128], strides = [1, 1]} : vector<2x256xf32> to vector<2x128xf32>
    %400 = arith.mulf %372, %399 : vector<2x128xf32>
    %401 = vector.extract_strided_slice %398 {offsets = [0, 128], sizes = [2, 128], strides = [1, 1]} : vector<2x256xf32> to vector<2x128xf32>
    %402 = arith.mulf %380, %401 : vector<2x128xf32>
    %403 = tpu.concatenate %400, %402 in 1 : vector<2x128xf32>, vector<2x128xf32> -> vector<2x256xf32>
    %cst_107 = arith.constant dense<0.000000e+00> : vector<2x1024xf32>
    %404 = tpu.matmul %403, %31, %cst_107 {dimension_numbers = #tpu.dot_dimension_numbers<[1], [0], [0], [1], [0, 0, 1, 1], [], []>} : vector<2x256xf32>, vector<256x1024xf32>, vector<2x1024xf32> -> vector<2x1024xf32>
    %405 = vector.extract_strided_slice %404 {offsets = [0, 512], sizes = [2, 512], strides = [1, 1]} : vector<2x1024xf32> to vector<2x512xf32>
    %406 = arith.addf %405, %34 : vector<2x512xf32>
    %407 = arith.negf %406 : vector<2x512xf32>
    %408 = math.exp %407 : vector<2x512xf32>
    %cst_108 = arith.constant 1.000000e+00 : f32
    %409 = vector.broadcast %cst_108 : f32 to vector<2x512xf32>
    %410 = arith.addf %409, %408 : vector<2x512xf32>
    %411 = arith.divf %409, %410 : vector<2x512xf32>
    %412 = vector.extract_strided_slice %411 {offsets = [0, 0], sizes = [2, 128], strides = [1, 1]} : vector<2x512xf32> to vector<2x128xf32>
    %413 = vector.extract_strided_slice %411 {offsets = [0, 128], sizes = [2, 128], strides = [1, 1]} : vector<2x512xf32> to vector<2x128xf32>
    %414 = vector.extract_strided_slice %411 {offsets = [0, 256], sizes = [2, 128], strides = [1, 1]} : vector<2x512xf32> to vector<2x128xf32>
    %cst_109 = arith.constant 2.000000e+00 : f32
    %415 = vector.broadcast %cst_109 : f32 to vector<2x128xf32>
    %416 = arith.mulf %415, %414 : vector<2x128xf32>
    %cst_110 = arith.constant 1.000000e+00 : f32
    %417 = vector.broadcast %cst_110 : f32 to vector<2x128xf32>
    %418 = arith.subf %416, %417 : vector<2x128xf32>
    %419 = vector.extract_strided_slice %411 {offsets = [0, 384], sizes = [2, 128], strides = [1, 1]} : vector<2x512xf32> to vector<2x128xf32>
    %420 = arith.mulf %413, %386 : vector<2x128xf32>
    %421 = arith.mulf %412, %418 : vector<2x128xf32>
    %422 = arith.addf %420, %421 : vector<2x128xf32>
    %cst_111 = arith.constant 2.000000e+00 : f32
    %423 = vector.broadcast %cst_111 : f32 to vector<2x128xf32>
    %424 = arith.mulf %423, %422 : vector<2x128xf32>
    %425 = arith.negf %424 : vector<2x128xf32>
    %426 = math.exp %425 : vector<2x128xf32>
    %cst_112 = arith.constant 1.000000e+00 : f32
    %427 = vector.broadcast %cst_112 : f32 to vector<2x128xf32>
    %428 = arith.addf %427, %426 : vector<2x128xf32>
    %429 = arith.divf %427, %428 : vector<2x128xf32>
    %cst_113 = arith.constant 2.000000e+00 : f32
    %430 = vector.broadcast %cst_113 : f32 to vector<2x128xf32>
    %431 = arith.mulf %430, %429 : vector<2x128xf32>
    %cst_114 = arith.constant 1.000000e+00 : f32
    %432 = vector.broadcast %cst_114 : f32 to vector<2x128xf32>
    %433 = arith.subf %431, %432 : vector<2x128xf32>
    %434 = arith.mulf %419, %433 : vector<2x128xf32>
    %c0_115 = arith.constant 0 : index
    %c0_116 = arith.constant 0 : index
    %435 = vector.load %arg8[%c0_115, %c0_116] : memref<128x7xf32, #tpu.memory_space<vmem>>, vector<128x7xf32>
    %cst_117 = arith.constant dense<0.000000e+00> : vector<2x7xf32>
    %436 = tpu.matmul %434, %435, %cst_117 {dimension_numbers = #tpu.dot_dimension_numbers<[1], [0], [0], [1], [0, 0, 1, 1], [], []>} : vector<2x128xf32>, vector<128x7xf32>, vector<2x7xf32> -> vector<2x7xf32>
    %c0_118 = arith.constant 0 : index
    %c0_119 = arith.constant 0 : index
    %437 = vector.load %arg9[%c0_118, %c0_119] : memref<1x7xf32, #tpu.memory_space<vmem>>, vector<1x7xf32>
    %438 = vector.broadcast %437 : vector<1x7xf32> to vector<2x7xf32>
    %439 = arith.addf %436, %438 : vector<2x7xf32>
    %c0_120 = arith.constant 0 : index
    %c0_121 = arith.constant 0 : index
    %440 = vector.load %arg12[%c0_120, %c0_121] : memref<2x7xf32, #tpu.memory_space<vmem>>, vector<2x7xf32>
    tpu.vector_store %arg12[%c0_120, %c0_121], %439 {strides = array<i32>} : memref<2x7xf32, #tpu.memory_space<vmem>>, vector<2x7xf32>,
    return
  }
}

</mosaic_0001>

<llo_original>
// kernel: hybrid_gnn_rnn_forward.1
$region0: #{hybrid_gnn_rnn_forward.1}
  #allocation0 [shape = 'u32[]', space=smem, size = 0x4, offset = 0x4, fixed_abs, tag = 'smem constant byte address 0x4 - core index']
  #allocation1 [shape = 'u32[144,128]{1,0:T(1,128)}', space=vmem, size = 0x12000, scoped, tag = 'internal scratch']
  #allocation2 [shape = 'f32[64,512]{1,0:T(8,128)}', space=vmem, size = 0x20000, scoped, tag = 'scratch operand']
  #allocation3 [shape = 'f32[256,1024]{1,0:T(8,128)}', space=vmem, size = 0x100000, scoped, tag = 'scratch operand']
  #allocation4 [shape = 's32[2]{0}', space=sflag, size = 0x8, scoped, tag = 'scratch operand']
  #allocation7 [shape = 's32[]', space=sflag, size = 0x4, offset = 0, fixed_abs, tag = 'sflag constant byte address 0x0 - dummy sync flag']
  #allocation8 [shape = 's32[]', space=sflag, size = 0x4, offset = 0, fixed_abs, tag = 'sflag constant byte address 0x0 - dummy sync flag']
  #allocation9 [shape = 'u32[]', space=smem, size = 0x4, offset = 0x44, fixed_abs, tag = 'smem constant byte address 0x44 - assertion arg 0']
  #allocation10 [shape = 'u32[]', space=smem, size = 0x4, offset = 0x48, fixed_abs, tag = 'smem constant byte address 0x48 - assertion arg 1']
  #allocation11 [shape = 's32[]', space=sflag, size = 0x4, offset = 0, fixed_abs, tag = 'sflag constant byte address 0x0 - dummy sync flag']
  #allocation12 [shape = 's32[]', space=sflag, size = 0x4, offset = 0, fixed_abs, tag = 'sflag constant byte address 0x0 - dummy sync flag']
  %s0 = inlined_call_operand.vmem [shape: f32[16,16], index: 0, kind: input, shape index: {}]
  %s1 = inlined_call_operand.vmem [shape: f32[16,16], index: 1, kind: input, shape index: {}]
  %s2 = inlined_call_operand.vmem [shape: f32[16,64], index: 2, kind: input, shape index: {}]
  %s3 = inlined_call_operand.vmem [shape: f32[1,64], index: 3, kind: input, shape index: {}]
  %s4 = inlined_call_operand.vmem [shape: f32[64,64], index: 4, kind: input, shape index: {}]
  %s5 = inlined_call_operand.vmem [shape: f32[1,64], index: 5, kind: input, shape index: {}]
  %s6 = inlined_call_operand.vmem [shape: f32[1,512], index: 6, kind: input, shape index: {}]
  %s7 = inlined_call_operand.vmem [shape: f32[1,512], index: 7, kind: input, shape index: {}]
  %s8 = inlined_call_operand.vmem [shape: f32[128,7], index: 8, kind: input, shape index: {}]
  %s9 = inlined_call_operand.vmem [shape: f32[1,7], index: 9, kind: input, shape index: {}]
  %s10 = inlined_call_operand.hbm [shape: f32[64,512], index: 10, kind: input, shape index: {}]
  %s11 = inlined_call_operand.hbm [shape: f32[256,1024], index: 11, kind: input, shape index: {}]
  %s12 = inlined_call_operand.hbm [shape: f32[2,7], index: 12, kind: output, shape index: {}]
  %s13 = sld [smem:[#allocation0]]
  $region58: #{hybrid_gnn_rnn_forward.1} parent=0
    _
  %s15 = ssub.s32 1, %s13
  %s16 = scalar_select 0, %s15, %s13
  $region1: #{hybrid_gnn_rnn_forward.1} parent=0
    #allocation5 [shape = 'u8[1024]{0}', space=vmem, size = 0x400, scoped, tag = 'output window, operand 0, single buffered']
    #allocation6 [shape = 's32[1]{0}', space=sflag, size = 0x4, scoped, tag = 'scoped memory for hybrid_gnn_rnn_forward.1']
    %17 = vsyncpa [#allocation6], 0
    // Predicated region
    $region2: #{hybrid_gnn_rnn_forward.1} parent=1 // pred_check
      _
    $region3: #{hybrid_gnn_rnn_forward.1} parent=1 // pred_check_branch
      %19 = sbr.rel (0) target = $region5
    $region4: #{hybrid_gnn_rnn_forward.1} parent=1 // pred_region
      _
    $region5: #{hybrid_gnn_rnn_forward.1} parent=1 // pred_fallthru
      _
    // Predicated region
    $region6: #{hybrid_gnn_rnn_forward.1} parent=1 // pred_check
      _
    $region7: #{hybrid_gnn_rnn_forward.1} parent=1 // pred_check_branch
      %21 = sbr.rel (0) target = $region9
    $region8: #{hybrid_gnn_rnn_forward.1} parent=1 // pred_region
      _
    $region9: #{hybrid_gnn_rnn_forward.1} parent=1 // pred_fallthru
      _
    // Predicated region
    $region10: #{hybrid_gnn_rnn_forward.1} parent=1 // pred_check
      _
    $region11: #{hybrid_gnn_rnn_forward.1} parent=1 // pred_check_branch
      %23 = sbr.rel (0) target = $region13
    $region12: #{hybrid_gnn_rnn_forward.1} parent=1 // pred_region
      _
    $region13: #{hybrid_gnn_rnn_forward.1} parent=1 // pred_fallthru
      _
    // Predicated region
    $region14: #{hybrid_gnn_rnn_forward.1} parent=1 // pred_check
      _
    $region15: #{hybrid_gnn_rnn_forward.1} parent=1 // pred_check_branch
      %25 = sbr.rel (0) target = $region17
    $region16: #{hybrid_gnn_rnn_forward.1} parent=1 // pred_region
      _
    $region17: #{hybrid_gnn_rnn_forward.1} parent=1 // pred_fallthru
      _
    // Predicated region
    $region18: #{hybrid_gnn_rnn_forward.1} parent=1 // pred_check
      _
    $region19: #{hybrid_gnn_rnn_forward.1} parent=1 // pred_check_branch
      %27 = sbr.rel (0) target = $region21
    $region20: #{hybrid_gnn_rnn_forward.1} parent=1 // pred_region
      _
    $region21: #{hybrid_gnn_rnn_forward.1} parent=1 // pred_fallthru
      _
    // Predicated region
    $region22: #{hybrid_gnn_rnn_forward.1} parent=1 // pred_check
      _
    $region23: #{hybrid_gnn_rnn_forward.1} parent=1 // pred_check_branch
      %29 = sbr.rel (0) target = $region25
    $region24: #{hybrid_gnn_rnn_forward.1} parent=1 // pred_region
      _
    $region25: #{hybrid_gnn_rnn_forward.1} parent=1 // pred_fallthru
      _
    // Predicated region
    $region26: #{hybrid_gnn_rnn_forward.1} parent=1 // pred_check
      _
    $region27: #{hybrid_gnn_rnn_forward.1} parent=1 // pred_check_branch
      %31 = sbr.rel (0) target = $region29
    $region28: #{hybrid_gnn_rnn_forward.1} parent=1 // pred_region
      _
    $region29: #{hybrid_gnn_rnn_forward.1} parent=1 // pred_fallthru
      _
    // Predicated region
    $region30: #{hybrid_gnn_rnn_forward.1} parent=1 // pred_check
      _
    $region31: #{hybrid_gnn_rnn_forward.1} parent=1 // pred_check_branch
      %33 = sbr.rel (0) target = $region33
    $region32: #{hybrid_gnn_rnn_forward.1} parent=1 // pred_region
      _
    $region33: #{hybrid_gnn_rnn_forward.1} parent=1 // pred_fallthru
      _
    // Predicated region
    $region34: #{hybrid_gnn_rnn_forward.1} parent=1 // pred_check
      _
    $region35: #{hybrid_gnn_rnn_forward.1} parent=1 // pred_check_branch
      %35 = sbr.rel (0) target = $region37
    $region36: #{hybrid_gnn_rnn_forward.1} parent=1 // pred_region
      _
    $region37: #{hybrid_gnn_rnn_forward.1} parent=1 // pred_fallthru
      _
    // Predicated region
    $region38: #{hybrid_gnn_rnn_forward.1} parent=1 // pred_check
      _
    $region39: #{hybrid_gnn_rnn_forward.1} parent=1 // pred_check_branch
      %37 = sbr.rel (0) target = $region41
    $region40: #{hybrid_gnn_rnn_forward.1} parent=1 // pred_region
      _
    $region41: #{hybrid_gnn_rnn_forward.1} parent=1 // pred_fallthru
      _
    // Predicated region
    $region42: #{hybrid_gnn_rnn_forward.1} parent=1 // pred_check
      _
    $region43: #{hybrid_gnn_rnn_forward.1} parent=1 // pred_check_branch
      %39 = sbr.rel target = $region45
    $region44: #{hybrid_gnn_rnn_forward.1} parent=1 // pred_region
      %40 = sst [smem:[#allocation9]] [#allocation8]
      %41 = sst [smem:[#allocation10]] [#allocation7]
    $region45: #{hybrid_gnn_rnn_forward.1} parent=1 // pred_fallthru
      _
    %43 = shalt.err (0)
    %s45 = sshll.u32 [#allocation2], 4
    %s46 = int_to_ptr.vmem [resolvable:$true] %s45
    %48 = dma.hbm_to_vmem [thread:$0]  %s10, 4096, %s46, [#allocation4]
    %s49 = scalar_lea.sflag [#allocation4], 1
    // Predicated region
    $region46: #{hybrid_gnn_rnn_forward.1} parent=1 // pred_check
      _
    $region47: #{hybrid_gnn_rnn_forward.1} parent=1 // pred_check_branch
      %51 = sbr.rel target = $region49
    $region48: #{hybrid_gnn_rnn_forward.1} parent=1 // pred_region
      %52 = sst [smem:[#allocation9]] [#allocation12]
      %53 = sst [smem:[#allocation10]] [#allocation11]
    $region49: #{hybrid_gnn_rnn_forward.1} parent=1 // pred_fallthru
      _
    %55 = shalt.err (0)
    %s57 = sshll.u32 [#allocation3], 4
    %s58 = int_to_ptr.vmem [resolvable:$true] %s57
    %60 = dma.hbm_to_vmem [thread:$0]  %s11, 32768, %s58, %s49
    %v61 = vld [vmem:[%s1] sm:$0xff]
    %v62 = vld [vmem:[%s1 + $0x8] sm:$0xff]
    %v63 = vld [vmem:[%s0] sm:$0xff]
    %v64 = vld [vmem:[%s0 + $0x8] sm:$0xff]
    %v65 = vld [vmem:[%s2] sm:$0xff]
    %v66 = vld [vmem:[%s2 + $0x8] sm:$0xff]
    %vm67 = vcmask 130048
    %v69 = vsel %vm67, %v63, 0
    %v72 = vsel %vm67, %v64, 0
    %74 = vmatprep.subr.mxu0 0.0
    %75 = vmatpush1.msra.mxu0 %v65
    %76 = vmatprep.subr.mxu0 0.0
    %77 = vmatpush1.msra.mxu0 %v66
    %78 = vmatprep.subr.mxu0 0.0
    %79 = vmatpush1.msra.mxu0 0.0
    %80 = vmatprep.subr.mxu0 0.0
    %81 = vmatpush1.msra.mxu0 0.0
    %82 = vmatprep.subr.mxu0 0.0
    %83 = vmatpush1.msra.mxu0 0.0
    %84 = vmatprep.subr.mxu0 0.0
    %85 = vmatpush1.msra.mxu0 0.0
    %86 = vmatprep.subr.mxu0 0.0
    %87 = vmatpush1.msra.mxu0 0.0
    %88 = vmatprep.subr.mxu0 0.0
    %89 = vmatpush1.msra.mxu0 0.0
    %90 = vmatprep.subr.mxu0 0.0
    %91 = vmatpush1.msra.mxu0 0.0
    %92 = vmatprep.subr.mxu0 0.0
    %93 = vmatpush1.msra.mxu0 0.0
    %94 = vmatprep.subr.mxu0 0.0
    %95 = vmatpush1.msra.mxu0 0.0
    %96 = vmatprep.subr.mxu0 0.0
    %97 = vmatpush1.msra.mxu0 0.0
    %98 = vmatprep.subr.mxu0 0.0
    %99 = vmatpush1.msra.mxu0 0.0
    %100 = vmatprep.subr.mxu0 0.0
    %101 = vmatpush1.msra.mxu0 0.0
    %102 = vmatprep.subr.mxu0 0.0
    %103 = vmatpush1.msra.mxu0 0.0
    %104 = vmatprep.subr.mxu0 0.0
    %105 = vmatpush1.msra.mxu0 0.0
    %106 = vmatprep.subr.mxu0 0.0
    %107 = vmatpush1.msra.mxu0 0.0
    %108 = vmatprep.subr.mxu0 0.0
    %109 = vmatpush1.msra.mxu0 0.0
    %110 = vmatprep.subr.mxu0 0.0
    %111 = vmatpush1.msra.mxu0 0.0
    %112 = vmatprep.subr.mxu0 0.0
    %113 = vmatpush1.msra.mxu0 0.0
    %114 = vmatprep.subr.mxu0 0.0
    %115 = vmatpush1.msra.mxu0 0.0
    %116 = vmatprep.subr.mxu0 0.0
    %117 = vmatpush1.msra.mxu0 0.0
    %118 = vmatprep.subr.mxu0 0.0
    %119 = vmatpush1.msra.mxu0 0.0
    %120 = vmatprep.subr.mxu0 0.0
    %121 = vmatpush1.msra.mxu0 0.0
    %122 = vmatprep.subr.mxu0 0.0
    %123 = vmatpush1.msra.mxu0 0.0
    %124 = vmatprep.subr.mxu0 0.0
    %125 = vmatpush1.msra.mxu0 0.0
    %126 = vmatprep.subr.mxu0 0.0
    %127 = vmatpush1.msra.mxu0 0.0
    %128 = vmatprep.subr.mxu0 0.0
    %129 = vmatpush1.msra.mxu0 0.0
    %130 = vmatprep.subr.mxu0 0.0
    %131 = vmatpush1.msra.mxu0 0.0
    %132 = vmatprep.subr.mxu0 0.0
    %133 = vmatpush1.msra.mxu0 0.0
    %134 = vmatprep.subr.mxu0 0.0
    %135 = vmatpush1.msra.mxu0 0.0
    %136 = vmatprep.subr.mxu0 0.0
    %137 = vmatpush1.msra.mxu0 0.0
    %138 = vmatprep.mubr.f32.mxu0 0.0
    %139 = vmatmul.mubr.f32.gmra.mrb[0].mxu0 %v69
    %v140 = vpop.f32.mrb[0].mxu0
    %v141 = vadd.f32 0.0, %v140
    %v142 = vpop.f32.mrb[0].mxu0
    %143 = vmatprep.mubr.f32.mxu0 0.0
    %144 = vmatmul.mubr.f32.gmra.mrb[0].mxu0 %v72
    %v145 = vpop.f32.mrb[0].mxu0
    %v146 = vadd.f32 0.0, %v145
    %v147 = vpop.f32.mrb[0].mxu0
    %148 = vdwg.mxu0
    %v149 = vld [vmem:[%s3] sm:$0x1]
    %v151 = vlaneseq
    %v152 = vshrl.u32 %v151, 7
    %v153 = vsub.s32 0, %v152
    %v154 = vrot.slane %v149, %v153
    %v157 = vsel %vm67, %v61, 0
    %v160 = vsel %vm67, %v62, 0
    %162 = vmatprep.subr.mxu0 0.0
    %163 = vmatpush1.msra.mxu0 %v141
    %164 = vmatprep.subr.mxu0 0.0
    %165 = vmatpush1.msra.mxu0 %v146
    %166 = vmatprep.subr.mxu0 0.0
    %167 = vmatpush1.msra.mxu0 0.0
    %168 = vmatprep.subr.mxu0 0.0
    %169 = vmatpush1.msra.mxu0 0.0
    %170 = vmatprep.subr.mxu0 0.0
    %171 = vmatpush1.msra.mxu0 0.0
    %172 = vmatprep.subr.mxu0 0.0
    %173 = vmatpush1.msra.mxu0 0.0
    %174 = vmatprep.subr.mxu0 0.0
    %175 = vmatpush1.msra.mxu0 0.0
    %176 = vmatprep.subr.mxu0 0.0
    %177 = vmatpush1.msra.mxu0 0.0
    %178 = vmatprep.subr.mxu0 0.0
    %179 = vmatpush1.msra.mxu0 0.0
    %180 = vmatprep.subr.mxu0 0.0
    %181 = vmatpush1.msra.mxu0 0.0
    %182 = vmatprep.subr.mxu0 0.0
    %183 = vmatpush1.msra.mxu0 0.0
    %184 = vmatprep.subr.mxu0 0.0
    %185 = vmatpush1.msra.mxu0 0.0
    %186 = vmatprep.subr.mxu0 0.0
    %187 = vmatpush1.msra.mxu0 0.0
    %188 = vmatprep.subr.mxu0 0.0
    %189 = vmatpush1.msra.mxu0 0.0
    %190 = vmatprep.subr.mxu0 0.0
    %191 = vmatpush1.msra.mxu0 0.0
    %192 = vmatprep.subr.mxu0 0.0
    %193 = vmatpush1.msra.mxu0 0.0
    %194 = vmatprep.subr.mxu0 0.0
    %195 = vmatpush1.msra.mxu0 0.0
    %196 = vmatprep.subr.mxu0 0.0
    %197 = vmatpush1.msra.mxu0 0.0
    %198 = vmatprep.subr.mxu0 0.0
    %199 = vmatpush1.msra.mxu0 0.0
    %200 = vmatprep.subr.mxu0 0.0
    %201 = vmatpush1.msra.mxu0 0.0
    %202 = vmatprep.subr.mxu0 0.0
    %203 = vmatpush1.msra.mxu0 0.0
    %204 = vmatprep.subr.mxu0 0.0
    %205 = vmatpush1.msra.mxu0 0.0
    %206 = vmatprep.subr.mxu0 0.0
    %207 = vmatpush1.msra.mxu0 0.0
    %208 = vmatprep.subr.mxu0 0.0
    %209 = vmatpush1.msra.mxu0 0.0
    %210 = vmatprep.subr.mxu0 0.0
    %211 = vmatpush1.msra.mxu0 0.0
    %212 = vmatprep.subr.mxu0 0.0
    %213 = vmatpush1.msra.mxu0 0.0
    %214 = vmatprep.subr.mxu0 0.0
    %215 = vmatpush1.msra.mxu0 0.0
    %216 = vmatprep.subr.mxu0 0.0
    %217 = vmatpush1.msra.mxu0 0.0
    %218 = vmatprep.subr.mxu0 0.0
    %219 = vmatpush1.msra.mxu0 0.0
    %220 = vmatprep.subr.mxu0 0.0
    %221 = vmatpush1.msra.mxu0 0.0
    %222 = vmatprep.subr.mxu0 0.0
    %223 = vmatpush1.msra.mxu0 0.0
    %224 = vmatprep.subr.mxu0 0.0
    %225 = vmatpush1.msra.mxu0 0.0
    %226 = vmatprep.mubr.f32.mxu0 0.0
    %227 = vmatmul.mubr.f32.gmra.mrb[0].mxu0 %v157
    %v228 = vpop.f32.mrb[0].mxu0
    %v229 = vadd.f32 %v154, %v228
    %v230 = vpop.f32.mrb[0].mxu0
    %231 = vmatprep.mubr.f32.mxu0 0.0
    %232 = vmatmul.mubr.f32.gmra.mrb[0].mxu0 %v160
    %v233 = vpop.f32.mrb[0].mxu0
    %v234 = vadd.f32 %v154, %v233
    %v235 = vpop.f32.mrb[0].mxu0
    %236 = vdwg.mxu0
    %v237 = vmax.f32 %v229, 0.0
    %v238 = vmax.f32 %v234, 0.0
    %v239 = vld [vmem:[%s4] sm:$0xff]
    %v240 = vld [vmem:[%s4 + $0x8] sm:$0xff]
    %v241 = vld [vmem:[%s4 + $0x10] sm:$0xff]
    %v242 = vld [vmem:[%s4 + $0x18] sm:$0xff]
    %v243 = vld [vmem:[%s4 + $0x20] sm:$0xff]
    %v244 = vld [vmem:[%s4 + $0x28] sm:$0xff]
    %v245 = vld [vmem:[%s4 + $0x30] sm:$0xff]
    %v246 = vld [vmem:[%s4 + $0x38] sm:$0xff]
    %vm247 = vcmask 523264
    %v249 = vsel %vm247, %v237, 0
    %v252 = vsel %vm247, %v238, 0
    %254 = vmatprep.subr.mxu0 0.0
    %255 = vmatpush1.msra.mxu0 %v239
    %256 = vmatprep.subr.mxu0 0.0
    %257 = vmatpush1.msra.mxu0 %v240
    %258 = vmatprep.subr.mxu0 0.0
    %259 = vmatpush1.msra.mxu0 %v241
    %260 = vmatprep.subr.mxu0 0.0
    %261 = vmatpush1.msra.mxu0 %v242
    %262 = vmatprep.subr.mxu0 0.0
    %263 = vmatpush1.msra.mxu0 %v243
    %264 = vmatprep.subr.mxu0 0.0
    %265 = vmatpush1.msra.mxu0 %v244
    %266 = vmatprep.subr.mxu0 0.0
    %267 = vmatpush1.msra.mxu0 %v245
    %268 = vmatprep.subr.mxu0 0.0
    %269 = vmatpush1.msra.mxu0 %v246
    %270 = vmatprep.subr.mxu0 0.0
    %271 = vmatpush1.msra.mxu0 0.0
    %272 = vmatprep.subr.mxu0 0.0
    %273 = vmatpush1.msra.mxu0 0.0
    %274 = vmatprep.subr.mxu0 0.0
    %275 = vmatpush1.msra.mxu0 0.0
    %276 = vmatprep.subr.mxu0 0.0
    %277 = vmatpush1.msra.mxu0 0.0
    %278 = vmatprep.subr.mxu0 0.0
    %279 = vmatpush1.msra.mxu0 0.0
    %280 = vmatprep.subr.mxu0 0.0
    %281 = vmatpush1.msra.mxu0 0.0
    %282 = vmatprep.subr.mxu0 0.0
    %283 = vmatpush1.msra.mxu0 0.0
    %284 = vmatprep.subr.mxu0 0.0
    %285 = vmatpush1.msra.mxu0 0.0
    %286 = vmatprep.subr.mxu0 0.0
    %287 = vmatpush1.msra.mxu0 0.0
    %288 = vmatprep.subr.mxu0 0.0
    %289 = vmatpush1.msra.mxu0 0.0
    %290 = vmatprep.subr.mxu0 0.0
    %291 = vmatpush1.msra.mxu0 0.0
    %292 = vmatprep.subr.mxu0 0.0
    %293 = vmatpush1.msra.mxu0 0.0
    %294 = vmatprep.subr.mxu0 0.0
    %295 = vmatpush1.msra.mxu0 0.0
    %296 = vmatprep.subr.mxu0 0.0
    %297 = vmatpush1.msra.mxu0 0.0
    %298 = vmatprep.subr.mxu0 0.0
    %299 = vmatpush1.msra.mxu0 0.0
    %300 = vmatprep.subr.mxu0 0.0
    %301 = vmatpush1.msra.mxu0 0.0
    %302 = vmatprep.subr.mxu0 0.0
    %303 = vmatpush1.msra.mxu0 0.0
    %304 = vmatprep.subr.mxu0 0.0
    %305 = vmatpush1.msra.mxu0 0.0
    %306 = vmatprep.subr.mxu0 0.0
    %307 = vmatpush1.msra.mxu0 0.0
    %308 = vmatprep.subr.mxu0 0.0
    %309 = vmatpush1.msra.mxu0 0.0
    %310 = vmatprep.subr.mxu0 0.0
    %311 = vmatpush1.msra.mxu0 0.0
    %312 = vmatprep.subr.mxu0 0.0
    %313 = vmatpush1.msra.mxu0 0.0
    %314 = vmatprep.subr.mxu0 0.0
    %315 = vmatpush1.msra.mxu0 0.0
    %316 = vmatprep.subr.mxu0 0.0
    %317 = vmatpush1.msra.mxu0 0.0
    %318 = vmatprep.mubr.f32.mxu0 0.0
    %319 = vmatmul.mubr.f32.gmra.mrb[0].mxu0 %v249
    %v320 = vpop.f32.mrb[0].mxu0
    %v321 = vadd.f32 0.0, %v320
    %v322 = vpop.f32.mrb[0].mxu0
    %323 = vmatprep.mubr.f32.mxu0 0.0
    %324 = vmatmul.mubr.f32.gmra.mrb[0].mxu0 %v252
    %v325 = vpop.f32.mrb[0].mxu0
    %v326 = vadd.f32 0.0, %v325
    %v327 = vpop.f32.mrb[0].mxu0
    %328 = vdwg.mxu0
    %v329 = vld [vmem:[%s5] sm:$0x1]
    %v331 = vlaneseq
    %v332 = vshrl.u32 %v331, 7
    %v333 = vsub.s32 0, %v332
    %v334 = vrot.slane %v329, %v333
    %336 = vmatprep.subr.mxu0 0.0
    %337 = vmatpush1.msra.mxu0 %v321
    %338 = vmatprep.subr.mxu0 0.0
    %339 = vmatpush1.msra.mxu0 %v326
    %340 = vmatprep.subr.mxu0 0.0
    %341 = vmatpush1.msra.mxu0 0.0
    %342 = vmatprep.subr.mxu0 0.0
    %343 = vmatpush1.msra.mxu0 0.0
    %344 = vmatprep.subr.mxu0 0.0
    %345 = vmatpush1.msra.mxu0 0.0
    %346 = vmatprep.subr.mxu0 0.0
    %347 = vmatpush1.msra.mxu0 0.0
    %348 = vmatprep.subr.mxu0 0.0
    %349 = vmatpush1.msra.mxu0 0.0
    %350 = vmatprep.subr.mxu0 0.0
    %351 = vmatpush1.msra.mxu0 0.0
    %352 = vmatprep.subr.mxu0 0.0
    %353 = vmatpush1.msra.mxu0 0.0
    %354 = vmatprep.subr.mxu0 0.0
    %355 = vmatpush1.msra.mxu0 0.0
    %356 = vmatprep.subr.mxu0 0.0
    %357 = vmatpush1.msra.mxu0 0.0
    %358 = vmatprep.subr.mxu0 0.0
    %359 = vmatpush1.msra.mxu0 0.0
    %360 = vmatprep.subr.mxu0 0.0
    %361 = vmatpush1.msra.mxu0 0.0
    %362 = vmatprep.subr.mxu0 0.0
    %363 = vmatpush1.msra.mxu0 0.0
    %364 = vmatprep.subr.mxu0 0.0
    %365 = vmatpush1.msra.mxu0 0.0
    %366 = vmatprep.subr.mxu0 0.0
    %367 = vmatpush1.msra.mxu0 0.0
    %368 = vmatprep.subr.mxu0 0.0
    %369 = vmatpush1.msra.mxu0 0.0
    %370 = vmatprep.subr.mxu0 0.0
    %371 = vmatpush1.msra.mxu0 0.0
    %372 = vmatprep.subr.mxu0 0.0
    %373 = vmatpush1.msra.mxu0 0.0
    %374 = vmatprep.subr.mxu0 0.0
    %375 = vmatpush1.msra.mxu0 0.0
    %376 = vmatprep.subr.mxu0 0.0
    %377 = vmatpush1.msra.mxu0 0.0
    %378 = vmatprep.subr.mxu0 0.0
    %379 = vmatpush1.msra.mxu0 0.0
    %380 = vmatprep.subr.mxu0 0.0
    %381 = vmatpush1.msra.mxu0 0.0
    %382 = vmatprep.subr.mxu0 0.0
    %383 = vmatpush1.msra.mxu0 0.0
    %384 = vmatprep.subr.mxu0 0.0
    %385 = vmatpush1.msra.mxu0 0.0
    %386 = vmatprep.subr.mxu0 0.0
    %387 = vmatpush1.msra.mxu0 0.0
    %388 = vmatprep.subr.mxu0 0.0
    %389 = vmatpush1.msra.mxu0 0.0
    %390 = vmatprep.subr.mxu0 0.0
    %391 = vmatpush1.msra.mxu0 0.0
    %392 = vmatprep.subr.mxu0 0.0
    %393 = vmatpush1.msra.mxu0 0.0
    %394 = vmatprep.subr.mxu0 0.0
    %395 = vmatpush1.msra.mxu0 0.0
    %396 = vmatprep.subr.mxu0 0.0
    %397 = vmatpush1.msra.mxu0 0.0
    %398 = vmatprep.subr.mxu0 0.0
    %399 = vmatpush1.msra.mxu0 0.0
    %400 = vmatprep.mubr.f32.mxu0 0.0
    %401 = vmatmul.mubr.f32.gmra.mrb[0].mxu0 %v157
    %v402 = vpop.f32.mrb[0].mxu0
    %v403 = vadd.f32 %v334, %v402
    %v404 = vpop.f32.mrb[0].mxu0
    %405 = vmatprep.mubr.f32.mxu0 0.0
    %406 = vmatmul.mubr.f32.gmra.mrb[0].mxu0 %v160
    %v407 = vpop.f32.mrb[0].mxu0
    %v408 = vadd.f32 %v334, %v407
    %v409 = vpop.f32.mrb[0].mxu0
    %410 = vdwg.mxu0
    %v411 = vmax.f32 %v403, 0.0
    %v412 = vmax.f32 %v408, 0.0
    %s413 = smul.u32 8, 8
    %s414 = smul.u32 %s413, 4
    %s415 = sshll.u32 %s414, 4
    %416 = dma.done [#allocation4], %s415
    %v417 = vld [vmem:[#allocation2] sm:$0xff]
    %v418 = vld [vmem:[#allocation2 + $0x8] sm:$0xff]
    %v419 = vld [vmem:[#allocation2 + $0x10] sm:$0xff]
    %v420 = vld [vmem:[#allocation2 + $0x18] sm:$0xff]
    %v421 = vld [vmem:[#allocation2 + $0x20] sm:$0xff]
    %v422 = vld [vmem:[#allocation2 + $0x28] sm:$0xff]
    %v423 = vld [vmem:[#allocation2 + $0x30] sm:$0xff]
    %v424 = vld [vmem:[#allocation2 + $0x38] sm:$0xff]
    %v425 = vld [vmem:[#allocation2 + $0x40] sm:$0xff]
    %v426 = vld [vmem:[#allocation2 + $0x48] sm:$0xff]
    %v427 = vld [vmem:[#allocation2 + $0x50] sm:$0xff]
    %v428 = vld [vmem:[#allocation2 + $0x58] sm:$0xff]
    %v429 = vld [vmem:[#allocation2 + $0x60] sm:$0xff]
    %v430 = vld [vmem:[#allocation2 + $0x68] sm:$0xff]
    %v431 = vld [vmem:[#allocation2 + $0x70] sm:$0xff]
    %v432 = vld [vmem:[#allocation2 + $0x78] sm:$0xff]
    %v433 = vld [vmem:[#allocation2 + $0x80] sm:$0xff]
    %v434 = vld [vmem:[#allocation2 + $0x88] sm:$0xff]
    %v435 = vld [vmem:[#allocation2 + $0x90] sm:$0xff]
    %v436 = vld [vmem:[#allocation2 + $0x98] sm:$0xff]
    %v437 = vld [vmem:[#allocation2 + $0xa0] sm:$0xff]
    %v438 = vld [vmem:[#allocation2 + $0xa8] sm:$0xff]
    %v439 = vld [vmem:[#allocation2 + $0xb0] sm:$0xff]
    %v440 = vld [vmem:[#allocation2 + $0xb8] sm:$0xff]
    %v441 = vld [vmem:[#allocation2 + $0xc0] sm:$0xff]
    %v442 = vld [vmem:[#allocation2 + $0xc8] sm:$0xff]
    %v443 = vld [vmem:[#allocation2 + $0xd0] sm:$0xff]
    %v444 = vld [vmem:[#allocation2 + $0xd8] sm:$0xff]
    %v445 = vld [vmem:[#allocation2 + $0xe0] sm:$0xff]
    %v446 = vld [vmem:[#allocation2 + $0xe8] sm:$0xff]
    %v447 = vld [vmem:[#allocation2 + $0xf0] sm:$0xff]
    %v448 = vld [vmem:[#allocation2 + $0xf8] sm:$0xff]
    %v449 = vld [vmem:[%s6] sm:$0xf]
    %v451 = vlaneseq
    %v452 = vshrl.u32 %v451, 7
    %v453 = vsub.s32 0, %v452
    %v454 = vrot.slane %v449, %v453
    %v455 = vlaneseq
    %v456 = vshrl.u32 %v455, 7
    %v457 = vsub.s32 1, %v456
    %v458 = vrot.slane %v449, %v457
    %v459 = vlaneseq
    %v460 = vshrl.u32 %v459, 7
    %v461 = vsub.s32 2, %v460
    %v462 = vrot.slane %v449, %v461
    %v463 = vlaneseq
    %v464 = vshrl.u32 %v463, 7
    %v465 = vsub.s32 3, %v464
    %v466 = vrot.slane %v449, %v465
    %v472 = vsel %vm247, %v411, 0
    %v475 = vsel %vm247, %v412, 0
    %477 = vmatprep.subr.mxu0 %v418
    %478 = vmatpush1.msra.mxu0 %v417
    %479 = vmatprep.subr.mxu0 %v422
    %480 = vmatpush1.msra.mxu0 %v421
    %481 = vmatprep.subr.mxu0 %v426
    %482 = vmatpush1.msra.mxu0 %v425
    %483 = vmatprep.subr.mxu0 %v430
    %484 = vmatpush1.msra.mxu0 %v429
    %485 = vmatprep.subr.mxu0 %v434
    %486 = vmatpush1.msra.mxu0 %v433
    %487 = vmatprep.subr.mxu0 %v438
    %488 = vmatpush1.msra.mxu0 %v437
    %489 = vmatprep.subr.mxu0 %v442
    %490 = vmatpush1.msra.mxu0 %v441
    %491 = vmatprep.subr.mxu0 %v446
    %492 = vmatpush1.msra.mxu0 %v445
    %493 = vmatprep.subr.mxu0 0.0
    %494 = vmatpush1.msra.mxu0 0.0
    %495 = vmatprep.subr.mxu0 0.0
    %496 = vmatpush1.msra.mxu0 0.0
    %497 = vmatprep.subr.mxu0 0.0
    %498 = vmatpush1.msra.mxu0 0.0
    %499 = vmatprep.subr.mxu0 0.0
    %500 = vmatpush1.msra.mxu0 0.0
    %501 = vmatprep.subr.mxu0 0.0
    %502 = vmatpush1.msra.mxu0 0.0
    %503 = vmatprep.subr.mxu0 0.0
    %504 = vmatpush1.msra.mxu0 0.0
    %505 = vmatprep.subr.mxu0 0.0
    %506 = vmatpush1.msra.mxu0 0.0
    %507 = vmatprep.subr.mxu0 0.0
    %508 = vmatpush1.msra.mxu0 0.0
    %509 = vmatprep.subr.mxu0 0.0
    %510 = vmatpush1.msra.mxu0 0.0
    %511 = vmatprep.subr.mxu0 0.0
    %512 = vmatpush1.msra.mxu0 0.0
    %513 = vmatprep.subr.mxu0 0.0
    %514 = vmatpush1.msra.mxu0 0.0
    %515 = vmatprep.subr.mxu0 0.0
    %516 = vmatpush1.msra.mxu0 0.0
    %517 = vmatprep.subr.mxu0 0.0
    %518 = vmatpush1.msra.mxu0 0.0
    %519 = vmatprep.subr.mxu0 0.0
    %520 = vmatpush1.msra.mxu0 0.0
    %521 = vmatprep.subr.mxu0 0.0
    %522 = vmatpush1.msra.mxu0 0.0
    %523 = vmatprep.subr.mxu0 0.0
    %524 = vmatpush1.msra.mxu0 0.0
    %525 = vmatprep.subr.mxu0 0.0
    %526 = vmatpush1.msra.mxu0 0.0
    %527 = vmatprep.subr.mxu0 0.0
    %528 = vmatpush1.msra.mxu0 0.0
    %529 = vmatprep.subr.mxu0 0.0
    %530 = vmatpush1.msra.mxu0 0.0
    %531 = vmatprep.subr.mxu0 0.0
    %532 = vmatpush1.msra.mxu0 0.0
    %533 = vmatprep.subr.mxu0 0.0
    %534 = vmatpush1.msra.mxu0 0.0
    %535 = vmatprep.subr.mxu0 0.0
    %536 = vmatpush1.msra.mxu0 0.0
    %537 = vmatprep.subr.mxu0 0.0
    %538 = vmatpush1.msra.mxu0 0.0
    %539 = vmatprep.subr.mxu0 0.0
    %540 = vmatpush1.msra.mxu0 0.0
    %541 = vmatprep.mubr.f32.mxu0 0.0
    %542 = vmatmul.mubr.f32.gmra.mrb[0].mxu0 %v472
    %v543 = vpop.f32.mrb[0].mxu0
    %v544 = vadd.f32 %v454, %v543
    %v545 = vpop.f32.mrb[0].mxu0
    %v546 = vadd.f32 %v458, %v545
    %547 = vmatprep.mubr.f32.mxu0 0.0
    %548 = vmatmul.mubr.f32.gmra.mrb[0].mxu0 %v475
    %v549 = vpop.f32.mrb[0].mxu0
    %v550 = vadd.f32 %v454, %v549
    %v551 = vpop.f32.mrb[0].mxu0
    %v552 = vadd.f32 %v458, %v551
    %553 = vdwg.mxu0
    %554 = vmatprep.subr.mxu0 %v420
    %555 = vmatpush1.msra.mxu0 %v419
    %556 = vmatprep.subr.mxu0 %v424
    %557 = vmatpush1.msra.mxu0 %v423
    %558 = vmatprep.subr.mxu0 %v428
    %559 = vmatpush1.msra.mxu0 %v427
    %560 = vmatprep.subr.mxu0 %v432
    %561 = vmatpush1.msra.mxu0 %v431
    %562 = vmatprep.subr.mxu0 %v436
    %563 = vmatpush1.msra.mxu0 %v435
    %564 = vmatprep.subr.mxu0 %v440
    %565 = vmatpush1.msra.mxu0 %v439
    %566 = vmatprep.subr.mxu0 %v444
    %567 = vmatpush1.msra.mxu0 %v443
    %568 = vmatprep.subr.mxu0 %v448
    %569 = vmatpush1.msra.mxu0 %v447
    %570 = vmatprep.subr.mxu0 0.0
    %571 = vmatpush1.msra.mxu0 0.0
    %572 = vmatprep.subr.mxu0 0.0
    %573 = vmatpush1.msra.mxu0 0.0
    %574 = vmatprep.subr.mxu0 0.0
    %575 = vmatpush1.msra.mxu0 0.0
    %576 = vmatprep.subr.mxu0 0.0
    %577 = vmatpush1.msra.mxu0 0.0
    %578 = vmatprep.subr.mxu0 0.0
    %579 = vmatpush1.msra.mxu0 0.0
    %580 = vmatprep.subr.mxu0 0.0
    %581 = vmatpush1.msra.mxu0 0.0
    %582 = vmatprep.subr.mxu0 0.0
    %583 = vmatpush1.msra.mxu0 0.0
    %584 = vmatprep.subr.mxu0 0.0
    %585 = vmatpush1.msra.mxu0 0.0
    %586 = vmatprep.subr.mxu0 0.0
    %587 = vmatpush1.msra.mxu0 0.0
    %588 = vmatprep.subr.mxu0 0.0
    %589 = vmatpush1.msra.mxu0 0.0
    %590 = vmatprep.subr.mxu0 0.0
    %591 = vmatpush1.msra.mxu0 0.0
    %592 = vmatprep.subr.mxu0 0.0
    %593 = vmatpush1.msra.mxu0 0.0
    %594 = vmatprep.subr.mxu0 0.0
    %595 = vmatpush1.msra.mxu0 0.0
    %596 = vmatprep.subr.mxu0 0.0
    %597 = vmatpush1.msra.mxu0 0.0
    %598 = vmatprep.subr.mxu0 0.0
    %599 = vmatpush1.msra.mxu0 0.0
    %600 = vmatprep.subr.mxu0 0.0
    %601 = vmatpush1.msra.mxu0 0.0
    %602 = vmatprep.subr.mxu0 0.0
    %603 = vmatpush1.msra.mxu0 0.0
    %604 = vmatprep.subr.mxu0 0.0
    %605 = vmatpush1.msra.mxu0 0.0
    %606 = vmatprep.subr.mxu0 0.0
    %607 = vmatpush1.msra.mxu0 0.0
    %608 = vmatprep.subr.mxu0 0.0
    %609 = vmatpush1.msra.mxu0 0.0
    %610 = vmatprep.subr.mxu0 0.0
    %611 = vmatpush1.msra.mxu0 0.0
    %612 = vmatprep.subr.mxu0 0.0
    %613 = vmatpush1.msra.mxu0 0.0
    %614 = vmatprep.subr.mxu0 0.0
    %615 = vmatpush1.msra.mxu0 0.0
    %616 = vmatprep.subr.mxu0 0.0
    %617 = vmatpush1.msra.mxu0 0.0
    %618 = vmatprep.mubr.f32.mxu0 0.0
    %619 = vmatmul.mubr.f32.gmra.mrb[0].mxu0 %v472
    %v620 = vpop.f32.mrb[0].mxu0
    %v621 = vadd.f32 %v462, %v620
    %v622 = vpop.f32.mrb[0].mxu0
    %v623 = vadd.f32 %v466, %v622
    %624 = vmatprep.mubr.f32.mxu0 0.0
    %625 = vmatmul.mubr.f32.gmra.mrb[0].mxu0 %v475
    %v626 = vpop.f32.mrb[0].mxu0
    %v627 = vadd.f32 %v462, %v626
    %v628 = vpop.f32.mrb[0].mxu0
    %v629 = vadd.f32 %v466, %v628
    %630 = vdwg.mxu0
    %s631 = smul.u32 8, 32
    %s632 = smul.u32 %s631, 8
    %s633 = sshll.u32 %s632, 4
    %634 = dma.done %s49, %s633
    %v635 = vld [vmem:[#allocation3] sm:$0xff]
    %v636 = vld [vmem:[#allocation3 + $0x8] sm:$0xff]
    %v637 = vld [vmem:[#allocation3 + $0x10] sm:$0xff]
    %v638 = vld [vmem:[#allocation3 + $0x18] sm:$0xff]
    %v639 = vld [vmem:[#allocation3 + $0x20] sm:$0xff]
    %v640 = vld [vmem:[#allocation3 + $0x28] sm:$0xff]
    %v641 = vld [vmem:[#allocation3 + $0x30] sm:$0xff]
    %v642 = vld [vmem:[#allocation3 + $0x38] sm:$0xff]
    %v643 = vld [vmem:[#allocation3 + $0x40] sm:$0xff]
    %v644 = vld [vmem:[#allocation3 + $0x48] sm:$0xff]
    %v645 = vld [vmem:[#allocation3 + $0x50] sm:$0xff]
    %v646 = vld [vmem:[#allocation3 + $0x58] sm:$0xff]
    %v647 = vld [vmem:[#allocation3 + $0x60] sm:$0xff]
    %v648 = vld [vmem:[#allocation3 + $0x68] sm:$0xff]
    %v649 = vld [vmem:[#allocation3 + $0x70] sm:$0xff]
    %v650 = vld [vmem:[#allocation3 + $0x78] sm:$0xff]
    %v651 = vld [vmem:[#allocation3 + $0x80] sm:$0xff]
    %v652 = vld [vmem:[#allocation3 + $0x88] sm:$0xff]
    %v653 = vld [vmem:[#allocation3 + $0x90] sm:$0xff]
    %v654 = vld [vmem:[#allocation3 + $0x98] sm:$0xff]
    %v655 = vld [vmem:[#allocation3 + $0xa0] sm:$0xff]
    %v656 = vld [vmem:[#allocation3 + $0xa8] sm:$0xff]
    %v657 = vld [vmem:[#allocation3 + $0xb0] sm:$0xff]
    %v658 = vld [vmem:[#allocation3 + $0xb8] sm:$0xff]
    %v659 = vld [vmem:[#allocation3 + $0xc0] sm:$0xff]
    %v660 = vld [vmem:[#allocation3 + $0xc8] sm:$0xff]
    %v661 = vld [vmem:[#allocation3 + $0xd0] sm:$0xff]
    %v662 = vld [vmem:[#allocation3 + $0xd8] sm:$0xff]
    %v663 = vld [vmem:[#allocation3 + $0xe0] sm:$0xff]
    %v664 = vld [vmem:[#allocation3 + $0xe8] sm:$0xff]
    %v665 = vld [vmem:[#allocation3 + $0xf0] sm:$0xff]
    %v666 = vld [vmem:[#allocation3 + $0xf8] sm:$0xff]
    %v667 = vld [vmem:[#allocation3 + $0x100] sm:$0xff]
    %v668 = vld [vmem:[#allocation3 + $0x108] sm:$0xff]
    %v669 = vld [vmem:[#allocation3 + $0x110] sm:$0xff]
    %v670 = vld [vmem:[#allocation3 + $0x118] sm:$0xff]
    %v671 = vld [vmem:[#allocation3 + $0x120] sm:$0xff]
    %v672 = vld [vmem:[#allocation3 + $0x128] sm:$0xff]
    %v673 = vld [vmem:[#allocation3 + $0x130] sm:$0xff]
    %v674 = vld [vmem:[#allocation3 + $0x138] sm:$0xff]
    %v675 = vld [vmem:[#allocation3 + $0x140] sm:$0xff]
    %v676 = vld [vmem:[#allocation3 + $0x148] sm:$0xff]
    %v677 = vld [vmem:[#allocation3 + $0x150] sm:$0xff]
    %v678 = vld [vmem:[#allocation3 + $0x158] sm:$0xff]
    %v679 = vld [vmem:[#allocation3 + $0x160] sm:$0xff]
    %v680 = vld [vmem:[#allocation3 + $0x168] sm:$0xff]
    %v681 = vld [vmem:[#allocation3 + $0x170] sm:$0xff]
    %v682 = vld [vmem:[#allocation3 + $0x178] sm:$0xff]
    %v683 = vld [vmem:[#allocation3 + $0x180] sm:$0xff]
    %v684 = vld [vmem:[#allocation3 + $0x188] sm:$0xff]
    %v685 = vld [vmem:[#allocation3 + $0x190] sm:$0xff]
    %v686 = vld [vmem:[#allocation3 + $0x198] sm:$0xff]
    %v687 = vld [vmem:[#allocation3 + $0x1a0] sm:$0xff]
    %v688 = vld [vmem:[#allocation3 + $0x1a8] sm:$0xff]
    %v689 = vld [vmem:[#allocation3 + $0x1b0] sm:$0xff]
    %v690 = vld [vmem:[#allocation3 + $0x1b8] sm:$0xff]
    %v691 = vld [vmem:[#allocation3 + $0x1c0] sm:$0xff]
    %v692 = vld [vmem:[#allocation3 + $0x1c8] sm:$0xff]
    %v693 = vld [vmem:[#allocation3 + $0x1d0] sm:$0xff]
    %v694 = vld [vmem:[#allocation3 + $0x1d8] sm:$0xff]
    %v695 = vld [vmem:[#allocation3 + $0x1e0] sm:$0xff]
    %v696 = vld [vmem:[#allocation3 + $0x1e8] sm:$0xff]
    %v697 = vld [vmem:[#allocation3 + $0x1f0] sm:$0xff]
    %v698 = vld [vmem:[#allocation3 + $0x1f8] sm:$0xff]
    %v699 = vld [vmem:[#allocation3 + $0x200] sm:$0xff]
    %v700 = vld [vmem:[#allocation3 + $0x208] sm:$0xff]
    %v701 = vld [vmem:[#allocation3 + $0x210] sm:$0xff]
    %v702 = vld [vmem:[#allocation3 + $0x218] sm:$0xff]
    %v703 = vld [vmem:[#allocation3 + $0x220] sm:$0xff]
    %v704 = vld [vmem:[#allocation3 + $0x228] sm:$0xff]
    %v705 = vld [vmem:[#allocation3 + $0x230] sm:$0xff]
    %v706 = vld [vmem:[#allocation3 + $0x238] sm:$0xff]
    %v707 = vld [vmem:[#allocation3 + $0x240] sm:$0xff]
    %v708 = vld [vmem:[#allocation3 + $0x248] sm:$0xff]
    %v709 = vld [vmem:[#allocation3 + $0x250] sm:$0xff]
    %v710 = vld [vmem:[#allocation3 + $0x258] sm:$0xff]
    %v711 = vld [vmem:[#allocation3 + $0x260] sm:$0xff]
    %v712 = vld [vmem:[#allocation3 + $0x268] sm:$0xff]
    %v713 = vld [vmem:[#allocation3 + $0x270] sm:$0xff]
    %v714 = vld [vmem:[#allocation3 + $0x278] sm:$0xff]
    %v715 = vld [vmem:[#allocation3 + $0x280] sm:$0xff]
    %v716 = vld [vmem:[#allocation3 + $0x288] sm:$0xff]
    %v717 = vld [vmem:[#allocation3 + $0x290] sm:$0xff]
    %v718 = vld [vmem:[#allocation3 + $0x298] sm:$0xff]
    %v719 = vld [vmem:[#allocation3 + $0x2a0] sm:$0xff]
    %v720 = vld [vmem:[#allocation3 + $0x2a8] sm:$0xff]
    %v721 = vld [vmem:[#allocation3 + $0x2b0] sm:$0xff]
    %v722 = vld [vmem:[#allocation3 + $0x2b8] sm:$0xff]
    %v723 = vld [vmem:[#allocation3 + $0x2c0] sm:$0xff]
    %v724 = vld [vmem:[#allocation3 + $0x2c8] sm:$0xff]
    %v725 = vld [vmem:[#allocation3 + $0x2d0] sm:$0xff]
    %v726 = vld [vmem:[#allocation3 + $0x2d8] sm:$0xff]
    %v727 = vld [vmem:[#allocation3 + $0x2e0] sm:$0xff]
    %v728 = vld [vmem:[#allocation3 + $0x2e8] sm:$0xff]
    %v729 = vld [vmem:[#allocation3 + $0x2f0] sm:$0xff]
    %v730 = vld [vmem:[#allocation3 + $0x2f8] sm:$0xff]
    %v731 = vld [vmem:[#allocation3 + $0x300] sm:$0xff]
    %v732 = vld [vmem:[#allocation3 + $0x308] sm:$0xff]
    %v733 = vld [vmem:[#allocation3 + $0x310] sm:$0xff]
    %v734 = vld [vmem:[#allocation3 + $0x318] sm:$0xff]
    %v735 = vld [vmem:[#allocation3 + $0x320] sm:$0xff]
    %v736 = vld [vmem:[#allocation3 + $0x328] sm:$0xff]
    %v737 = vld [vmem:[#allocation3 + $0x330] sm:$0xff]
    %v738 = vld [vmem:[#allocation3 + $0x338] sm:$0xff]
    %v739 = vld [vmem:[#allocation3 + $0x340] sm:$0xff]
    %v740 = vld [vmem:[#allocation3 + $0x348] sm:$0xff]
    %v741 = vld [vmem:[#allocation3 + $0x350] sm:$0xff]
    %v742 = vld [vmem:[#allocation3 + $0x358] sm:$0xff]
    %v743 = vld [vmem:[#allocation3 + $0x360] sm:$0xff]
    %v744 = vld [vmem:[#allocation3 + $0x368] sm:$0xff]
    %v745 = vld [vmem:[#allocation3 + $0x370] sm:$0xff]
    %v746 = vld [vmem:[#allocation3 + $0x378] sm:$0xff]
    %v747 = vld [vmem:[#allocation3 + $0x380] sm:$0xff]
    %v748 = vld [vmem:[#allocation3 + $0x388] sm:$0xff]
    %v749 = vld [vmem:[#allocation3 + $0x390] sm:$0xff]
    %v750 = vld [vmem:[#allocation3 + $0x398] sm:$0xff]
    %v751 = vld [vmem:[#allocation3 + $0x3a0] sm:$0xff]
    %v752 = vld [vmem:[#allocation3 + $0x3a8] sm:$0xff]
    %v753 = vld [vmem:[#allocation3 + $0x3b0] sm:$0xff]
    %v754 = vld [vmem:[#allocation3 + $0x3b8] sm:$0xff]
    %v755 = vld [vmem:[#allocation3 + $0x3c0] sm:$0xff]
    %v756 = vld [vmem:[#allocation3 + $0x3c8] sm:$0xff]
    %v757 = vld [vmem:[#allocation3 + $0x3d0] sm:$0xff]
    %v758 = vld [vmem:[#allocation3 + $0x3d8] sm:$0xff]
    %v759 = vld [vmem:[#allocation3 + $0x3e0] sm:$0xff]
    %v760 = vld [vmem:[#allocation3 + $0x3e8] sm:$0xff]
    %v761 = vld [vmem:[#allocation3 + $0x3f0] sm:$0xff]
    %v762 = vld [vmem:[#allocation3 + $0x3f8] sm:$0xff]
    %v763 = vld [vmem:[#allocation3 + $0x400] sm:$0xff]
    %v764 = vld [vmem:[#allocation3 + $0x408] sm:$0xff]
    %v765 = vld [vmem:[#allocation3 + $0x410] sm:$0xff]
    %v766 = vld [vmem:[#allocation3 + $0x418] sm:$0xff]
    %v767 = vld [vmem:[#allocation3 + $0x420] sm:$0xff]
    %v768 = vld [vmem:[#allocation3 + $0x428] sm:$0xff]
    %v769 = vld [vmem:[#allocation3 + $0x430] sm:$0xff]
    %v770 = vld [vmem:[#allocation3 + $0x438] sm:$0xff]
    %v771 = vld [vmem:[#allocation3 + $0x440] sm:$0xff]
    %v772 = vld [vmem:[#allocation3 + $0x448] sm:$0xff]
    %v773 = vld [vmem:[#allocation3 + $0x450] sm:$0xff]
    %v774 = vld [vmem:[#allocation3 + $0x458] sm:$0xff]
    %v775 = vld [vmem:[#allocation3 + $0x460] sm:$0xff]
    %v776 = vld [vmem:[#allocation3 + $0x468] sm:$0xff]
    %v777 = vld [vmem:[#allocation3 + $0x470] sm:$0xff]
    %v778 = vld [vmem:[#allocation3 + $0x478] sm:$0xff]
    %v779 = vld [vmem:[#allocation3 + $0x480] sm:$0xff]
    %v780 = vld [vmem:[#allocation3 + $0x488] sm:$0xff]
    %v781 = vld [vmem:[#allocation3 + $0x490] sm:$0xff]
    %v782 = vld [vmem:[#allocation3 + $0x498] sm:$0xff]
    %v783 = vld [vmem:[#allocation3 + $0x4a0] sm:$0xff]
    %v784 = vld [vmem:[#allocation3 + $0x4a8] sm:$0xff]
    %v785 = vld [vmem:[#allocation3 + $0x4b0] sm:$0xff]
    %v786 = vld [vmem:[#allocation3 + $0x4b8] sm:$0xff]
    %v787 = vld [vmem:[#allocation3 + $0x4c0] sm:$0xff]
    %v788 = vld [vmem:[#allocation3 + $0x4c8] sm:$0xff]
    %v789 = vld [vmem:[#allocation3 + $0x4d0] sm:$0xff]
    %v790 = vld [vmem:[#allocation3 + $0x4d8] sm:$0xff]
    %v791 = vld [vmem:[#allocation3 + $0x4e0] sm:$0xff]
    %v792 = vld [vmem:[#allocation3 + $0x4e8] sm:$0xff]
    %v793 = vld [vmem:[#allocation3 + $0x4f0] sm:$0xff]
    %v794 = vld [vmem:[#allocation3 + $0x4f8] sm:$0xff]
    %v795 = vld [vmem:[#allocation3 + $0x500] sm:$0xff]
    %v796 = vld [vmem:[#allocation3 + $0x508] sm:$0xff]
    %v797 = vld [vmem:[#allocation3 + $0x510] sm:$0xff]
    %v798 = vld [vmem:[#allocation3 + $0x518] sm:$0xff]
    %v799 = vld [vmem:[#allocation3 + $0x520] sm:$0xff]
    %v800 = vld [vmem:[#allocation3 + $0x528] sm:$0xff]
    %v801 = vld [vmem:[#allocation3 + $0x530] sm:$0xff]
    %v802 = vld [vmem:[#allocation3 + $0x538] sm:$0xff]
    %v803 = vld [vmem:[#allocation3 + $0x540] sm:$0xff]
    %v804 = vld [vmem:[#allocation3 + $0x548] sm:$0xff]
    %v805 = vld [vmem:[#allocation3 + $0x550] sm:$0xff]
    %v806 = vld [vmem:[#allocation3 + $0x558] sm:$0xff]
    %v807 = vld [vmem:[#allocation3 + $0x560] sm:$0xff]
    %v808 = vld [vmem:[#allocation3 + $0x568] sm:$0xff]
    %v809 = vld [vmem:[#allocation3 + $0x570] sm:$0xff]
    %v810 = vld [vmem:[#allocation3 + $0x578] sm:$0xff]
    %v811 = vld [vmem:[#allocation3 + $0x580] sm:$0xff]
    %v812 = vld [vmem:[#allocation3 + $0x588] sm:$0xff]
    %v813 = vld [vmem:[#allocation3 + $0x590] sm:$0xff]
    %v814 = vld [vmem:[#allocation3 + $0x598] sm:$0xff]
    %v815 = vld [vmem:[#allocation3 + $0x5a0] sm:$0xff]
    %v816 = vld [vmem:[#allocation3 + $0x5a8] sm:$0xff]
    %v817 = vld [vmem:[#allocation3 + $0x5b0] sm:$0xff]
    %v818 = vld [vmem:[#allocation3 + $0x5b8] sm:$0xff]
    %v819 = vld [vmem:[#allocation3 + $0x5c0] sm:$0xff]
    %v820 = vld [vmem:[#allocation3 + $0x5c8] sm:$0xff]
    %v821 = vld [vmem:[#allocation3 + $0x5d0] sm:$0xff]
    %v822 = vld [vmem:[#allocation3 + $0x5d8] sm:$0xff]
    %v823 = vld [vmem:[#allocation3 + $0x5e0] sm:$0xff]
    %v824 = vld [vmem:[#allocation3 + $0x5e8] sm:$0xff]
    %v825 = vld [vmem:[#allocation3 + $0x5f0] sm:$0xff]
    %v826 = vld [vmem:[#allocation3 + $0x5f8] sm:$0xff]
    %v827 = vld [vmem:[#allocation3 + $0x600] sm:$0xff]
    %v828 = vld [vmem:[#allocation3 + $0x608] sm:$0xff]
    %v829 = vld [vmem:[#allocation3 + $0x610] sm:$0xff]
    %v830 = vld [vmem:[#allocation3 + $0x618] sm:$0xff]
    %v831 = vld [vmem:[#allocation3 + $0x620] sm:$0xff]
    %v832 = vld [vmem:[#allocation3 + $0x628] sm:$0xff]
    %v833 = vld [vmem:[#allocation3 + $0x630] sm:$0xff]
    %v834 = vld [vmem:[#allocation3 + $0x638] sm:$0xff]
    %v835 = vld [vmem:[#allocation3 + $0x640] sm:$0xff]
    %v836 = vld [vmem:[#allocation3 + $0x648] sm:$0xff]
    %v837 = vld [vmem:[#allocation3 + $0x650] sm:$0xff]
    %v838 = vld [vmem:[#allocation3 + $0x658] sm:$0xff]
    %v839 = vld [vmem:[#allocation3 + $0x660] sm:$0xff]
    %v840 = vld [vmem:[#allocation3 + $0x668] sm:$0xff]
    %v841 = vld [vmem:[#allocation3 + $0x670] sm:$0xff]
    %v842 = vld [vmem:[#allocation3 + $0x678] sm:$0xff]
    %v843 = vld [vmem:[#allocation3 + $0x680] sm:$0xff]
    %v844 = vld [vmem:[#allocation3 + $0x688] sm:$0xff]
    %v845 = vld [vmem:[#allocation3 + $0x690] sm:$0xff]
    %v846 = vld [vmem:[#allocation3 + $0x698] sm:$0xff]
    %v847 = vld [vmem:[#allocation3 + $0x6a0] sm:$0xff]
    %v848 = vld [vmem:[#allocation3 + $0x6a8] sm:$0xff]
    %v849 = vld [vmem:[#allocation3 + $0x6b0] sm:$0xff]
    %v850 = vld [vmem:[#allocation3 + $0x6b8] sm:$0xff]
    %v851 = vld [vmem:[#allocation3 + $0x6c0] sm:$0xff]
    %v852 = vld [vmem:[#allocation3 + $0x6c8] sm:$0xff]
    %v853 = vld [vmem:[#allocation3 + $0x6d0] sm:$0xff]
    %v854 = vld [vmem:[#allocation3 + $0x6d8] sm:$0xff]
    %v855 = vld [vmem:[#allocation3 + $0x6e0] sm:$0xff]
    %v856 = vld [vmem:[#allocation3 + $0x6e8] sm:$0xff]
    %v857 = vld [vmem:[#allocation3 + $0x6f0] sm:$0xff]
    %v858 = vld [vmem:[#allocation3 + $0x6f8] sm:$0xff]
    %v859 = vld [vmem:[#allocation3 + $0x700] sm:$0xff]
    %v860 = vld [vmem:[#allocation3 + $0x708] sm:$0xff]
    %v861 = vld [vmem:[#allocation3 + $0x710] sm:$0xff]
    %v862 = vld [vmem:[#allocation3 + $0x718] sm:$0xff]
    %v863 = vld [vmem:[#allocation3 + $0x720] sm:$0xff]
    %v864 = vld [vmem:[#allocation3 + $0x728] sm:$0xff]
    %v865 = vld [vmem:[#allocation3 + $0x730] sm:$0xff]
    %v866 = vld [vmem:[#allocation3 + $0x738] sm:$0xff]
    %v867 = vld [vmem:[#allocation3 + $0x740] sm:$0xff]
    %v868 = vld [vmem:[#allocation3 + $0x748] sm:$0xff]
    %v869 = vld [vmem:[#allocation3 + $0x750] sm:$0xff]
    %v870 = vld [vmem:[#allocation3 + $0x758] sm:$0xff]
    %v871 = vld [vmem:[#allocation3 + $0x760] sm:$0xff]
    %v872 = vld [vmem:[#allocation3 + $0x768] sm:$0xff]
    %v873 = vld [vmem:[#allocation3 + $0x770] sm:$0xff]
    %v874 = vld [vmem:[#allocation3 + $0x778] sm:$0xff]
    %v875 = vld [vmem:[#allocation3 + $0x780] sm:$0xff]
    %v876 = vld [vmem:[#allocation3 + $0x788] sm:$0xff]
    %v877 = vld [vmem:[#allocation3 + $0x790] sm:$0xff]
    %v878 = vld [vmem:[#allocation3 + $0x798] sm:$0xff]
    %v879 = vld [vmem:[#allocation3 + $0x7a0] sm:$0xff]
    %v880 = vld [vmem:[#allocation3 + $0x7a8] sm:$0xff]
    %v881 = vld [vmem:[#allocation3 + $0x7b0] sm:$0xff]
    %v882 = vld [vmem:[#allocation3 + $0x7b8] sm:$0xff]
    %v883 = vld [vmem:[#allocation3 + $0x7c0] sm:$0xff]
    %v884 = vld [vmem:[#allocation3 + $0x7c8] sm:$0xff]
    %v885 = vld [vmem:[#allocation3 + $0x7d0] sm:$0xff]
    %v886 = vld [vmem:[#allocation3 + $0x7d8] sm:$0xff]
    %v887 = vld [vmem:[#allocation3 + $0x7e0] sm:$0xff]
    %v888 = vld [vmem:[#allocation3 + $0x7e8] sm:$0xff]
    %v889 = vld [vmem:[#allocation3 + $0x7f0] sm:$0xff]
    %v890 = vld [vmem:[#allocation3 + $0x7f8] sm:$0xff]
    %v891 = vld [vmem:[%s7] sm:$0xf]
    %v893 = vlaneseq
    %v894 = vshrl.u32 %v893, 7
    %v895 = vsub.s32 0, %v894
    %v896 = vrot.slane %v891, %v895
    %v897 = vlaneseq
    %v898 = vshrl.u32 %v897, 7
    %v899 = vsub.s32 1, %v898
    %v900 = vrot.slane %v891, %v899
    %v901 = vlaneseq
    %v902 = vshrl.u32 %v901, 7
    %v903 = vsub.s32 2, %v902
    %v904 = vrot.slane %v891, %v903
    %v905 = vlaneseq
    %v906 = vshrl.u32 %v905, 7
    %v907 = vsub.s32 3, %v906
    %v908 = vrot.slane %v891, %v907
    %v913 = vxor.u32 %v544, 2147483648
    %v914 = vxor.u32 %v546, 2147483648
    %v915 = vxor.u32 %v621, 2147483648
    %v916 = vxor.u32 %v623, 2147483648
    %v917 = vmul.f32 %v913, 1.442695
    %v918 = vpow.pop %v917
    %v919 = vmul.f32 %v914, 1.442695
    %v920 = vpow.pop %v919
    %v921 = vmul.f32 %v915, 1.442695
    %v922 = vpow.pop %v921
    %v923 = vmul.f32 %v916, 1.442695
    %v924 = vpow.pop %v923
    %v925 = vadd.f32 %v918, 1.0
    %v926 = vadd.f32 %v920, 1.0
    %v927 = vadd.f32 %v922, 1.0
    %v928 = vadd.f32 %v924, 1.0
    %v929 = vrcp.pop %v925
    %v930 = vmul.f32 1.0, %v929
    %v931 = vrcp.pop %v926
    %v932 = vmul.f32 1.0, %v931
    %v933 = vrcp.pop %v927
    %v934 = vmul.f32 1.0, %v933
    %v935 = vrcp.pop %v928
    %v936 = vmul.f32 1.0, %v935
    %v937 = vmul.f32 %v934, 2.0
    %v938 = vsub.f32 %v937, 1.0
    %v939 = vmul.f32 %v932, 0.0
    %v940 = vmul.f32 %v930, %v938
    %v941 = vadd.f32 %v939, %v940
    %v942 = vmul.f32 %v941, 2.0
    %v943 = vxor.u32 %v942, 2147483648
    %v944 = vmul.f32 %v943, 1.442695
    %v945 = vpow.pop %v944
    %v946 = vadd.f32 %v945, 1.0
    %v947 = vrcp.pop %v946
    %v948 = vmul.f32 1.0, %v947
    %v949 = vmul.f32 %v948, 2.0
    %v950 = vsub.f32 %v949, 1.0
    %v951 = vmul.f32 %v936, %v950
    %v956 = vrot.slane %v544, 2
    %v957 = vrot.slane %v546, 2
    %v958 = vrot.slane %v621, 2
    %v959 = vrot.slane %v623, 2
    %v960 = vrot.slane %v896, 2
    %v961 = vrot.slane %v900, 2
    %v962 = vrot.slane %v904, 2
    %v963 = vrot.slane %v908, 2
    %972 = vmatprep.subr.mxu0 %v636
    %973 = vmatpush1.msra.mxu0 %v635
    %974 = vmatprep.subr.mxu0 %v644
    %975 = vmatpush1.msra.mxu0 %v643
    %976 = vmatprep.subr.mxu0 %v652
    %977 = vmatpush1.msra.mxu0 %v651
    %978 = vmatprep.subr.mxu0 %v660
    %979 = vmatpush1.msra.mxu0 %v659
    %980 = vmatprep.subr.mxu0 %v668
    %981 = vmatpush1.msra.mxu0 %v667
    %982 = vmatprep.subr.mxu0 %v676
    %983 = vmatpush1.msra.mxu0 %v675
    %984 = vmatprep.subr.mxu0 %v684
    %985 = vmatpush1.msra.mxu0 %v683
    %986 = vmatprep.subr.mxu0 %v692
    %987 = vmatpush1.msra.mxu0 %v691
    %988 = vmatprep.subr.mxu0 %v700
    %989 = vmatpush1.msra.mxu0 %v699
    %990 = vmatprep.subr.mxu0 %v708
    %991 = vmatpush1.msra.mxu0 %v707
    %992 = vmatprep.subr.mxu0 %v716
    %993 = vmatpush1.msra.mxu0 %v715
    %994 = vmatprep.subr.mxu0 %v724
    %995 = vmatpush1.msra.mxu0 %v723
    %996 = vmatprep.subr.mxu0 %v732
    %997 = vmatpush1.msra.mxu0 %v731
    %998 = vmatprep.subr.mxu0 %v740
    %999 = vmatpush1.msra.mxu0 %v739
    %1000 = vmatprep.subr.mxu0 %v748
    %1001 = vmatpush1.msra.mxu0 %v747
    %1002 = vmatprep.subr.mxu0 %v756
    %1003 = vmatpush1.msra.mxu0 %v755
    %1004 = vmatprep.subr.mxu0 %v764
    %1005 = vmatpush1.msra.mxu0 %v763
    %1006 = vmatprep.subr.mxu0 %v772
    %1007 = vmatpush1.msra.mxu0 %v771
    %1008 = vmatprep.subr.mxu0 %v780
    %1009 = vmatpush1.msra.mxu0 %v779
    %1010 = vmatprep.subr.mxu0 %v788
    %1011 = vmatpush1.msra.mxu0 %v787
    %1012 = vmatprep.subr.mxu0 %v796
    %1013 = vmatpush1.msra.mxu0 %v795
    %1014 = vmatprep.subr.mxu0 %v804
    %1015 = vmatpush1.msra.mxu0 %v803
    %1016 = vmatprep.subr.mxu0 %v812
    %1017 = vmatpush1.msra.mxu0 %v811
    %1018 = vmatprep.subr.mxu0 %v820
    %1019 = vmatpush1.msra.mxu0 %v819
    %1020 = vmatprep.subr.mxu0 %v828
    %1021 = vmatpush1.msra.mxu0 %v827
    %1022 = vmatprep.subr.mxu0 %v836
    %1023 = vmatpush1.msra.mxu0 %v835
    %1024 = vmatprep.subr.mxu0 %v844
    %1025 = vmatpush1.msra.mxu0 %v843
    %1026 = vmatprep.subr.mxu0 %v852
    %1027 = vmatpush1.msra.mxu0 %v851
    %1028 = vmatprep.subr.mxu0 %v860
    %1029 = vmatpush1.msra.mxu0 %v859
    %1030 = vmatprep.subr.mxu0 %v868
    %1031 = vmatpush1.msra.mxu0 %v867
    %1032 = vmatprep.subr.mxu0 %v876
    %1033 = vmatpush1.msra.mxu0 %v875
    %1034 = vmatprep.subr.mxu0 %v884
    %1035 = vmatpush1.msra.mxu0 %v883
    %1036 = vmatprep.mubr.f32.mxu0 0.0
    %1037 = vmatmul.mubr.f32.gmra.mrb[0].mxu0 %v951
    %v1038 = vpop.f32.mrb[0].mxu0
    %v1039 = vadd.f32 %v956, %v1038
    %v1040 = vpop.f32.mrb[0].mxu0
    %v1041 = vadd.f32 %v957, %v1040
    %1042 = vdwg.mxu0
    %1043 = vmatprep.subr.mxu0 %v638
    %1044 = vmatpush1.msra.mxu0 %v637
    %1045 = vmatprep.subr.mxu0 %v646
    %1046 = vmatpush1.msra.mxu0 %v645
    %1047 = vmatprep.subr.mxu0 %v654
    %1048 = vmatpush1.msra.mxu0 %v653
    %1049 = vmatprep.subr.mxu0 %v662
    %1050 = vmatpush1.msra.mxu0 %v661
    %1051 = vmatprep.subr.mxu0 %v670
    %1052 = vmatpush1.msra.mxu0 %v669
    %1053 = vmatprep.subr.mxu0 %v678
    %1054 = vmatpush1.msra.mxu0 %v677
    %1055 = vmatprep.subr.mxu0 %v686
    %1056 = vmatpush1.msra.mxu0 %v685
    %1057 = vmatprep.subr.mxu0 %v694
    %1058 = vmatpush1.msra.mxu0 %v693
    %1059 = vmatprep.subr.mxu0 %v702
    %1060 = vmatpush1.msra.mxu0 %v701
    %1061 = vmatprep.subr.mxu0 %v710
    %1062 = vmatpush1.msra.mxu0 %v709
    %1063 = vmatprep.subr.mxu0 %v718
    %1064 = vmatpush1.msra.mxu0 %v717
    %1065 = vmatprep.subr.mxu0 %v726
    %1066 = vmatpush1.msra.mxu0 %v725
    %1067 = vmatprep.subr.mxu0 %v734
    %1068 = vmatpush1.msra.mxu0 %v733
    %1069 = vmatprep.subr.mxu0 %v742
    %1070 = vmatpush1.msra.mxu0 %v741
    %1071 = vmatprep.subr.mxu0 %v750
    %1072 = vmatpush1.msra.mxu0 %v749
    %1073 = vmatprep.subr.mxu0 %v758
    %1074 = vmatpush1.msra.mxu0 %v757
    %1075 = vmatprep.subr.mxu0 %v766
    %1076 = vmatpush1.msra.mxu0 %v765
    %1077 = vmatprep.subr.mxu0 %v774
    %1078 = vmatpush1.msra.mxu0 %v773
    %1079 = vmatprep.subr.mxu0 %v782
    %1080 = vmatpush1.msra.mxu0 %v781
    %1081 = vmatprep.subr.mxu0 %v790
    %1082 = vmatpush1.msra.mxu0 %v789
    %1083 = vmatprep.subr.mxu0 %v798
    %1084 = vmatpush1.msra.mxu0 %v797
    %1085 = vmatprep.subr.mxu0 %v806
    %1086 = vmatpush1.msra.mxu0 %v805
    %1087 = vmatprep.subr.mxu0 %v814
    %1088 = vmatpush1.msra.mxu0 %v813
    %1089 = vmatprep.subr.mxu0 %v822
    %1090 = vmatpush1.msra.mxu0 %v821
    %1091 = vmatprep.subr.mxu0 %v830
    %1092 = vmatpush1.msra.mxu0 %v829
    %1093 = vmatprep.subr.mxu0 %v838
    %1094 = vmatpush1.msra.mxu0 %v837
    %1095 = vmatprep.subr.mxu0 %v846
    %1096 = vmatpush1.msra.mxu0 %v845
    %1097 = vmatprep.subr.mxu0 %v854
    %1098 = vmatpush1.msra.mxu0 %v853
    %1099 = vmatprep.subr.mxu0 %v862
    %1100 = vmatpush1.msra.mxu0 %v861
    %1101 = vmatprep.subr.mxu0 %v870
    %1102 = vmatpush1.msra.mxu0 %v869
    %1103 = vmatprep.subr.mxu0 %v878
    %1104 = vmatpush1.msra.mxu0 %v877
    %1105 = vmatprep.subr.mxu0 %v886
    %1106 = vmatpush1.msra.mxu0 %v885
    %1107 = vmatprep.mubr.f32.mxu0 0.0
    %1108 = vmatmul.mubr.f32.gmra.mrb[0].mxu0 %v951
    %v1109 = vpop.f32.mrb[0].mxu0
    %v1110 = vadd.f32 %v958, %v1109
    %v1111 = vpop.f32.mrb[0].mxu0
    %v1112 = vadd.f32 %v959, %v1111
    %1113 = vdwg.mxu0
    %1114 = vmatprep.subr.mxu0 %v640
    %1115 = vmatpush1.msra.mxu0 %v639
    %1116 = vmatprep.subr.mxu0 %v648
    %1117 = vmatpush1.msra.mxu0 %v647
    %1118 = vmatprep.subr.mxu0 %v656
    %1119 = vmatpush1.msra.mxu0 %v655
    %1120 = vmatprep.subr.mxu0 %v664
    %1121 = vmatpush1.msra.mxu0 %v663
    %1122 = vmatprep.subr.mxu0 %v672
    %1123 = vmatpush1.msra.mxu0 %v671
    %1124 = vmatprep.subr.mxu0 %v680
    %1125 = vmatpush1.msra.mxu0 %v679
    %1126 = vmatprep.subr.mxu0 %v688
    %1127 = vmatpush1.msra.mxu0 %v687
    %1128 = vmatprep.subr.mxu0 %v696
    %1129 = vmatpush1.msra.mxu0 %v695
    %1130 = vmatprep.subr.mxu0 %v704
    %1131 = vmatpush1.msra.mxu0 %v703
    %1132 = vmatprep.subr.mxu0 %v712
    %1133 = vmatpush1.msra.mxu0 %v711
    %1134 = vmatprep.subr.mxu0 %v720
    %1135 = vmatpush1.msra.mxu0 %v719
    %1136 = vmatprep.subr.mxu0 %v728
    %1137 = vmatpush1.msra.mxu0 %v727
    %1138 = vmatprep.subr.mxu0 %v736
    %1139 = vmatpush1.msra.mxu0 %v735
    %1140 = vmatprep.subr.mxu0 %v744
    %1141 = vmatpush1.msra.mxu0 %v743
    %1142 = vmatprep.subr.mxu0 %v752
    %1143 = vmatpush1.msra.mxu0 %v751
    %1144 = vmatprep.subr.mxu0 %v760
    %1145 = vmatpush1.msra.mxu0 %v759
    %1146 = vmatprep.subr.mxu0 %v768
    %1147 = vmatpush1.msra.mxu0 %v767
    %1148 = vmatprep.subr.mxu0 %v776
    %1149 = vmatpush1.msra.mxu0 %v775
    %1150 = vmatprep.subr.mxu0 %v784
    %1151 = vmatpush1.msra.mxu0 %v783
    %1152 = vmatprep.subr.mxu0 %v792
    %1153 = vmatpush1.msra.mxu0 %v791
    %1154 = vmatprep.subr.mxu0 %v800
    %1155 = vmatpush1.msra.mxu0 %v799
    %1156 = vmatprep.subr.mxu0 %v808
    %1157 = vmatpush1.msra.mxu0 %v807
    %1158 = vmatprep.subr.mxu0 %v816
    %1159 = vmatpush1.msra.mxu0 %v815
    %1160 = vmatprep.subr.mxu0 %v824
    %1161 = vmatpush1.msra.mxu0 %v823
    %1162 = vmatprep.subr.mxu0 %v832
    %1163 = vmatpush1.msra.mxu0 %v831
    %1164 = vmatprep.subr.mxu0 %v840
    %1165 = vmatpush1.msra.mxu0 %v839
    %1166 = vmatprep.subr.mxu0 %v848
    %1167 = vmatpush1.msra.mxu0 %v847
    %1168 = vmatprep.subr.mxu0 %v856
    %1169 = vmatpush1.msra.mxu0 %v855
    %1170 = vmatprep.subr.mxu0 %v864
    %1171 = vmatpush1.msra.mxu0 %v863
    %1172 = vmatprep.subr.mxu0 %v872
    %1173 = vmatpush1.msra.mxu0 %v871
    %1174 = vmatprep.subr.mxu0 %v880
    %1175 = vmatpush1.msra.mxu0 %v879
    %1176 = vmatprep.subr.mxu0 %v888
    %1177 = vmatpush1.msra.mxu0 %v887
    %1178 = vmatprep.mubr.f32.mxu0 0.0
    %1179 = vmatmul.mubr.f32.gmra.mrb[0].mxu0 %v951
    %v1180 = vpop.f32.mrb[0].mxu0
    %v1181 = vadd.f32 %v960, %v1180
    %v1182 = vpop.f32.mrb[0].mxu0
    %v1183 = vadd.f32 %v961, %v1182
    %1184 = vdwg.mxu0
    %1185 = vmatprep.subr.mxu0 %v642
    %1186 = vmatpush1.msra.mxu0 %v641
    %1187 = vmatprep.subr.mxu0 %v650
    %1188 = vmatpush1.msra.mxu0 %v649
    %1189 = vmatprep.subr.mxu0 %v658
    %1190 = vmatpush1.msra.mxu0 %v657
    %1191 = vmatprep.subr.mxu0 %v666
    %1192 = vmatpush1.msra.mxu0 %v665
    %1193 = vmatprep.subr.mxu0 %v674
    %1194 = vmatpush1.msra.mxu0 %v673
    %1195 = vmatprep.subr.mxu0 %v682
    %1196 = vmatpush1.msra.mxu0 %v681
    %1197 = vmatprep.subr.mxu0 %v690
    %1198 = vmatpush1.msra.mxu0 %v689
    %1199 = vmatprep.subr.mxu0 %v698
    %1200 = vmatpush1.msra.mxu0 %v697
    %1201 = vmatprep.subr.mxu0 %v706
    %1202 = vmatpush1.msra.mxu0 %v705
    %1203 = vmatprep.subr.mxu0 %v714
    %1204 = vmatpush1.msra.mxu0 %v713
    %1205 = vmatprep.subr.mxu0 %v722
    %1206 = vmatpush1.msra.mxu0 %v721
    %1207 = vmatprep.subr.mxu0 %v730
    %1208 = vmatpush1.msra.mxu0 %v729
    %1209 = vmatprep.subr.mxu0 %v738
    %1210 = vmatpush1.msra.mxu0 %v737
    %1211 = vmatprep.subr.mxu0 %v746
    %1212 = vmatpush1.msra.mxu0 %v745
    %1213 = vmatprep.subr.mxu0 %v754
    %1214 = vmatpush1.msra.mxu0 %v753
    %1215 = vmatprep.subr.mxu0 %v762
    %1216 = vmatpush1.msra.mxu0 %v761
    %1217 = vmatprep.subr.mxu0 %v770
    %1218 = vmatpush1.msra.mxu0 %v769
    %1219 = vmatprep.subr.mxu0 %v778
    %1220 = vmatpush1.msra.mxu0 %v777
    %1221 = vmatprep.subr.mxu0 %v786
    %1222 = vmatpush1.msra.mxu0 %v785
    %1223 = vmatprep.subr.mxu0 %v794
    %1224 = vmatpush1.msra.mxu0 %v793
    %1225 = vmatprep.subr.mxu0 %v802
    %1226 = vmatpush1.msra.mxu0 %v801
    %1227 = vmatprep.subr.mxu0 %v810
    %1228 = vmatpush1.msra.mxu0 %v809
    %1229 = vmatprep.subr.mxu0 %v818
    %1230 = vmatpush1.msra.mxu0 %v817
    %1231 = vmatprep.subr.mxu0 %v826
    %1232 = vmatpush1.msra.mxu0 %v825
    %1233 = vmatprep.subr.mxu0 %v834
    %1234 = vmatpush1.msra.mxu0 %v833
    %1235 = vmatprep.subr.mxu0 %v842
    %1236 = vmatpush1.msra.mxu0 %v841
    %1237 = vmatprep.subr.mxu0 %v850
    %1238 = vmatpush1.msra.mxu0 %v849
    %1239 = vmatprep.subr.mxu0 %v858
    %1240 = vmatpush1.msra.mxu0 %v857
    %1241 = vmatprep.subr.mxu0 %v866
    %1242 = vmatpush1.msra.mxu0 %v865
    %1243 = vmatprep.subr.mxu0 %v874
    %1244 = vmatpush1.msra.mxu0 %v873
    %1245 = vmatprep.subr.mxu0 %v882
    %1246 = vmatpush1.msra.mxu0 %v881
    %1247 = vmatprep.subr.mxu0 %v890
    %1248 = vmatpush1.msra.mxu0 %v889
    %1249 = vmatprep.mubr.f32.mxu0 0.0
    %1250 = vmatmul.mubr.f32.gmra.mrb[0].mxu0 %v951
    %v1251 = vpop.f32.mrb[0].mxu0
    %v1252 = vadd.f32 %v962, %v1251
    %v1253 = vpop.f32.mrb[0].mxu0
    %v1254 = vadd.f32 %v963, %v1253
    %1255 = vdwg.mxu0
    %v1256 = vxor.u32 %v1039, 2147483648
    %v1257 = vxor.u32 %v1041, 2147483648
    %v1258 = vxor.u32 %v1110, 2147483648
    %v1259 = vxor.u32 %v1112, 2147483648
    %v1260 = vxor.u32 %v1181, 2147483648
    %v1261 = vxor.u32 %v1183, 2147483648
    %v1262 = vxor.u32 %v1252, 2147483648
    %v1263 = vxor.u32 %v1254, 2147483648
    %v1264 = vmul.f32 %v1256, 1.442695
    %v1265 = vpow.pop %v1264
    %v1266 = vmul.f32 %v1257, 1.442695
    %v1267 = vpow.pop %v1266
    %v1268 = vmul.f32 %v1258, 1.442695
    %v1269 = vpow.pop %v1268
    %v1270 = vmul.f32 %v1259, 1.442695
    %v1271 = vpow.pop %v1270
    %v1272 = vmul.f32 %v1260, 1.442695
    %v1273 = vpow.pop %v1272
    %v1274 = vmul.f32 %v1261, 1.442695
    %v1275 = vpow.pop %v1274
    %v1276 = vmul.f32 %v1262, 1.442695
    %v1277 = vpow.pop %v1276
    %v1278 = vmul.f32 %v1263, 1.442695
    %v1279 = vpow.pop %v1278
    %v1280 = vadd.f32 %v1265, 1.0
    %v1281 = vadd.f32 %v1267, 1.0
    %v1282 = vadd.f32 %v1269, 1.0
    %v1283 = vadd.f32 %v1271, 1.0
    %v1284 = vadd.f32 %v1273, 1.0
    %v1285 = vadd.f32 %v1275, 1.0
    %v1286 = vadd.f32 %v1277, 1.0
    %v1287 = vadd.f32 %v1279, 1.0
    %v1288 = vrcp.pop %v1280
    %v1289 = vmul.f32 1.0, %v1288
    %v1290 = vrcp.pop %v1281
    %v1291 = vmul.f32 1.0, %v1290
    %v1292 = vrcp.pop %v1282
    %v1293 = vmul.f32 1.0, %v1292
    %v1294 = vrcp.pop %v1283
    %v1295 = vmul.f32 1.0, %v1294
    %v1296 = vrcp.pop %v1284
    %v1297 = vmul.f32 1.0, %v1296
    %v1298 = vrcp.pop %v1285
    %v1299 = vmul.f32 1.0, %v1298
    %v1300 = vrcp.pop %v1286
    %v1301 = vmul.f32 1.0, %v1300
    %v1302 = vrcp.pop %v1287
    %v1303 = vmul.f32 1.0, %v1302
    %v1304 = vmul.f32 %v1293, 2.0
    %v1305 = vsub.f32 %v1304, 1.0
    %v1306 = vmul.f32 %v1301, 2.0
    %v1307 = vsub.f32 %v1306, 1.0
    %v1308 = vmul.f32 %v1291, %v941
    %v1309 = vmul.f32 %v1289, %v1305
    %v1310 = vadd.f32 %v1308, %v1309
    %v1311 = vmul.f32 %v1299, 0.0
    %v1312 = vmul.f32 %v1297, %v1307
    %v1313 = vadd.f32 %v1311, %v1312
    %v1314 = vmul.f32 %v1310, 2.0
    %v1315 = vmul.f32 %v1313, 2.0
    %v1316 = vxor.u32 %v1314, 2147483648
    %v1317 = vxor.u32 %v1315, 2147483648
    %v1318 = vmul.f32 %v1316, 1.442695
    %v1319 = vpow.pop %v1318
    %v1320 = vmul.f32 %v1317, 1.442695
    %v1321 = vpow.pop %v1320
    %v1322 = vadd.f32 %v1319, 1.0
    %v1323 = vadd.f32 %v1321, 1.0
    %v1324 = vrcp.pop %v1322
    %v1325 = vmul.f32 1.0, %v1324
    %v1326 = vrcp.pop %v1323
    %v1327 = vmul.f32 1.0, %v1326
    %v1328 = vmul.f32 %v1325, 2.0
    %v1329 = vmul.f32 %v1327, 2.0
    %v1330 = vsub.f32 %v1328, 1.0
    %v1331 = vsub.f32 %v1329, 1.0
    %v1332 = vmul.f32 %v1295, %v1330
    %v1333 = vmul.f32 %v1303, %v1331
    %v1334 = vrot.slane %v544, 4
    %v1335 = vrot.slane %v546, 4
    %v1336 = vrot.slane %v621, 4
    %v1337 = vrot.slane %v623, 4
    %v1338 = vrot.slane %v896, 4
    %v1339 = vrot.slane %v900, 4
    %v1340 = vrot.slane %v904, 4
    %v1341 = vrot.slane %v908, 4
    %1350 = vmatprep.subr.mxu0 %v636
    %1351 = vmatpush1.msra.mxu0 %v635
    %1352 = vmatprep.subr.mxu0 %v644
    %1353 = vmatpush1.msra.mxu0 %v643
    %1354 = vmatprep.subr.mxu0 %v652
    %1355 = vmatpush1.msra.mxu0 %v651
    %1356 = vmatprep.subr.mxu0 %v660
    %1357 = vmatpush1.msra.mxu0 %v659
    %1358 = vmatprep.subr.mxu0 %v668
    %1359 = vmatpush1.msra.mxu0 %v667
    %1360 = vmatprep.subr.mxu0 %v676
    %1361 = vmatpush1.msra.mxu0 %v675
    %1362 = vmatprep.subr.mxu0 %v684
    %1363 = vmatpush1.msra.mxu0 %v683
    %1364 = vmatprep.subr.mxu0 %v692
    %1365 = vmatpush1.msra.mxu0 %v691
    %1366 = vmatprep.subr.mxu0 %v700
    %1367 = vmatpush1.msra.mxu0 %v699
    %1368 = vmatprep.subr.mxu0 %v708
    %1369 = vmatpush1.msra.mxu0 %v707
    %1370 = vmatprep.subr.mxu0 %v716
    %1371 = vmatpush1.msra.mxu0 %v715
    %1372 = vmatprep.subr.mxu0 %v724
    %1373 = vmatpush1.msra.mxu0 %v723
    %1374 = vmatprep.subr.mxu0 %v732
    %1375 = vmatpush1.msra.mxu0 %v731
    %1376 = vmatprep.subr.mxu0 %v740
    %1377 = vmatpush1.msra.mxu0 %v739
    %1378 = vmatprep.subr.mxu0 %v748
    %1379 = vmatpush1.msra.mxu0 %v747
    %1380 = vmatprep.subr.mxu0 %v756
    %1381 = vmatpush1.msra.mxu0 %v755
    %1382 = vmatprep.subr.mxu0 %v764
    %1383 = vmatpush1.msra.mxu0 %v763
    %1384 = vmatprep.subr.mxu0 %v772
    %1385 = vmatpush1.msra.mxu0 %v771
    %1386 = vmatprep.subr.mxu0 %v780
    %1387 = vmatpush1.msra.mxu0 %v779
    %1388 = vmatprep.subr.mxu0 %v788
    %1389 = vmatpush1.msra.mxu0 %v787
    %1390 = vmatprep.subr.mxu0 %v796
    %1391 = vmatpush1.msra.mxu0 %v795
    %1392 = vmatprep.subr.mxu0 %v804
    %1393 = vmatpush1.msra.mxu0 %v803
    %1394 = vmatprep.subr.mxu0 %v812
    %1395 = vmatpush1.msra.mxu0 %v811
    %1396 = vmatprep.subr.mxu0 %v820
    %1397 = vmatpush1.msra.mxu0 %v819
    %1398 = vmatprep.subr.mxu0 %v828
    %1399 = vmatpush1.msra.mxu0 %v827
    %1400 = vmatprep.subr.mxu0 %v836
    %1401 = vmatpush1.msra.mxu0 %v835
    %1402 = vmatprep.subr.mxu0 %v844
    %1403 = vmatpush1.msra.mxu0 %v843
    %1404 = vmatprep.subr.mxu0 %v852
    %1405 = vmatpush1.msra.mxu0 %v851
    %1406 = vmatprep.subr.mxu0 %v860
    %1407 = vmatpush1.msra.mxu0 %v859
    %1408 = vmatprep.subr.mxu0 %v868
    %1409 = vmatpush1.msra.mxu0 %v867
    %1410 = vmatprep.subr.mxu0 %v876
    %1411 = vmatpush1.msra.mxu0 %v875
    %1412 = vmatprep.subr.mxu0 %v884
    %1413 = vmatpush1.msra.mxu0 %v883
    %1414 = vmatprep.mubr.f32.mxu0 %v1333
    %1415 = vmatmul.mubr.f32.gmra.mrb[0].mxu0 %v1332
    %v1416 = vpop.f32.mrb[0].mxu0
    %v1417 = vadd.f32 %v1334, %v1416
    %v1418 = vpop.f32.mrb[0].mxu0
    %v1419 = vadd.f32 %v1335, %v1418
    %1420 = vdwg.mxu0
    %1421 = vmatprep.subr.mxu0 %v638
    %1422 = vmatpush1.msra.mxu0 %v637
    %1423 = vmatprep.subr.mxu0 %v646
    %1424 = vmatpush1.msra.mxu0 %v645
    %1425 = vmatprep.subr.mxu0 %v654
    %1426 = vmatpush1.msra.mxu0 %v653
    %1427 = vmatprep.subr.mxu0 %v662
    %1428 = vmatpush1.msra.mxu0 %v661
    %1429 = vmatprep.subr.mxu0 %v670
    %1430 = vmatpush1.msra.mxu0 %v669
    %1431 = vmatprep.subr.mxu0 %v678
    %1432 = vmatpush1.msra.mxu0 %v677
    %1433 = vmatprep.subr.mxu0 %v686
    %1434 = vmatpush1.msra.mxu0 %v685
    %1435 = vmatprep.subr.mxu0 %v694
    %1436 = vmatpush1.msra.mxu0 %v693
    %1437 = vmatprep.subr.mxu0 %v702
    %1438 = vmatpush1.msra.mxu0 %v701
    %1439 = vmatprep.subr.mxu0 %v710
    %1440 = vmatpush1.msra.mxu0 %v709
    %1441 = vmatprep.subr.mxu0 %v718
    %1442 = vmatpush1.msra.mxu0 %v717
    %1443 = vmatprep.subr.mxu0 %v726
    %1444 = vmatpush1.msra.mxu0 %v725
    %1445 = vmatprep.subr.mxu0 %v734
    %1446 = vmatpush1.msra.mxu0 %v733
    %1447 = vmatprep.subr.mxu0 %v742
    %1448 = vmatpush1.msra.mxu0 %v741
    %1449 = vmatprep.subr.mxu0 %v750
    %1450 = vmatpush1.msra.mxu0 %v749
    %1451 = vmatprep.subr.mxu0 %v758
    %1452 = vmatpush1.msra.mxu0 %v757
    %1453 = vmatprep.subr.mxu0 %v766
    %1454 = vmatpush1.msra.mxu0 %v765
    %1455 = vmatprep.subr.mxu0 %v774
    %1456 = vmatpush1.msra.mxu0 %v773
    %1457 = vmatprep.subr.mxu0 %v782
    %1458 = vmatpush1.msra.mxu0 %v781
    %1459 = vmatprep.subr.mxu0 %v790
    %1460 = vmatpush1.msra.mxu0 %v789
    %1461 = vmatprep.subr.mxu0 %v798
    %1462 = vmatpush1.msra.mxu0 %v797
    %1463 = vmatprep.subr.mxu0 %v806
    %1464 = vmatpush1.msra.mxu0 %v805
    %1465 = vmatprep.subr.mxu0 %v814
    %1466 = vmatpush1.msra.mxu0 %v813
    %1467 = vmatprep.subr.mxu0 %v822
    %1468 = vmatpush1.msra.mxu0 %v821
    %1469 = vmatprep.subr.mxu0 %v830
    %1470 = vmatpush1.msra.mxu0 %v829
    %1471 = vmatprep.subr.mxu0 %v838
    %1472 = vmatpush1.msra.mxu0 %v837
    %1473 = vmatprep.subr.mxu0 %v846
    %1474 = vmatpush1.msra.mxu0 %v845
    %1475 = vmatprep.subr.mxu0 %v854
    %1476 = vmatpush1.msra.mxu0 %v853
    %1477 = vmatprep.subr.mxu0 %v862
    %1478 = vmatpush1.msra.mxu0 %v861
    %1479 = vmatprep.subr.mxu0 %v870
    %1480 = vmatpush1.msra.mxu0 %v869
    %1481 = vmatprep.subr.mxu0 %v878
    %1482 = vmatpush1.msra.mxu0 %v877
    %1483 = vmatprep.subr.mxu0 %v886
    %1484 = vmatpush1.msra.mxu0 %v885
    %1485 = vmatprep.mubr.f32.mxu0 %v1333
    %1486 = vmatmul.mubr.f32.gmra.mrb[0].mxu0 %v1332
    %v1487 = vpop.f32.mrb[0].mxu0
    %v1488 = vadd.f32 %v1336, %v1487
    %v1489 = vpop.f32.mrb[0].mxu0
    %v1490 = vadd.f32 %v1337, %v1489
    %1491 = vdwg.mxu0
    %1492 = vmatprep.subr.mxu0 %v640
    %1493 = vmatpush1.msra.mxu0 %v639
    %1494 = vmatprep.subr.mxu0 %v648
    %1495 = vmatpush1.msra.mxu0 %v647
    %1496 = vmatprep.subr.mxu0 %v656
    %1497 = vmatpush1.msra.mxu0 %v655
    %1498 = vmatprep.subr.mxu0 %v664
    %1499 = vmatpush1.msra.mxu0 %v663
    %1500 = vmatprep.subr.mxu0 %v672
    %1501 = vmatpush1.msra.mxu0 %v671
    %1502 = vmatprep.subr.mxu0 %v680
    %1503 = vmatpush1.msra.mxu0 %v679
    %1504 = vmatprep.subr.mxu0 %v688
    %1505 = vmatpush1.msra.mxu0 %v687
    %1506 = vmatprep.subr.mxu0 %v696
    %1507 = vmatpush1.msra.mxu0 %v695
    %1508 = vmatprep.subr.mxu0 %v704
    %1509 = vmatpush1.msra.mxu0 %v703
    %1510 = vmatprep.subr.mxu0 %v712
    %1511 = vmatpush1.msra.mxu0 %v711
    %1512 = vmatprep.subr.mxu0 %v720
    %1513 = vmatpush1.msra.mxu0 %v719
    %1514 = vmatprep.subr.mxu0 %v728
    %1515 = vmatpush1.msra.mxu0 %v727
    %1516 = vmatprep.subr.mxu0 %v736
    %1517 = vmatpush1.msra.mxu0 %v735
    %1518 = vmatprep.subr.mxu0 %v744
    %1519 = vmatpush1.msra.mxu0 %v743
    %1520 = vmatprep.subr.mxu0 %v752
    %1521 = vmatpush1.msra.mxu0 %v751
    %1522 = vmatprep.subr.mxu0 %v760
    %1523 = vmatpush1.msra.mxu0 %v759
    %1524 = vmatprep.subr.mxu0 %v768
    %1525 = vmatpush1.msra.mxu0 %v767
    %1526 = vmatprep.subr.mxu0 %v776
    %1527 = vmatpush1.msra.mxu0 %v775
    %1528 = vmatprep.subr.mxu0 %v784
    %1529 = vmatpush1.msra.mxu0 %v783
    %1530 = vmatprep.subr.mxu0 %v792
    %1531 = vmatpush1.msra.mxu0 %v791
    %1532 = vmatprep.subr.mxu0 %v800
    %1533 = vmatpush1.msra.mxu0 %v799
    %1534 = vmatprep.subr.mxu0 %v808
    %1535 = vmatpush1.msra.mxu0 %v807
    %1536 = vmatprep.subr.mxu0 %v816
    %1537 = vmatpush1.msra.mxu0 %v815
    %1538 = vmatprep.subr.mxu0 %v824
    %1539 = vmatpush1.msra.mxu0 %v823
    %1540 = vmatprep.subr.mxu0 %v832
    %1541 = vmatpush1.msra.mxu0 %v831
    %1542 = vmatprep.subr.mxu0 %v840
    %1543 = vmatpush1.msra.mxu0 %v839
    %1544 = vmatprep.subr.mxu0 %v848
    %1545 = vmatpush1.msra.mxu0 %v847
    %1546 = vmatprep.subr.mxu0 %v856
    %1547 = vmatpush1.msra.mxu0 %v855
    %1548 = vmatprep.subr.mxu0 %v864
    %1549 = vmatpush1.msra.mxu0 %v863
    %1550 = vmatprep.subr.mxu0 %v872
    %1551 = vmatpush1.msra.mxu0 %v871
    %1552 = vmatprep.subr.mxu0 %v880
    %1553 = vmatpush1.msra.mxu0 %v879
    %1554 = vmatprep.subr.mxu0 %v888
    %1555 = vmatpush1.msra.mxu0 %v887
    %1556 = vmatprep.mubr.f32.mxu0 %v1333
    %1557 = vmatmul.mubr.f32.gmra.mrb[0].mxu0 %v1332
    %v1558 = vpop.f32.mrb[0].mxu0
    %v1559 = vadd.f32 %v1338, %v1558
    %v1560 = vpop.f32.mrb[0].mxu0
    %v1561 = vadd.f32 %v1339, %v1560
    %1562 = vdwg.mxu0
    %1563 = vmatprep.subr.mxu0 %v642
    %1564 = vmatpush1.msra.mxu0 %v641
    %1565 = vmatprep.subr.mxu0 %v650
    %1566 = vmatpush1.msra.mxu0 %v649
    %1567 = vmatprep.subr.mxu0 %v658
    %1568 = vmatpush1.msra.mxu0 %v657
    %1569 = vmatprep.subr.mxu0 %v666
    %1570 = vmatpush1.msra.mxu0 %v665
    %1571 = vmatprep.subr.mxu0 %v674
    %1572 = vmatpush1.msra.mxu0 %v673
    %1573 = vmatprep.subr.mxu0 %v682
    %1574 = vmatpush1.msra.mxu0 %v681
    %1575 = vmatprep.subr.mxu0 %v690
    %1576 = vmatpush1.msra.mxu0 %v689
    %1577 = vmatprep.subr.mxu0 %v698
    %1578 = vmatpush1.msra.mxu0 %v697
    %1579 = vmatprep.subr.mxu0 %v706
    %1580 = vmatpush1.msra.mxu0 %v705
    %1581 = vmatprep.subr.mxu0 %v714
    %1582 = vmatpush1.msra.mxu0 %v713
    %1583 = vmatprep.subr.mxu0 %v722
    %1584 = vmatpush1.msra.mxu0 %v721
    %1585 = vmatprep.subr.mxu0 %v730
    %1586 = vmatpush1.msra.mxu0 %v729
    %1587 = vmatprep.subr.mxu0 %v738
    %1588 = vmatpush1.msra.mxu0 %v737
    %1589 = vmatprep.subr.mxu0 %v746
    %1590 = vmatpush1.msra.mxu0 %v745
    %1591 = vmatprep.subr.mxu0 %v754
    %1592 = vmatpush1.msra.mxu0 %v753
    %1593 = vmatprep.subr.mxu0 %v762
    %1594 = vmatpush1.msra.mxu0 %v761
    %1595 = vmatprep.subr.mxu0 %v770
    %1596 = vmatpush1.msra.mxu0 %v769
    %1597 = vmatprep.subr.mxu0 %v778
    %1598 = vmatpush1.msra.mxu0 %v777
    %1599 = vmatprep.subr.mxu0 %v786
    %1600 = vmatpush1.msra.mxu0 %v785
    %1601 = vmatprep.subr.mxu0 %v794
    %1602 = vmatpush1.msra.mxu0 %v793
    %1603 = vmatprep.subr.mxu0 %v802
    %1604 = vmatpush1.msra.mxu0 %v801
    %1605 = vmatprep.subr.mxu0 %v810
    %1606 = vmatpush1.msra.mxu0 %v809
    %1607 = vmatprep.subr.mxu0 %v818
    %1608 = vmatpush1.msra.mxu0 %v817
    %1609 = vmatprep.subr.mxu0 %v826
    %1610 = vmatpush1.msra.mxu0 %v825
    %1611 = vmatprep.subr.mxu0 %v834
    %1612 = vmatpush1.msra.mxu0 %v833
    %1613 = vmatprep.subr.mxu0 %v842
    %1614 = vmatpush1.msra.mxu0 %v841
    %1615 = vmatprep.subr.mxu0 %v850
    %1616 = vmatpush1.msra.mxu0 %v849
    %1617 = vmatprep.subr.mxu0 %v858
    %1618 = vmatpush1.msra.mxu0 %v857
    %1619 = vmatprep.subr.mxu0 %v866
    %1620 = vmatpush1.msra.mxu0 %v865
    %1621 = vmatprep.subr.mxu0 %v874
    %1622 = vmatpush1.msra.mxu0 %v873
    %1623 = vmatprep.subr.mxu0 %v882
    %1624 = vmatpush1.msra.mxu0 %v881
    %1625 = vmatprep.subr.mxu0 %v890
    %1626 = vmatpush1.msra.mxu0 %v889
    %1627 = vmatprep.mubr.f32.mxu0 %v1333
    %1628 = vmatmul.mubr.f32.gmra.mrb[0].mxu0 %v1332
    %v1629 = vpop.f32.mrb[0].mxu0
    %v1630 = vadd.f32 %v1340, %v1629
    %v1631 = vpop.f32.mrb[0].mxu0
    %v1632 = vadd.f32 %v1341, %v1631
    %1633 = vdwg.mxu0
    %v1634 = vxor.u32 %v1417, 2147483648
    %v1635 = vxor.u32 %v1419, 2147483648
    %v1636 = vxor.u32 %v1488, 2147483648
    %v1637 = vxor.u32 %v1490, 2147483648
    %v1638 = vxor.u32 %v1559, 2147483648
    %v1639 = vxor.u32 %v1561, 2147483648
    %v1640 = vxor.u32 %v1630, 2147483648
    %v1641 = vxor.u32 %v1632, 2147483648
    %v1642 = vmul.f32 %v1634, 1.442695
    %v1643 = vpow.pop %v1642
    %v1644 = vmul.f32 %v1635, 1.442695
    %v1645 = vpow.pop %v1644
    %v1646 = vmul.f32 %v1636, 1.442695
    %v1647 = vpow.pop %v1646
    %v1648 = vmul.f32 %v1637, 1.442695
    %v1649 = vpow.pop %v1648
    %v1650 = vmul.f32 %v1638, 1.442695
    %v1651 = vpow.pop %v1650
    %v1652 = vmul.f32 %v1639, 1.442695
    %v1653 = vpow.pop %v1652
    %v1654 = vmul.f32 %v1640, 1.442695
    %v1655 = vpow.pop %v1654
    %v1656 = vmul.f32 %v1641, 1.442695
    %v1657 = vpow.pop %v1656
    %v1658 = vadd.f32 %v1643, 1.0
    %v1659 = vadd.f32 %v1645, 1.0
    %v1660 = vadd.f32 %v1647, 1.0
    %v1661 = vadd.f32 %v1649, 1.0
    %v1662 = vadd.f32 %v1651, 1.0
    %v1663 = vadd.f32 %v1653, 1.0
    %v1664 = vadd.f32 %v1655, 1.0
    %v1665 = vadd.f32 %v1657, 1.0
    %v1666 = vrcp.pop %v1658
    %v1667 = vmul.f32 1.0, %v1666
    %v1668 = vrcp.pop %v1659
    %v1669 = vmul.f32 1.0, %v1668
    %v1670 = vrcp.pop %v1660
    %v1671 = vmul.f32 1.0, %v1670
    %v1672 = vrcp.pop %v1661
    %v1673 = vmul.f32 1.0, %v1672
    %v1674 = vrcp.pop %v1662
    %v1675 = vmul.f32 1.0, %v1674
    %v1676 = vrcp.pop %v1663
    %v1677 = vmul.f32 1.0, %v1676
    %v1678 = vrcp.pop %v1664
    %v1679 = vmul.f32 1.0, %v1678
    %v1680 = vrcp.pop %v1665
    %v1681 = vmul.f32 1.0, %v1680
    %v1682 = vmul.f32 %v1671, 2.0
    %v1683 = vsub.f32 %v1682, 1.0
    %v1684 = vmul.f32 %v1679, 2.0
    %v1685 = vsub.f32 %v1684, 1.0
    %v1686 = vmul.f32 %v1669, %v1310
    %v1687 = vmul.f32 %v1667, %v1683
    %v1688 = vadd.f32 %v1686, %v1687
    %v1689 = vmul.f32 %v1677, %v1313
    %v1690 = vmul.f32 %v1675, %v1685
    %v1691 = vadd.f32 %v1689, %v1690
    %v1692 = vmul.f32 %v1688, 2.0
    %v1693 = vmul.f32 %v1691, 2.0
    %v1694 = vxor.u32 %v1692, 2147483648
    %v1695 = vxor.u32 %v1693, 2147483648
    %v1696 = vmul.f32 %v1694, 1.442695
    %v1697 = vpow.pop %v1696
    %v1698 = vmul.f32 %v1695, 1.442695
    %v1699 = vpow.pop %v1698
    %v1700 = vadd.f32 %v1697, 1.0
    %v1701 = vadd.f32 %v1699, 1.0
    %v1702 = vrcp.pop %v1700
    %v1703 = vmul.f32 1.0, %v1702
    %v1704 = vrcp.pop %v1701
    %v1705 = vmul.f32 1.0, %v1704
    %v1706 = vmul.f32 %v1703, 2.0
    %v1707 = vmul.f32 %v1705, 2.0
    %v1708 = vsub.f32 %v1706, 1.0
    %v1709 = vsub.f32 %v1707, 1.0
    %v1710 = vmul.f32 %v1673, %v1708
    %v1711 = vmul.f32 %v1681, %v1709
    %v1712 = vrot.slane %v544, 6
    %v1713 = vrot.slane %v546, 6
    %v1714 = vrot.slane %v621, 6
    %v1715 = vrot.slane %v623, 6
    %v1716 = vrot.slane %v896, 6
    %v1717 = vrot.slane %v900, 6
    %v1718 = vrot.slane %v904, 6
    %v1719 = vrot.slane %v908, 6
    %1728 = vmatprep.subr.mxu0 %v636
    %1729 = vmatpush1.msra.mxu0 %v635
    %1730 = vmatprep.subr.mxu0 %v644
    %1731 = vmatpush1.msra.mxu0 %v643
    %1732 = vmatprep.subr.mxu0 %v652
    %1733 = vmatpush1.msra.mxu0 %v651
    %1734 = vmatprep.subr.mxu0 %v660
    %1735 = vmatpush1.msra.mxu0 %v659
    %1736 = vmatprep.subr.mxu0 %v668
    %1737 = vmatpush1.msra.mxu0 %v667
    %1738 = vmatprep.subr.mxu0 %v676
    %1739 = vmatpush1.msra.mxu0 %v675
    %1740 = vmatprep.subr.mxu0 %v684
    %1741 = vmatpush1.msra.mxu0 %v683
    %1742 = vmatprep.subr.mxu0 %v692
    %1743 = vmatpush1.msra.mxu0 %v691
    %1744 = vmatprep.subr.mxu0 %v700
    %1745 = vmatpush1.msra.mxu0 %v699
    %1746 = vmatprep.subr.mxu0 %v708
    %1747 = vmatpush1.msra.mxu0 %v707
    %1748 = vmatprep.subr.mxu0 %v716
    %1749 = vmatpush1.msra.mxu0 %v715
    %1750 = vmatprep.subr.mxu0 %v724
    %1751 = vmatpush1.msra.mxu0 %v723
    %1752 = vmatprep.subr.mxu0 %v732
    %1753 = vmatpush1.msra.mxu0 %v731
    %1754 = vmatprep.subr.mxu0 %v740
    %1755 = vmatpush1.msra.mxu0 %v739
    %1756 = vmatprep.subr.mxu0 %v748
    %1757 = vmatpush1.msra.mxu0 %v747
    %1758 = vmatprep.subr.mxu0 %v756
    %1759 = vmatpush1.msra.mxu0 %v755
    %1760 = vmatprep.subr.mxu0 %v764
    %1761 = vmatpush1.msra.mxu0 %v763
    %1762 = vmatprep.subr.mxu0 %v772
    %1763 = vmatpush1.msra.mxu0 %v771
    %1764 = vmatprep.subr.mxu0 %v780
    %1765 = vmatpush1.msra.mxu0 %v779
    %1766 = vmatprep.subr.mxu0 %v788
    %1767 = vmatpush1.msra.mxu0 %v787
    %1768 = vmatprep.subr.mxu0 %v796
    %1769 = vmatpush1.msra.mxu0 %v795
    %1770 = vmatprep.subr.mxu0 %v804
    %1771 = vmatpush1.msra.mxu0 %v803
    %1772 = vmatprep.subr.mxu0 %v812
    %1773 = vmatpush1.msra.mxu0 %v811
    %1774 = vmatprep.subr.mxu0 %v820
    %1775 = vmatpush1.msra.mxu0 %v819
    %1776 = vmatprep.subr.mxu0 %v828
    %1777 = vmatpush1.msra.mxu0 %v827
    %1778 = vmatprep.subr.mxu0 %v836
    %1779 = vmatpush1.msra.mxu0 %v835
    %1780 = vmatprep.subr.mxu0 %v844
    %1781 = vmatpush1.msra.mxu0 %v843
    %1782 = vmatprep.subr.mxu0 %v852
    %1783 = vmatpush1.msra.mxu0 %v851
    %1784 = vmatprep.subr.mxu0 %v860
    %1785 = vmatpush1.msra.mxu0 %v859
    %1786 = vmatprep.subr.mxu0 %v868
    %1787 = vmatpush1.msra.mxu0 %v867
    %1788 = vmatprep.subr.mxu0 %v876
    %1789 = vmatpush1.msra.mxu0 %v875
    %1790 = vmatprep.subr.mxu0 %v884
    %1791 = vmatpush1.msra.mxu0 %v883
    %1792 = vmatprep.mubr.f32.mxu0 %v1711
    %1793 = vmatmul.mubr.f32.gmra.mrb[0].mxu0 %v1710
    %v1794 = vpop.f32.mrb[0].mxu0
    %v1795 = vadd.f32 %v1712, %v1794
    %v1796 = vpop.f32.mrb[0].mxu0
    %v1797 = vadd.f32 %v1713, %v1796
    %1798 = vdwg.mxu0
    %1799 = vmatprep.subr.mxu0 %v638
    %1800 = vmatpush1.msra.mxu0 %v637
    %1801 = vmatprep.subr.mxu0 %v646
    %1802 = vmatpush1.msra.mxu0 %v645
    %1803 = vmatprep.subr.mxu0 %v654
    %1804 = vmatpush1.msra.mxu0 %v653
    %1805 = vmatprep.subr.mxu0 %v662
    %1806 = vmatpush1.msra.mxu0 %v661
    %1807 = vmatprep.subr.mxu0 %v670
    %1808 = vmatpush1.msra.mxu0 %v669
    %1809 = vmatprep.subr.mxu0 %v678
    %1810 = vmatpush1.msra.mxu0 %v677
    %1811 = vmatprep.subr.mxu0 %v686
    %1812 = vmatpush1.msra.mxu0 %v685
    %1813 = vmatprep.subr.mxu0 %v694
    %1814 = vmatpush1.msra.mxu0 %v693
    %1815 = vmatprep.subr.mxu0 %v702
    %1816 = vmatpush1.msra.mxu0 %v701
    %1817 = vmatprep.subr.mxu0 %v710
    %1818 = vmatpush1.msra.mxu0 %v709
    %1819 = vmatprep.subr.mxu0 %v718
    %1820 = vmatpush1.msra.mxu0 %v717
    %1821 = vmatprep.subr.mxu0 %v726
    %1822 = vmatpush1.msra.mxu0 %v725
    %1823 = vmatprep.subr.mxu0 %v734
    %1824 = vmatpush1.msra.mxu0 %v733
    %1825 = vmatprep.subr.mxu0 %v742
    %1826 = vmatpush1.msra.mxu0 %v741
    %1827 = vmatprep.subr.mxu0 %v750
    %1828 = vmatpush1.msra.mxu0 %v749
    %1829 = vmatprep.subr.mxu0 %v758
    %1830 = vmatpush1.msra.mxu0 %v757
    %1831 = vmatprep.subr.mxu0 %v766
    %1832 = vmatpush1.msra.mxu0 %v765
    %1833 = vmatprep.subr.mxu0 %v774
    %1834 = vmatpush1.msra.mxu0 %v773
    %1835 = vmatprep.subr.mxu0 %v782
    %1836 = vmatpush1.msra.mxu0 %v781
    %1837 = vmatprep.subr.mxu0 %v790
    %1838 = vmatpush1.msra.mxu0 %v789
    %1839 = vmatprep.subr.mxu0 %v798
    %1840 = vmatpush1.msra.mxu0 %v797
    %1841 = vmatprep.subr.mxu0 %v806
    %1842 = vmatpush1.msra.mxu0 %v805
    %1843 = vmatprep.subr.mxu0 %v814
    %1844 = vmatpush1.msra.mxu0 %v813
    %1845 = vmatprep.subr.mxu0 %v822
    %1846 = vmatpush1.msra.mxu0 %v821
    %1847 = vmatprep.subr.mxu0 %v830
    %1848 = vmatpush1.msra.mxu0 %v829
    %1849 = vmatprep.subr.mxu0 %v838
    %1850 = vmatpush1.msra.mxu0 %v837
    %1851 = vmatprep.subr.mxu0 %v846
    %1852 = vmatpush1.msra.mxu0 %v845
    %1853 = vmatprep.subr.mxu0 %v854
    %1854 = vmatpush1.msra.mxu0 %v853
    %1855 = vmatprep.subr.mxu0 %v862
    %1856 = vmatpush1.msra.mxu0 %v861
    %1857 = vmatprep.subr.mxu0 %v870
    %1858 = vmatpush1.msra.mxu0 %v869
    %1859 = vmatprep.subr.mxu0 %v878
    %1860 = vmatpush1.msra.mxu0 %v877
    %1861 = vmatprep.subr.mxu0 %v886
    %1862 = vmatpush1.msra.mxu0 %v885
    %1863 = vmatprep.mubr.f32.mxu0 %v1711
    %1864 = vmatmul.mubr.f32.gmra.mrb[0].mxu0 %v1710
    %v1865 = vpop.f32.mrb[0].mxu0
    %v1866 = vadd.f32 %v1714, %v1865
    %v1867 = vpop.f32.mrb[0].mxu0
    %v1868 = vadd.f32 %v1715, %v1867
    %1869 = vdwg.mxu0
    %1870 = vmatprep.subr.mxu0 %v640
    %1871 = vmatpush1.msra.mxu0 %v639
    %1872 = vmatprep.subr.mxu0 %v648
    %1873 = vmatpush1.msra.mxu0 %v647
    %1874 = vmatprep.subr.mxu0 %v656
    %1875 = vmatpush1.msra.mxu0 %v655
    %1876 = vmatprep.subr.mxu0 %v664
    %1877 = vmatpush1.msra.mxu0 %v663
    %1878 = vmatprep.subr.mxu0 %v672
    %1879 = vmatpush1.msra.mxu0 %v671
    %1880 = vmatprep.subr.mxu0 %v680
    %1881 = vmatpush1.msra.mxu0 %v679
    %1882 = vmatprep.subr.mxu0 %v688
    %1883 = vmatpush1.msra.mxu0 %v687
    %1884 = vmatprep.subr.mxu0 %v696
    %1885 = vmatpush1.msra.mxu0 %v695
    %1886 = vmatprep.subr.mxu0 %v704
    %1887 = vmatpush1.msra.mxu0 %v703
    %1888 = vmatprep.subr.mxu0 %v712
    %1889 = vmatpush1.msra.mxu0 %v711
    %1890 = vmatprep.subr.mxu0 %v720
    %1891 = vmatpush1.msra.mxu0 %v719
    %1892 = vmatprep.subr.mxu0 %v728
    %1893 = vmatpush1.msra.mxu0 %v727
    %1894 = vmatprep.subr.mxu0 %v736
    %1895 = vmatpush1.msra.mxu0 %v735
    %1896 = vmatprep.subr.mxu0 %v744
    %1897 = vmatpush1.msra.mxu0 %v743
    %1898 = vmatprep.subr.mxu0 %v752
    %1899 = vmatpush1.msra.mxu0 %v751
    %1900 = vmatprep.subr.mxu0 %v760
    %1901 = vmatpush1.msra.mxu0 %v759
    %1902 = vmatprep.subr.mxu0 %v768
    %1903 = vmatpush1.msra.mxu0 %v767
    %1904 = vmatprep.subr.mxu0 %v776
    %1905 = vmatpush1.msra.mxu0 %v775
    %1906 = vmatprep.subr.mxu0 %v784
    %1907 = vmatpush1.msra.mxu0 %v783
    %1908 = vmatprep.subr.mxu0 %v792
    %1909 = vmatpush1.msra.mxu0 %v791
    %1910 = vmatprep.subr.mxu0 %v800
    %1911 = vmatpush1.msra.mxu0 %v799
    %1912 = vmatprep.subr.mxu0 %v808
    %1913 = vmatpush1.msra.mxu0 %v807
    %1914 = vmatprep.subr.mxu0 %v816
    %1915 = vmatpush1.msra.mxu0 %v815
    %1916 = vmatprep.subr.mxu0 %v824
    %1917 = vmatpush1.msra.mxu0 %v823
    %1918 = vmatprep.subr.mxu0 %v832
    %1919 = vmatpush1.msra.mxu0 %v831
    %1920 = vmatprep.subr.mxu0 %v840
    %1921 = vmatpush1.msra.mxu0 %v839
    %1922 = vmatprep.subr.mxu0 %v848
    %1923 = vmatpush1.msra.mxu0 %v847
    %1924 = vmatprep.subr.mxu0 %v856
    %1925 = vmatpush1.msra.mxu0 %v855
    %1926 = vmatprep.subr.mxu0 %v864
    %1927 = vmatpush1.msra.mxu0 %v863
    %1928 = vmatprep.subr.mxu0 %v872
    %1929 = vmatpush1.msra.mxu0 %v871
    %1930 = vmatprep.subr.mxu0 %v880
    %1931 = vmatpush1.msra.mxu0 %v879
    %1932 = vmatprep.subr.mxu0 %v888
    %1933 = vmatpush1.msra.mxu0 %v887
    %1934 = vmatprep.mubr.f32.mxu0 %v1711
    %1935 = vmatmul.mubr.f32.gmra.mrb[0].mxu0 %v1710
    %v1936 = vpop.f32.mrb[0].mxu0
    %v1937 = vadd.f32 %v1716, %v1936
    %v1938 = vpop.f32.mrb[0].mxu0
    %v1939 = vadd.f32 %v1717, %v1938
    %1940 = vdwg.mxu0
    %1941 = vmatprep.subr.mxu0 %v642
    %1942 = vmatpush1.msra.mxu0 %v641
    %1943 = vmatprep.subr.mxu0 %v650
    %1944 = vmatpush1.msra.mxu0 %v649
    %1945 = vmatprep.subr.mxu0 %v658
    %1946 = vmatpush1.msra.mxu0 %v657
    %1947 = vmatprep.subr.mxu0 %v666
    %1948 = vmatpush1.msra.mxu0 %v665
    %1949 = vmatprep.subr.mxu0 %v674
    %1950 = vmatpush1.msra.mxu0 %v673
    %1951 = vmatprep.subr.mxu0 %v682
    %1952 = vmatpush1.msra.mxu0 %v681
    %1953 = vmatprep.subr.mxu0 %v690
    %1954 = vmatpush1.msra.mxu0 %v689
    %1955 = vmatprep.subr.mxu0 %v698
    %1956 = vmatpush1.msra.mxu0 %v697
    %1957 = vmatprep.subr.mxu0 %v706
    %1958 = vmatpush1.msra.mxu0 %v705
    %1959 = vmatprep.subr.mxu0 %v714
    %1960 = vmatpush1.msra.mxu0 %v713
    %1961 = vmatprep.subr.mxu0 %v722
    %1962 = vmatpush1.msra.mxu0 %v721
    %1963 = vmatprep.subr.mxu0 %v730
    %1964 = vmatpush1.msra.mxu0 %v729
    %1965 = vmatprep.subr.mxu0 %v738
    %1966 = vmatpush1.msra.mxu0 %v737
    %1967 = vmatprep.subr.mxu0 %v746
    %1968 = vmatpush1.msra.mxu0 %v745
    %1969 = vmatprep.subr.mxu0 %v754
    %1970 = vmatpush1.msra.mxu0 %v753
    %1971 = vmatprep.subr.mxu0 %v762
    %1972 = vmatpush1.msra.mxu0 %v761
    %1973 = vmatprep.subr.mxu0 %v770
    %1974 = vmatpush1.msra.mxu0 %v769
    %1975 = vmatprep.subr.mxu0 %v778
    %1976 = vmatpush1.msra.mxu0 %v777
    %1977 = vmatprep.subr.mxu0 %v786
    %1978 = vmatpush1.msra.mxu0 %v785
    %1979 = vmatprep.subr.mxu0 %v794
    %1980 = vmatpush1.msra.mxu0 %v793
    %1981 = vmatprep.subr.mxu0 %v802
    %1982 = vmatpush1.msra.mxu0 %v801
    %1983 = vmatprep.subr.mxu0 %v810
    %1984 = vmatpush1.msra.mxu0 %v809
    %1985 = vmatprep.subr.mxu0 %v818
    %1986 = vmatpush1.msra.mxu0 %v817
    %1987 = vmatprep.subr.mxu0 %v826
    %1988 = vmatpush1.msra.mxu0 %v825
    %1989 = vmatprep.subr.mxu0 %v834
    %1990 = vmatpush1.msra.mxu0 %v833
    %1991 = vmatprep.subr.mxu0 %v842
    %1992 = vmatpush1.msra.mxu0 %v841
    %1993 = vmatprep.subr.mxu0 %v850
    %1994 = vmatpush1.msra.mxu0 %v849
    %1995 = vmatprep.subr.mxu0 %v858
    %1996 = vmatpush1.msra.mxu0 %v857
    %1997 = vmatprep.subr.mxu0 %v866
    %1998 = vmatpush1.msra.mxu0 %v865
    %1999 = vmatprep.subr.mxu0 %v874
    %2000 = vmatpush1.msra.mxu0 %v873
    %2001 = vmatprep.subr.mxu0 %v882
    %2002 = vmatpush1.msra.mxu0 %v881
    %2003 = vmatprep.subr.mxu0 %v890
    %2004 = vmatpush1.msra.mxu0 %v889
    %2005 = vmatprep.mubr.f32.mxu0 %v1711
    %2006 = vmatmul.mubr.f32.gmra.mrb[0].mxu0 %v1710
    %v2007 = vpop.f32.mrb[0].mxu0
    %v2008 = vadd.f32 %v1718, %v2007
    %v2009 = vpop.f32.mrb[0].mxu0
    %v2010 = vadd.f32 %v1719, %v2009
    %2011 = vdwg.mxu0
    %v2012 = vxor.u32 %v1795, 2147483648
    %v2013 = vxor.u32 %v1797, 2147483648
    %v2014 = vxor.u32 %v1866, 2147483648
    %v2015 = vxor.u32 %v1868, 2147483648
    %v2016 = vxor.u32 %v1937, 2147483648
    %v2017 = vxor.u32 %v1939, 2147483648
    %v2018 = vxor.u32 %v2008, 2147483648
    %v2019 = vxor.u32 %v2010, 2147483648
    %v2020 = vmul.f32 %v2012, 1.442695
    %v2021 = vpow.pop %v2020
    %v2022 = vmul.f32 %v2013, 1.442695
    %v2023 = vpow.pop %v2022
    %v2024 = vmul.f32 %v2014, 1.442695
    %v2025 = vpow.pop %v2024
    %v2026 = vmul.f32 %v2015, 1.442695
    %v2027 = vpow.pop %v2026
    %v2028 = vmul.f32 %v2016, 1.442695
    %v2029 = vpow.pop %v2028
    %v2030 = vmul.f32 %v2017, 1.442695
    %v2031 = vpow.pop %v2030
    %v2032 = vmul.f32 %v2018, 1.442695
    %v2033 = vpow.pop %v2032
    %v2034 = vmul.f32 %v2019, 1.442695
    %v2035 = vpow.pop %v2034
    %v2036 = vadd.f32 %v2021, 1.0
    %v2037 = vadd.f32 %v2023, 1.0
    %v2038 = vadd.f32 %v2025, 1.0
    %v2039 = vadd.f32 %v2027, 1.0
    %v2040 = vadd.f32 %v2029, 1.0
    %v2041 = vadd.f32 %v2031, 1.0
    %v2042 = vadd.f32 %v2033, 1.0
    %v2043 = vadd.f32 %v2035, 1.0
    %v2044 = vrcp.pop %v2036
    %v2045 = vmul.f32 1.0, %v2044
    %v2046 = vrcp.pop %v2037
    %v2047 = vmul.f32 1.0, %v2046
    %v2048 = vrcp.pop %v2038
    %v2049 = vmul.f32 1.0, %v2048
    %v2050 = vrcp.pop %v2039
    %v2051 = vmul.f32 1.0, %v2050
    %v2052 = vrcp.pop %v2040
    %v2053 = vmul.f32 1.0, %v2052
    %v2054 = vrcp.pop %v2041
    %v2055 = vmul.f32 1.0, %v2054
    %v2056 = vrcp.pop %v2042
    %v2057 = vmul.f32 1.0, %v2056
    %v2058 = vrcp.pop %v2043
    %v2059 = vmul.f32 1.0, %v2058
    %v2060 = vmul.f32 %v2049, 2.0
    %v2061 = vsub.f32 %v2060, 1.0
    %v2062 = vmul.f32 %v2057, 2.0
    %v2063 = vsub.f32 %v2062, 1.0
    %v2064 = vmul.f32 %v2047, %v1688
    %v2065 = vmul.f32 %v2045, %v2061
    %v2066 = vadd.f32 %v2064, %v2065
    %v2067 = vmul.f32 %v2055, %v1691
    %v2068 = vmul.f32 %v2053, %v2063
    %v2069 = vadd.f32 %v2067, %v2068
    %v2070 = vmul.f32 %v2066, 2.0
    %v2071 = vmul.f32 %v2069, 2.0
    %v2072 = vxor.u32 %v2070, 2147483648
    %v2073 = vxor.u32 %v2071, 2147483648
    %v2074 = vmul.f32 %v2072, 1.442695
    %v2075 = vpow.pop %v2074
    %v2076 = vmul.f32 %v2073, 1.442695
    %v2077 = vpow.pop %v2076
    %v2078 = vadd.f32 %v2075, 1.0
    %v2079 = vadd.f32 %v2077, 1.0
    %v2080 = vrcp.pop %v2078
    %v2081 = vmul.f32 1.0, %v2080
    %v2082 = vrcp.pop %v2079
    %v2083 = vmul.f32 1.0, %v2082
    %v2084 = vmul.f32 %v2081, 2.0
    %v2085 = vmul.f32 %v2083, 2.0
    %v2086 = vsub.f32 %v2084, 1.0
    %v2087 = vsub.f32 %v2085, 1.0
    %v2088 = vmul.f32 %v2051, %v2086
    %v2089 = vmul.f32 %v2059, %v2087
    %2090 = vmatprep.subr.mxu0 %v636
    %2091 = vmatpush1.msra.mxu0 %v635
    %2092 = vmatprep.subr.mxu0 %v644
    %2093 = vmatpush1.msra.mxu0 %v643
    %2094 = vmatprep.subr.mxu0 %v652
    %2095 = vmatpush1.msra.mxu0 %v651
    %2096 = vmatprep.subr.mxu0 %v660
    %2097 = vmatpush1.msra.mxu0 %v659
    %2098 = vmatprep.subr.mxu0 %v668
    %2099 = vmatpush1.msra.mxu0 %v667
    %2100 = vmatprep.subr.mxu0 %v676
    %2101 = vmatpush1.msra.mxu0 %v675
    %2102 = vmatprep.subr.mxu0 %v684
    %2103 = vmatpush1.msra.mxu0 %v683
    %2104 = vmatprep.subr.mxu0 %v692
    %2105 = vmatpush1.msra.mxu0 %v691
    %2106 = vmatprep.subr.mxu0 %v700
    %2107 = vmatpush1.msra.mxu0 %v699
    %2108 = vmatprep.subr.mxu0 %v708
    %2109 = vmatpush1.msra.mxu0 %v707
    %2110 = vmatprep.subr.mxu0 %v716
    %2111 = vmatpush1.msra.mxu0 %v715
    %2112 = vmatprep.subr.mxu0 %v724
    %2113 = vmatpush1.msra.mxu0 %v723
    %2114 = vmatprep.subr.mxu0 %v732
    %2115 = vmatpush1.msra.mxu0 %v731
    %2116 = vmatprep.subr.mxu0 %v740
    %2117 = vmatpush1.msra.mxu0 %v739
    %2118 = vmatprep.subr.mxu0 %v748
    %2119 = vmatpush1.msra.mxu0 %v747
    %2120 = vmatprep.subr.mxu0 %v756
    %2121 = vmatpush1.msra.mxu0 %v755
    %2122 = vmatprep.subr.mxu0 %v764
    %2123 = vmatpush1.msra.mxu0 %v763
    %2124 = vmatprep.subr.mxu0 %v772
    %2125 = vmatpush1.msra.mxu0 %v771
    %2126 = vmatprep.subr.mxu0 %v780
    %2127 = vmatpush1.msra.mxu0 %v779
    %2128 = vmatprep.subr.mxu0 %v788
    %2129 = vmatpush1.msra.mxu0 %v787
    %2130 = vmatprep.subr.mxu0 %v796
    %2131 = vmatpush1.msra.mxu0 %v795
    %2132 = vmatprep.subr.mxu0 %v804
    %2133 = vmatpush1.msra.mxu0 %v803
    %2134 = vmatprep.subr.mxu0 %v812
    %2135 = vmatpush1.msra.mxu0 %v811
    %2136 = vmatprep.subr.mxu0 %v820
    %2137 = vmatpush1.msra.mxu0 %v819
    %2138 = vmatprep.subr.mxu0 %v828
    %2139 = vmatpush1.msra.mxu0 %v827
    %2140 = vmatprep.subr.mxu0 %v836
    %2141 = vmatpush1.msra.mxu0 %v835
    %2142 = vmatprep.subr.mxu0 %v844
    %2143 = vmatpush1.msra.mxu0 %v843
    %2144 = vmatprep.subr.mxu0 %v852
    %2145 = vmatpush1.msra.mxu0 %v851
    %2146 = vmatprep.subr.mxu0 %v860
    %2147 = vmatpush1.msra.mxu0 %v859
    %2148 = vmatprep.subr.mxu0 %v868
    %2149 = vmatpush1.msra.mxu0 %v867
    %2150 = vmatprep.subr.mxu0 %v876
    %2151 = vmatpush1.msra.mxu0 %v875
    %2152 = vmatprep.subr.mxu0 %v884
    %2153 = vmatpush1.msra.mxu0 %v883
    %2154 = vmatprep.mubr.f32.mxu0 %v2089
    %2155 = vmatmul.mubr.f32.gmra.mrb[0].mxu0 %v2088
    %v2156 = vpop.f32.mrb[0].mxu0
    %v2157 = vadd.f32 %v550, %v2156
    %v2158 = vpop.f32.mrb[0].mxu0
    %v2159 = vadd.f32 %v552, %v2158
    %2160 = vdwg.mxu0
    %2161 = vmatprep.subr.mxu0 %v638
    %2162 = vmatpush1.msra.mxu0 %v637
    %2163 = vmatprep.subr.mxu0 %v646
    %2164 = vmatpush1.msra.mxu0 %v645
    %2165 = vmatprep.subr.mxu0 %v654
    %2166 = vmatpush1.msra.mxu0 %v653
    %2167 = vmatprep.subr.mxu0 %v662
    %2168 = vmatpush1.msra.mxu0 %v661
    %2169 = vmatprep.subr.mxu0 %v670
    %2170 = vmatpush1.msra.mxu0 %v669
    %2171 = vmatprep.subr.mxu0 %v678
    %2172 = vmatpush1.msra.mxu0 %v677
    %2173 = vmatprep.subr.mxu0 %v686
    %2174 = vmatpush1.msra.mxu0 %v685
    %2175 = vmatprep.subr.mxu0 %v694
    %2176 = vmatpush1.msra.mxu0 %v693
    %2177 = vmatprep.subr.mxu0 %v702
    %2178 = vmatpush1.msra.mxu0 %v701
    %2179 = vmatprep.subr.mxu0 %v710
    %2180 = vmatpush1.msra.mxu0 %v709
    %2181 = vmatprep.subr.mxu0 %v718
    %2182 = vmatpush1.msra.mxu0 %v717
    %2183 = vmatprep.subr.mxu0 %v726
    %2184 = vmatpush1.msra.mxu0 %v725
    %2185 = vmatprep.subr.mxu0 %v734
    %2186 = vmatpush1.msra.mxu0 %v733
    %2187 = vmatprep.subr.mxu0 %v742
    %2188 = vmatpush1.msra.mxu0 %v741
    %2189 = vmatprep.subr.mxu0 %v750
    %2190 = vmatpush1.msra.mxu0 %v749
    %2191 = vmatprep.subr.mxu0 %v758
    %2192 = vmatpush1.msra.mxu0 %v757
    %2193 = vmatprep.subr.mxu0 %v766
    %2194 = vmatpush1.msra.mxu0 %v765
    %2195 = vmatprep.subr.mxu0 %v774
    %2196 = vmatpush1.msra.mxu0 %v773
    %2197 = vmatprep.subr.mxu0 %v782
    %2198 = vmatpush1.msra.mxu0 %v781
    %2199 = vmatprep.subr.mxu0 %v790
    %2200 = vmatpush1.msra.mxu0 %v789
    %2201 = vmatprep.subr.mxu0 %v798
    %2202 = vmatpush1.msra.mxu0 %v797
    %2203 = vmatprep.subr.mxu0 %v806
    %2204 = vmatpush1.msra.mxu0 %v805
    %2205 = vmatprep.subr.mxu0 %v814
    %2206 = vmatpush1.msra.mxu0 %v813
    %2207 = vmatprep.subr.mxu0 %v822
    %2208 = vmatpush1.msra.mxu0 %v821
    %2209 = vmatprep.subr.mxu0 %v830
    %2210 = vmatpush1.msra.mxu0 %v829
    %2211 = vmatprep.subr.mxu0 %v838
    %2212 = vmatpush1.msra.mxu0 %v837
    %2213 = vmatprep.subr.mxu0 %v846
    %2214 = vmatpush1.msra.mxu0 %v845
    %2215 = vmatprep.subr.mxu0 %v854
    %2216 = vmatpush1.msra.mxu0 %v853
    %2217 = vmatprep.subr.mxu0 %v862
    %2218 = vmatpush1.msra.mxu0 %v861
    %2219 = vmatprep.subr.mxu0 %v870
    %2220 = vmatpush1.msra.mxu0 %v869
    %2221 = vmatprep.subr.mxu0 %v878
    %2222 = vmatpush1.msra.mxu0 %v877
    %2223 = vmatprep.subr.mxu0 %v886
    %2224 = vmatpush1.msra.mxu0 %v885
    %2225 = vmatprep.mubr.f32.mxu0 %v2089
    %2226 = vmatmul.mubr.f32.gmra.mrb[0].mxu0 %v2088
    %v2227 = vpop.f32.mrb[0].mxu0
    %v2228 = vadd.f32 %v627, %v2227
    %v2229 = vpop.f32.mrb[0].mxu0
    %v2230 = vadd.f32 %v629, %v2229
    %2231 = vdwg.mxu0
    %2232 = vmatprep.subr.mxu0 %v640
    %2233 = vmatpush1.msra.mxu0 %v639
    %2234 = vmatprep.subr.mxu0 %v648
    %2235 = vmatpush1.msra.mxu0 %v647
    %2236 = vmatprep.subr.mxu0 %v656
    %2237 = vmatpush1.msra.mxu0 %v655
    %2238 = vmatprep.subr.mxu0 %v664
    %2239 = vmatpush1.msra.mxu0 %v663
    %2240 = vmatprep.subr.mxu0 %v672
    %2241 = vmatpush1.msra.mxu0 %v671
    %2242 = vmatprep.subr.mxu0 %v680
    %2243 = vmatpush1.msra.mxu0 %v679
    %2244 = vmatprep.subr.mxu0 %v688
    %2245 = vmatpush1.msra.mxu0 %v687
    %2246 = vmatprep.subr.mxu0 %v696
    %2247 = vmatpush1.msra.mxu0 %v695
    %2248 = vmatprep.subr.mxu0 %v704
    %2249 = vmatpush1.msra.mxu0 %v703
    %2250 = vmatprep.subr.mxu0 %v712
    %2251 = vmatpush1.msra.mxu0 %v711
    %2252 = vmatprep.subr.mxu0 %v720
    %2253 = vmatpush1.msra.mxu0 %v719
    %2254 = vmatprep.subr.mxu0 %v728
    %2255 = vmatpush1.msra.mxu0 %v727
    %2256 = vmatprep.subr.mxu0 %v736
    %2257 = vmatpush1.msra.mxu0 %v735
    %2258 = vmatprep.subr.mxu0 %v744
    %2259 = vmatpush1.msra.mxu0 %v743
    %2260 = vmatprep.subr.mxu0 %v752
    %2261 = vmatpush1.msra.mxu0 %v751
    %2262 = vmatprep.subr.mxu0 %v760
    %2263 = vmatpush1.msra.mxu0 %v759
    %2264 = vmatprep.subr.mxu0 %v768
    %2265 = vmatpush1.msra.mxu0 %v767
    %2266 = vmatprep.subr.mxu0 %v776
    %2267 = vmatpush1.msra.mxu0 %v775
    %2268 = vmatprep.subr.mxu0 %v784
    %2269 = vmatpush1.msra.mxu0 %v783
    %2270 = vmatprep.subr.mxu0 %v792
    %2271 = vmatpush1.msra.mxu0 %v791
    %2272 = vmatprep.subr.mxu0 %v800
    %2273 = vmatpush1.msra.mxu0 %v799
    %2274 = vmatprep.subr.mxu0 %v808
    %2275 = vmatpush1.msra.mxu0 %v807
    %2276 = vmatprep.subr.mxu0 %v816
    %2277 = vmatpush1.msra.mxu0 %v815
    %2278 = vmatprep.subr.mxu0 %v824
    %2279 = vmatpush1.msra.mxu0 %v823
    %2280 = vmatprep.subr.mxu0 %v832
    %2281 = vmatpush1.msra.mxu0 %v831
    %2282 = vmatprep.subr.mxu0 %v840
    %2283 = vmatpush1.msra.mxu0 %v839
    %2284 = vmatprep.subr.mxu0 %v848
    %2285 = vmatpush1.msra.mxu0 %v847
    %2286 = vmatprep.subr.mxu0 %v856
    %2287 = vmatpush1.msra.mxu0 %v855
    %2288 = vmatprep.subr.mxu0 %v864
    %2289 = vmatpush1.msra.mxu0 %v863
    %2290 = vmatprep.subr.mxu0 %v872
    %2291 = vmatpush1.msra.mxu0 %v871
    %2292 = vmatprep.subr.mxu0 %v880
    %2293 = vmatpush1.msra.mxu0 %v879
    %2294 = vmatprep.subr.mxu0 %v888
    %2295 = vmatpush1.msra.mxu0 %v887
    %2296 = vmatprep.mubr.f32.mxu0 %v2089
    %2297 = vmatmul.mubr.f32.gmra.mrb[0].mxu0 %v2088
    %v2298 = vpop.f32.mrb[0].mxu0
    %v2299 = vadd.f32 %v896, %v2298
    %v2300 = vpop.f32.mrb[0].mxu0
    %v2301 = vadd.f32 %v900, %v2300
    %2302 = vdwg.mxu0
    %2303 = vmatprep.subr.mxu0 %v642
    %2304 = vmatpush1.msra.mxu0 %v641
    %2305 = vmatprep.subr.mxu0 %v650
    %2306 = vmatpush1.msra.mxu0 %v649
    %2307 = vmatprep.subr.mxu0 %v658
    %2308 = vmatpush1.msra.mxu0 %v657
    %2309 = vmatprep.subr.mxu0 %v666
    %2310 = vmatpush1.msra.mxu0 %v665
    %2311 = vmatprep.subr.mxu0 %v674
    %2312 = vmatpush1.msra.mxu0 %v673
    %2313 = vmatprep.subr.mxu0 %v682
    %2314 = vmatpush1.msra.mxu0 %v681
    %2315 = vmatprep.subr.mxu0 %v690
    %2316 = vmatpush1.msra.mxu0 %v689
    %2317 = vmatprep.subr.mxu0 %v698
    %2318 = vmatpush1.msra.mxu0 %v697
    %2319 = vmatprep.subr.mxu0 %v706
    %2320 = vmatpush1.msra.mxu0 %v705
    %2321 = vmatprep.subr.mxu0 %v714
    %2322 = vmatpush1.msra.mxu0 %v713
    %2323 = vmatprep.subr.mxu0 %v722
    %2324 = vmatpush1.msra.mxu0 %v721
    %2325 = vmatprep.subr.mxu0 %v730
    %2326 = vmatpush1.msra.mxu0 %v729
    %2327 = vmatprep.subr.mxu0 %v738
    %2328 = vmatpush1.msra.mxu0 %v737
    %2329 = vmatprep.subr.mxu0 %v746
    %2330 = vmatpush1.msra.mxu0 %v745
    %2331 = vmatprep.subr.mxu0 %v754
    %2332 = vmatpush1.msra.mxu0 %v753
    %2333 = vmatprep.subr.mxu0 %v762
    %2334 = vmatpush1.msra.mxu0 %v761
    %2335 = vmatprep.subr.mxu0 %v770
    %2336 = vmatpush1.msra.mxu0 %v769
    %2337 = vmatprep.subr.mxu0 %v778
    %2338 = vmatpush1.msra.mxu0 %v777
    %2339 = vmatprep.subr.mxu0 %v786
    %2340 = vmatpush1.msra.mxu0 %v785
    %2341 = vmatprep.subr.mxu0 %v794
    %2342 = vmatpush1.msra.mxu0 %v793
    %2343 = vmatprep.subr.mxu0 %v802
    %2344 = vmatpush1.msra.mxu0 %v801
    %2345 = vmatprep.subr.mxu0 %v810
    %2346 = vmatpush1.msra.mxu0 %v809
    %2347 = vmatprep.subr.mxu0 %v818
    %2348 = vmatpush1.msra.mxu0 %v817
    %2349 = vmatprep.subr.mxu0 %v826
    %2350 = vmatpush1.msra.mxu0 %v825
    %2351 = vmatprep.subr.mxu0 %v834
    %2352 = vmatpush1.msra.mxu0 %v833
    %2353 = vmatprep.subr.mxu0 %v842
    %2354 = vmatpush1.msra.mxu0 %v841
    %2355 = vmatprep.subr.mxu0 %v850
    %2356 = vmatpush1.msra.mxu0 %v849
    %2357 = vmatprep.subr.mxu0 %v858
    %2358 = vmatpush1.msra.mxu0 %v857
    %2359 = vmatprep.subr.mxu0 %v866
    %2360 = vmatpush1.msra.mxu0 %v865
    %2361 = vmatprep.subr.mxu0 %v874
    %2362 = vmatpush1.msra.mxu0 %v873
    %2363 = vmatprep.subr.mxu0 %v882
    %2364 = vmatpush1.msra.mxu0 %v881
    %2365 = vmatprep.subr.mxu0 %v890
    %2366 = vmatpush1.msra.mxu0 %v889
    %2367 = vmatprep.mubr.f32.mxu0 %v2089
    %2368 = vmatmul.mubr.f32.gmra.mrb[0].mxu0 %v2088
    %v2369 = vpop.f32.mrb[0].mxu0
    %v2370 = vadd.f32 %v904, %v2369
    %v2371 = vpop.f32.mrb[0].mxu0
    %v2372 = vadd.f32 %v908, %v2371
    %2373 = vdwg.mxu0
    %v2374 = vxor.u32 %v2157, 2147483648
    %v2375 = vxor.u32 %v2159, 2147483648
    %v2376 = vxor.u32 %v2228, 2147483648
    %v2377 = vxor.u32 %v2230, 2147483648
    %v2378 = vxor.u32 %v2299, 2147483648
    %v2379 = vxor.u32 %v2301, 2147483648
    %v2380 = vxor.u32 %v2370, 2147483648
    %v2381 = vxor.u32 %v2372, 2147483648
    %v2382 = vmul.f32 %v2374, 1.442695
    %v2383 = vpow.pop %v2382
    %v2384 = vmul.f32 %v2375, 1.442695
    %v2385 = vpow.pop %v2384
    %v2386 = vmul.f32 %v2376, 1.442695
    %v2387 = vpow.pop %v2386
    %v2388 = vmul.f32 %v2377, 1.442695
    %v2389 = vpow.pop %v2388
    %v2390 = vmul.f32 %v2378, 1.442695
    %v2391 = vpow.pop %v2390
    %v2392 = vmul.f32 %v2379, 1.442695
    %v2393 = vpow.pop %v2392
    %v2394 = vmul.f32 %v2380, 1.442695
    %v2395 = vpow.pop %v2394
    %v2396 = vmul.f32 %v2381, 1.442695
    %v2397 = vpow.pop %v2396
    %v2398 = vadd.f32 %v2383, 1.0
    %v2399 = vadd.f32 %v2385, 1.0
    %v2400 = vadd.f32 %v2387, 1.0
    %v2401 = vadd.f32 %v2389, 1.0
    %v2402 = vadd.f32 %v2391, 1.0
    %v2403 = vadd.f32 %v2393, 1.0
    %v2404 = vadd.f32 %v2395, 1.0
    %v2405 = vadd.f32 %v2397, 1.0
    %v2406 = vrcp.pop %v2398
    %v2407 = vmul.f32 1.0, %v2406
    %v2408 = vrcp.pop %v2399
    %v2409 = vmul.f32 1.0, %v2408
    %v2410 = vrcp.pop %v2400
    %v2411 = vmul.f32 1.0, %v2410
    %v2412 = vrcp.pop %v2401
    %v2413 = vmul.f32 1.0, %v2412
    %v2414 = vrcp.pop %v2402
    %v2415 = vmul.f32 1.0, %v2414
    %v2416 = vrcp.pop %v2403
    %v2417 = vmul.f32 1.0, %v2416
    %v2418 = vrcp.pop %v2404
    %v2419 = vmul.f32 1.0, %v2418
    %v2420 = vrcp.pop %v2405
    %v2421 = vmul.f32 1.0, %v2420
    %v2422 = vmul.f32 %v2411, 2.0
    %v2423 = vsub.f32 %v2422, 1.0
    %v2424 = vmul.f32 %v2419, 2.0
    %v2425 = vsub.f32 %v2424, 1.0
    %v2426 = vmul.f32 %v2409, %v2066
    %v2427 = vmul.f32 %v2407, %v2423
    %v2428 = vadd.f32 %v2426, %v2427
    %v2429 = vmul.f32 %v2417, %v2069
    %v2430 = vmul.f32 %v2415, %v2425
    %v2431 = vadd.f32 %v2429, %v2430
    %v2432 = vmul.f32 %v2428, 2.0
    %v2433 = vmul.f32 %v2431, 2.0
    %v2434 = vxor.u32 %v2432, 2147483648
    %v2435 = vxor.u32 %v2433, 2147483648
    %v2436 = vmul.f32 %v2434, 1.442695
    %v2437 = vpow.pop %v2436
    %v2438 = vmul.f32 %v2435, 1.442695
    %v2439 = vpow.pop %v2438
    %v2440 = vadd.f32 %v2437, 1.0
    %v2441 = vadd.f32 %v2439, 1.0
    %v2442 = vrcp.pop %v2440
    %v2443 = vmul.f32 1.0, %v2442
    %v2444 = vrcp.pop %v2441
    %v2445 = vmul.f32 1.0, %v2444
    %v2446 = vmul.f32 %v2443, 2.0
    %v2447 = vmul.f32 %v2445, 2.0
    %v2448 = vsub.f32 %v2446, 1.0
    %v2449 = vsub.f32 %v2447, 1.0
    %v2450 = vmul.f32 %v2413, %v2448
    %v2451 = vmul.f32 %v2421, %v2449
    %v2456 = vrot.slane %v550, 2
    %v2457 = vrot.slane %v552, 2
    %v2458 = vrot.slane %v627, 2
    %v2459 = vrot.slane %v629, 2
    %2464 = vmatprep.subr.mxu0 %v636
    %2465 = vmatpush1.msra.mxu0 %v635
    %2466 = vmatprep.subr.mxu0 %v644
    %2467 = vmatpush1.msra.mxu0 %v643
    %2468 = vmatprep.subr.mxu0 %v652
    %2469 = vmatpush1.msra.mxu0 %v651
    %2470 = vmatprep.subr.mxu0 %v660
    %2471 = vmatpush1.msra.mxu0 %v659
    %2472 = vmatprep.subr.mxu0 %v668
    %2473 = vmatpush1.msra.mxu0 %v667
    %2474 = vmatprep.subr.mxu0 %v676
    %2475 = vmatpush1.msra.mxu0 %v675
    %2476 = vmatprep.subr.mxu0 %v684
    %2477 = vmatpush1.msra.mxu0 %v683
    %2478 = vmatprep.subr.mxu0 %v692
    %2479 = vmatpush1.msra.mxu0 %v691
    %2480 = vmatprep.subr.mxu0 %v700
    %2481 = vmatpush1.msra.mxu0 %v699
    %2482 = vmatprep.subr.mxu0 %v708
    %2483 = vmatpush1.msra.mxu0 %v707
    %2484 = vmatprep.subr.mxu0 %v716
    %2485 = vmatpush1.msra.mxu0 %v715
    %2486 = vmatprep.subr.mxu0 %v724
    %2487 = vmatpush1.msra.mxu0 %v723
    %2488 = vmatprep.subr.mxu0 %v732
    %2489 = vmatpush1.msra.mxu0 %v731
    %2490 = vmatprep.subr.mxu0 %v740
    %2491 = vmatpush1.msra.mxu0 %v739
    %2492 = vmatprep.subr.mxu0 %v748
    %2493 = vmatpush1.msra.mxu0 %v747
    %2494 = vmatprep.subr.mxu0 %v756
    %2495 = vmatpush1.msra.mxu0 %v755
    %2496 = vmatprep.subr.mxu0 %v764
    %2497 = vmatpush1.msra.mxu0 %v763
    %2498 = vmatprep.subr.mxu0 %v772
    %2499 = vmatpush1.msra.mxu0 %v771
    %2500 = vmatprep.subr.mxu0 %v780
    %2501 = vmatpush1.msra.mxu0 %v779
    %2502 = vmatprep.subr.mxu0 %v788
    %2503 = vmatpush1.msra.mxu0 %v787
    %2504 = vmatprep.subr.mxu0 %v796
    %2505 = vmatpush1.msra.mxu0 %v795
    %2506 = vmatprep.subr.mxu0 %v804
    %2507 = vmatpush1.msra.mxu0 %v803
    %2508 = vmatprep.subr.mxu0 %v812
    %2509 = vmatpush1.msra.mxu0 %v811
    %2510 = vmatprep.subr.mxu0 %v820
    %2511 = vmatpush1.msra.mxu0 %v819
    %2512 = vmatprep.subr.mxu0 %v828
    %2513 = vmatpush1.msra.mxu0 %v827
    %2514 = vmatprep.subr.mxu0 %v836
    %2515 = vmatpush1.msra.mxu0 %v835
    %2516 = vmatprep.subr.mxu0 %v844
    %2517 = vmatpush1.msra.mxu0 %v843
    %2518 = vmatprep.subr.mxu0 %v852
    %2519 = vmatpush1.msra.mxu0 %v851
    %2520 = vmatprep.subr.mxu0 %v860
    %2521 = vmatpush1.msra.mxu0 %v859
    %2522 = vmatprep.subr.mxu0 %v868
    %2523 = vmatpush1.msra.mxu0 %v867
    %2524 = vmatprep.subr.mxu0 %v876
    %2525 = vmatpush1.msra.mxu0 %v875
    %2526 = vmatprep.subr.mxu0 %v884
    %2527 = vmatpush1.msra.mxu0 %v883
    %2528 = vmatprep.mubr.f32.mxu0 %v2451
    %2529 = vmatmul.mubr.f32.gmra.mrb[0].mxu0 %v2450
    %v2530 = vpop.f32.mrb[0].mxu0
    %v2531 = vadd.f32 %v2456, %v2530
    %v2532 = vpop.f32.mrb[0].mxu0
    %v2533 = vadd.f32 %v2457, %v2532
    %2534 = vdwg.mxu0
    %2535 = vmatprep.subr.mxu0 %v638
    %2536 = vmatpush1.msra.mxu0 %v637
    %2537 = vmatprep.subr.mxu0 %v646
    %2538 = vmatpush1.msra.mxu0 %v645
    %2539 = vmatprep.subr.mxu0 %v654
    %2540 = vmatpush1.msra.mxu0 %v653
    %2541 = vmatprep.subr.mxu0 %v662
    %2542 = vmatpush1.msra.mxu0 %v661
    %2543 = vmatprep.subr.mxu0 %v670
    %2544 = vmatpush1.msra.mxu0 %v669
    %2545 = vmatprep.subr.mxu0 %v678
    %2546 = vmatpush1.msra.mxu0 %v677
    %2547 = vmatprep.subr.mxu0 %v686
    %2548 = vmatpush1.msra.mxu0 %v685
    %2549 = vmatprep.subr.mxu0 %v694
    %2550 = vmatpush1.msra.mxu0 %v693
    %2551 = vmatprep.subr.mxu0 %v702
    %2552 = vmatpush1.msra.mxu0 %v701
    %2553 = vmatprep.subr.mxu0 %v710
    %2554 = vmatpush1.msra.mxu0 %v709
    %2555 = vmatprep.subr.mxu0 %v718
    %2556 = vmatpush1.msra.mxu0 %v717
    %2557 = vmatprep.subr.mxu0 %v726
    %2558 = vmatpush1.msra.mxu0 %v725
    %2559 = vmatprep.subr.mxu0 %v734
    %2560 = vmatpush1.msra.mxu0 %v733
    %2561 = vmatprep.subr.mxu0 %v742
    %2562 = vmatpush1.msra.mxu0 %v741
    %2563 = vmatprep.subr.mxu0 %v750
    %2564 = vmatpush1.msra.mxu0 %v749
    %2565 = vmatprep.subr.mxu0 %v758
    %2566 = vmatpush1.msra.mxu0 %v757
    %2567 = vmatprep.subr.mxu0 %v766
    %2568 = vmatpush1.msra.mxu0 %v765
    %2569 = vmatprep.subr.mxu0 %v774
    %2570 = vmatpush1.msra.mxu0 %v773
    %2571 = vmatprep.subr.mxu0 %v782
    %2572 = vmatpush1.msra.mxu0 %v781
    %2573 = vmatprep.subr.mxu0 %v790
    %2574 = vmatpush1.msra.mxu0 %v789
    %2575 = vmatprep.subr.mxu0 %v798
    %2576 = vmatpush1.msra.mxu0 %v797
    %2577 = vmatprep.subr.mxu0 %v806
    %2578 = vmatpush1.msra.mxu0 %v805
    %2579 = vmatprep.subr.mxu0 %v814
    %2580 = vmatpush1.msra.mxu0 %v813
    %2581 = vmatprep.subr.mxu0 %v822
    %2582 = vmatpush1.msra.mxu0 %v821
    %2583 = vmatprep.subr.mxu0 %v830
    %2584 = vmatpush1.msra.mxu0 %v829
    %2585 = vmatprep.subr.mxu0 %v838
    %2586 = vmatpush1.msra.mxu0 %v837
    %2587 = vmatprep.subr.mxu0 %v846
    %2588 = vmatpush1.msra.mxu0 %v845
    %2589 = vmatprep.subr.mxu0 %v854
    %2590 = vmatpush1.msra.mxu0 %v853
    %2591 = vmatprep.subr.mxu0 %v862
    %2592 = vmatpush1.msra.mxu0 %v861
    %2593 = vmatprep.subr.mxu0 %v870
    %2594 = vmatpush1.msra.mxu0 %v869
    %2595 = vmatprep.subr.mxu0 %v878
    %2596 = vmatpush1.msra.mxu0 %v877
    %2597 = vmatprep.subr.mxu0 %v886
    %2598 = vmatpush1.msra.mxu0 %v885
    %2599 = vmatprep.mubr.f32.mxu0 %v2451
    %2600 = vmatmul.mubr.f32.gmra.mrb[0].mxu0 %v2450
    %v2601 = vpop.f32.mrb[0].mxu0
    %v2602 = vadd.f32 %v2458, %v2601
    %v2603 = vpop.f32.mrb[0].mxu0
    %v2604 = vadd.f32 %v2459, %v2603
    %2605 = vdwg.mxu0
    %2606 = vmatprep.subr.mxu0 %v640
    %2607 = vmatpush1.msra.mxu0 %v639
    %2608 = vmatprep.subr.mxu0 %v648
    %2609 = vmatpush1.msra.mxu0 %v647
    %2610 = vmatprep.subr.mxu0 %v656
    %2611 = vmatpush1.msra.mxu0 %v655
    %2612 = vmatprep.subr.mxu0 %v664
    %2613 = vmatpush1.msra.mxu0 %v663
    %2614 = vmatprep.subr.mxu0 %v672
    %2615 = vmatpush1.msra.mxu0 %v671
    %2616 = vmatprep.subr.mxu0 %v680
    %2617 = vmatpush1.msra.mxu0 %v679
    %2618 = vmatprep.subr.mxu0 %v688
    %2619 = vmatpush1.msra.mxu0 %v687
    %2620 = vmatprep.subr.mxu0 %v696
    %2621 = vmatpush1.msra.mxu0 %v695
    %2622 = vmatprep.subr.mxu0 %v704
    %2623 = vmatpush1.msra.mxu0 %v703
    %2624 = vmatprep.subr.mxu0 %v712
    %2625 = vmatpush1.msra.mxu0 %v711
    %2626 = vmatprep.subr.mxu0 %v720
    %2627 = vmatpush1.msra.mxu0 %v719
    %2628 = vmatprep.subr.mxu0 %v728
    %2629 = vmatpush1.msra.mxu0 %v727
    %2630 = vmatprep.subr.mxu0 %v736
    %2631 = vmatpush1.msra.mxu0 %v735
    %2632 = vmatprep.subr.mxu0 %v744
    %2633 = vmatpush1.msra.mxu0 %v743
    %2634 = vmatprep.subr.mxu0 %v752
    %2635 = vmatpush1.msra.mxu0 %v751
    %2636 = vmatprep.subr.mxu0 %v760
    %2637 = vmatpush1.msra.mxu0 %v759
    %2638 = vmatprep.subr.mxu0 %v768
    %2639 = vmatpush1.msra.mxu0 %v767
    %2640 = vmatprep.subr.mxu0 %v776
    %2641 = vmatpush1.msra.mxu0 %v775
    %2642 = vmatprep.subr.mxu0 %v784
    %2643 = vmatpush1.msra.mxu0 %v783
    %2644 = vmatprep.subr.mxu0 %v792
    %2645 = vmatpush1.msra.mxu0 %v791
    %2646 = vmatprep.subr.mxu0 %v800
    %2647 = vmatpush1.msra.mxu0 %v799
    %2648 = vmatprep.subr.mxu0 %v808
    %2649 = vmatpush1.msra.mxu0 %v807
    %2650 = vmatprep.subr.mxu0 %v816
    %2651 = vmatpush1.msra.mxu0 %v815
    %2652 = vmatprep.subr.mxu0 %v824
    %2653 = vmatpush1.msra.mxu0 %v823
    %2654 = vmatprep.subr.mxu0 %v832
    %2655 = vmatpush1.msra.mxu0 %v831
    %2656 = vmatprep.subr.mxu0 %v840
    %2657 = vmatpush1.msra.mxu0 %v839
    %2658 = vmatprep.subr.mxu0 %v848
    %2659 = vmatpush1.msra.mxu0 %v847
    %2660 = vmatprep.subr.mxu0 %v856
    %2661 = vmatpush1.msra.mxu0 %v855
    %2662 = vmatprep.subr.mxu0 %v864
    %2663 = vmatpush1.msra.mxu0 %v863
    %2664 = vmatprep.subr.mxu0 %v872
    %2665 = vmatpush1.msra.mxu0 %v871
    %2666 = vmatprep.subr.mxu0 %v880
    %2667 = vmatpush1.msra.mxu0 %v879
    %2668 = vmatprep.subr.mxu0 %v888
    %2669 = vmatpush1.msra.mxu0 %v887
    %2670 = vmatprep.mubr.f32.mxu0 %v2451
    %2671 = vmatmul.mubr.f32.gmra.mrb[0].mxu0 %v2450
    %v2672 = vpop.f32.mrb[0].mxu0
    %v2673 = vadd.f32 %v960, %v2672
    %v2674 = vpop.f32.mrb[0].mxu0
    %v2675 = vadd.f32 %v961, %v2674
    %2676 = vdwg.mxu0
    %2677 = vmatprep.subr.mxu0 %v642
    %2678 = vmatpush1.msra.mxu0 %v641
    %2679 = vmatprep.subr.mxu0 %v650
    %2680 = vmatpush1.msra.mxu0 %v649
    %2681 = vmatprep.subr.mxu0 %v658
    %2682 = vmatpush1.msra.mxu0 %v657
    %2683 = vmatprep.subr.mxu0 %v666
    %2684 = vmatpush1.msra.mxu0 %v665
    %2685 = vmatprep.subr.mxu0 %v674
    %2686 = vmatpush1.msra.mxu0 %v673
    %2687 = vmatprep.subr.mxu0 %v682
    %2688 = vmatpush1.msra.mxu0 %v681
    %2689 = vmatprep.subr.mxu0 %v690
    %2690 = vmatpush1.msra.mxu0 %v689
    %2691 = vmatprep.subr.mxu0 %v698
    %2692 = vmatpush1.msra.mxu0 %v697
    %2693 = vmatprep.subr.mxu0 %v706
    %2694 = vmatpush1.msra.mxu0 %v705
    %2695 = vmatprep.subr.mxu0 %v714
    %2696 = vmatpush1.msra.mxu0 %v713
    %2697 = vmatprep.subr.mxu0 %v722
    %2698 = vmatpush1.msra.mxu0 %v721
    %2699 = vmatprep.subr.mxu0 %v730
    %2700 = vmatpush1.msra.mxu0 %v729
    %2701 = vmatprep.subr.mxu0 %v738
    %2702 = vmatpush1.msra.mxu0 %v737
    %2703 = vmatprep.subr.mxu0 %v746
    %2704 = vmatpush1.msra.mxu0 %v745
    %2705 = vmatprep.subr.mxu0 %v754
    %2706 = vmatpush1.msra.mxu0 %v753
    %2707 = vmatprep.subr.mxu0 %v762
    %2708 = vmatpush1.msra.mxu0 %v761
    %2709 = vmatprep.subr.mxu0 %v770
    %2710 = vmatpush1.msra.mxu0 %v769
    %2711 = vmatprep.subr.mxu0 %v778
    %2712 = vmatpush1.msra.mxu0 %v777
    %2713 = vmatprep.subr.mxu0 %v786
    %2714 = vmatpush1.msra.mxu0 %v785
    %2715 = vmatprep.subr.mxu0 %v794
    %2716 = vmatpush1.msra.mxu0 %v793
    %2717 = vmatprep.subr.mxu0 %v802
    %2718 = vmatpush1.msra.mxu0 %v801
    %2719 = vmatprep.subr.mxu0 %v810
    %2720 = vmatpush1.msra.mxu0 %v809
    %2721 = vmatprep.subr.mxu0 %v818
    %2722 = vmatpush1.msra.mxu0 %v817
    %2723 = vmatprep.subr.mxu0 %v826
    %2724 = vmatpush1.msra.mxu0 %v825
    %2725 = vmatprep.subr.mxu0 %v834
    %2726 = vmatpush1.msra.mxu0 %v833
    %2727 = vmatprep.subr.mxu0 %v842
    %2728 = vmatpush1.msra.mxu0 %v841
    %2729 = vmatprep.subr.mxu0 %v850
    %2730 = vmatpush1.msra.mxu0 %v849
    %2731 = vmatprep.subr.mxu0 %v858
    %2732 = vmatpush1.msra.mxu0 %v857
    %2733 = vmatprep.subr.mxu0 %v866
    %2734 = vmatpush1.msra.mxu0 %v865
    %2735 = vmatprep.subr.mxu0 %v874
    %2736 = vmatpush1.msra.mxu0 %v873
    %2737 = vmatprep.subr.mxu0 %v882
    %2738 = vmatpush1.msra.mxu0 %v881
    %2739 = vmatprep.subr.mxu0 %v890
    %2740 = vmatpush1.msra.mxu0 %v889
    %2741 = vmatprep.mubr.f32.mxu0 %v2451
    %2742 = vmatmul.mubr.f32.gmra.mrb[0].mxu0 %v2450
    %v2743 = vpop.f32.mrb[0].mxu0
    %v2744 = vadd.f32 %v962, %v2743
    %v2745 = vpop.f32.mrb[0].mxu0
    %v2746 = vadd.f32 %v963, %v2745
    %2747 = vdwg.mxu0
    %v2748 = vxor.u32 %v2531, 2147483648
    %v2749 = vxor.u32 %v2533, 2147483648
    %v2750 = vxor.u32 %v2602, 2147483648
    %v2751 = vxor.u32 %v2604, 2147483648
    %v2752 = vxor.u32 %v2673, 2147483648
    %v2753 = vxor.u32 %v2675, 2147483648
    %v2754 = vxor.u32 %v2744, 2147483648
    %v2755 = vxor.u32 %v2746, 2147483648
    %v2756 = vmul.f32 %v2748, 1.442695
    %v2757 = vpow.pop %v2756
    %v2758 = vmul.f32 %v2749, 1.442695
    %v2759 = vpow.pop %v2758
    %v2760 = vmul.f32 %v2750, 1.442695
    %v2761 = vpow.pop %v2760
    %v2762 = vmul.f32 %v2751, 1.442695
    %v2763 = vpow.pop %v2762
    %v2764 = vmul.f32 %v2752, 1.442695
    %v2765 = vpow.pop %v2764
    %v2766 = vmul.f32 %v2753, 1.442695
    %v2767 = vpow.pop %v2766
    %v2768 = vmul.f32 %v2754, 1.442695
    %v2769 = vpow.pop %v2768
    %v2770 = vmul.f32 %v2755, 1.442695
    %v2771 = vpow.pop %v2770
    %v2772 = vadd.f32 %v2757, 1.0
    %v2773 = vadd.f32 %v2759, 1.0
    %v2774 = vadd.f32 %v2761, 1.0
    %v2775 = vadd.f32 %v2763, 1.0
    %v2776 = vadd.f32 %v2765, 1.0
    %v2777 = vadd.f32 %v2767, 1.0
    %v2778 = vadd.f32 %v2769, 1.0
    %v2779 = vadd.f32 %v2771, 1.0
    %v2780 = vrcp.pop %v2772
    %v2781 = vmul.f32 1.0, %v2780
    %v2782 = vrcp.pop %v2773
    %v2783 = vmul.f32 1.0, %v2782
    %v2784 = vrcp.pop %v2774
    %v2785 = vmul.f32 1.0, %v2784
    %v2786 = vrcp.pop %v2775
    %v2787 = vmul.f32 1.0, %v2786
    %v2788 = vrcp.pop %v2776
    %v2789 = vmul.f32 1.0, %v2788
    %v2790 = vrcp.pop %v2777
    %v2791 = vmul.f32 1.0, %v2790
    %v2792 = vrcp.pop %v2778
    %v2793 = vmul.f32 1.0, %v2792
    %v2794 = vrcp.pop %v2779
    %v2795 = vmul.f32 1.0, %v2794
    %v2796 = vmul.f32 %v2785, 2.0
    %v2797 = vsub.f32 %v2796, 1.0
    %v2798 = vmul.f32 %v2793, 2.0
    %v2799 = vsub.f32 %v2798, 1.0
    %v2800 = vmul.f32 %v2783, %v2428
    %v2801 = vmul.f32 %v2781, %v2797
    %v2802 = vadd.f32 %v2800, %v2801
    %v2803 = vmul.f32 %v2791, %v2431
    %v2804 = vmul.f32 %v2789, %v2799
    %v2805 = vadd.f32 %v2803, %v2804
    %v2806 = vmul.f32 %v2802, 2.0
    %v2807 = vmul.f32 %v2805, 2.0
    %v2808 = vxor.u32 %v2806, 2147483648
    %v2809 = vxor.u32 %v2807, 2147483648
    %v2810 = vmul.f32 %v2808, 1.442695
    %v2811 = vpow.pop %v2810
    %v2812 = vmul.f32 %v2809, 1.442695
    %v2813 = vpow.pop %v2812
    %v2814 = vadd.f32 %v2811, 1.0
    %v2815 = vadd.f32 %v2813, 1.0
    %v2816 = vrcp.pop %v2814
    %v2817 = vmul.f32 1.0, %v2816
    %v2818 = vrcp.pop %v2815
    %v2819 = vmul.f32 1.0, %v2818
    %v2820 = vmul.f32 %v2817, 2.0
    %v2821 = vmul.f32 %v2819, 2.0
    %v2822 = vsub.f32 %v2820, 1.0
    %v2823 = vsub.f32 %v2821, 1.0
    %v2824 = vmul.f32 %v2787, %v2822
    %v2825 = vmul.f32 %v2795, %v2823
    %v2826 = vrot.slane %v550, 4
    %v2827 = vrot.slane %v552, 4
    %v2828 = vrot.slane %v627, 4
    %v2829 = vrot.slane %v629, 4
    %2834 = vmatprep.subr.mxu0 %v636
    %2835 = vmatpush1.msra.mxu0 %v635
    %2836 = vmatprep.subr.mxu0 %v644
    %2837 = vmatpush1.msra.mxu0 %v643
    %2838 = vmatprep.subr.mxu0 %v652
    %2839 = vmatpush1.msra.mxu0 %v651
    %2840 = vmatprep.subr.mxu0 %v660
    %2841 = vmatpush1.msra.mxu0 %v659
    %2842 = vmatprep.subr.mxu0 %v668
    %2843 = vmatpush1.msra.mxu0 %v667
    %2844 = vmatprep.subr.mxu0 %v676
    %2845 = vmatpush1.msra.mxu0 %v675
    %2846 = vmatprep.subr.mxu0 %v684
    %2847 = vmatpush1.msra.mxu0 %v683
    %2848 = vmatprep.subr.mxu0 %v692
    %2849 = vmatpush1.msra.mxu0 %v691
    %2850 = vmatprep.subr.mxu0 %v700
    %2851 = vmatpush1.msra.mxu0 %v699
    %2852 = vmatprep.subr.mxu0 %v708
    %2853 = vmatpush1.msra.mxu0 %v707
    %2854 = vmatprep.subr.mxu0 %v716
    %2855 = vmatpush1.msra.mxu0 %v715
    %2856 = vmatprep.subr.mxu0 %v724
    %2857 = vmatpush1.msra.mxu0 %v723
    %2858 = vmatprep.subr.mxu0 %v732
    %2859 = vmatpush1.msra.mxu0 %v731
    %2860 = vmatprep.subr.mxu0 %v740
    %2861 = vmatpush1.msra.mxu0 %v739
    %2862 = vmatprep.subr.mxu0 %v748
    %2863 = vmatpush1.msra.mxu0 %v747
    %2864 = vmatprep.subr.mxu0 %v756
    %2865 = vmatpush1.msra.mxu0 %v755
    %2866 = vmatprep.subr.mxu0 %v764
    %2867 = vmatpush1.msra.mxu0 %v763
    %2868 = vmatprep.subr.mxu0 %v772
    %2869 = vmatpush1.msra.mxu0 %v771
    %2870 = vmatprep.subr.mxu0 %v780
    %2871 = vmatpush1.msra.mxu0 %v779
    %2872 = vmatprep.subr.mxu0 %v788
    %2873 = vmatpush1.msra.mxu0 %v787
    %2874 = vmatprep.subr.mxu0 %v796
    %2875 = vmatpush1.msra.mxu0 %v795
    %2876 = vmatprep.subr.mxu0 %v804
    %2877 = vmatpush1.msra.mxu0 %v803
    %2878 = vmatprep.subr.mxu0 %v812
    %2879 = vmatpush1.msra.mxu0 %v811
    %2880 = vmatprep.subr.mxu0 %v820
    %2881 = vmatpush1.msra.mxu0 %v819
    %2882 = vmatprep.subr.mxu0 %v828
    %2883 = vmatpush1.msra.mxu0 %v827
    %2884 = vmatprep.subr.mxu0 %v836
    %2885 = vmatpush1.msra.mxu0 %v835
    %2886 = vmatprep.subr.mxu0 %v844
    %2887 = vmatpush1.msra.mxu0 %v843
    %2888 = vmatprep.subr.mxu0 %v852
    %2889 = vmatpush1.msra.mxu0 %v851
    %2890 = vmatprep.subr.mxu0 %v860
    %2891 = vmatpush1.msra.mxu0 %v859
    %2892 = vmatprep.subr.mxu0 %v868
    %2893 = vmatpush1.msra.mxu0 %v867
    %2894 = vmatprep.subr.mxu0 %v876
    %2895 = vmatpush1.msra.mxu0 %v875
    %2896 = vmatprep.subr.mxu0 %v884
    %2897 = vmatpush1.msra.mxu0 %v883
    %2898 = vmatprep.mubr.f32.mxu0 %v2825
    %2899 = vmatmul.mubr.f32.gmra.mrb[0].mxu0 %v2824
    %v2900 = vpop.f32.mrb[0].mxu0
    %v2901 = vadd.f32 %v2826, %v2900
    %v2902 = vpop.f32.mrb[0].mxu0
    %v2903 = vadd.f32 %v2827, %v2902
    %2904 = vdwg.mxu0
    %2905 = vmatprep.subr.mxu0 %v638
    %2906 = vmatpush1.msra.mxu0 %v637
    %2907 = vmatprep.subr.mxu0 %v646
    %2908 = vmatpush1.msra.mxu0 %v645
    %2909 = vmatprep.subr.mxu0 %v654
    %2910 = vmatpush1.msra.mxu0 %v653
    %2911 = vmatprep.subr.mxu0 %v662
    %2912 = vmatpush1.msra.mxu0 %v661
    %2913 = vmatprep.subr.mxu0 %v670
    %2914 = vmatpush1.msra.mxu0 %v669
    %2915 = vmatprep.subr.mxu0 %v678
    %2916 = vmatpush1.msra.mxu0 %v677
    %2917 = vmatprep.subr.mxu0 %v686
    %2918 = vmatpush1.msra.mxu0 %v685
    %2919 = vmatprep.subr.mxu0 %v694
    %2920 = vmatpush1.msra.mxu0 %v693
    %2921 = vmatprep.subr.mxu0 %v702
    %2922 = vmatpush1.msra.mxu0 %v701
    %2923 = vmatprep.subr.mxu0 %v710
    %2924 = vmatpush1.msra.mxu0 %v709
    %2925 = vmatprep.subr.mxu0 %v718
    %2926 = vmatpush1.msra.mxu0 %v717
    %2927 = vmatprep.subr.mxu0 %v726
    %2928 = vmatpush1.msra.mxu0 %v725
    %2929 = vmatprep.subr.mxu0 %v734
    %2930 = vmatpush1.msra.mxu0 %v733
    %2931 = vmatprep.subr.mxu0 %v742
    %2932 = vmatpush1.msra.mxu0 %v741
    %2933 = vmatprep.subr.mxu0 %v750
    %2934 = vmatpush1.msra.mxu0 %v749
    %2935 = vmatprep.subr.mxu0 %v758
    %2936 = vmatpush1.msra.mxu0 %v757
    %2937 = vmatprep.subr.mxu0 %v766
    %2938 = vmatpush1.msra.mxu0 %v765
    %2939 = vmatprep.subr.mxu0 %v774
    %2940 = vmatpush1.msra.mxu0 %v773
    %2941 = vmatprep.subr.mxu0 %v782
    %2942 = vmatpush1.msra.mxu0 %v781
    %2943 = vmatprep.subr.mxu0 %v790
    %2944 = vmatpush1.msra.mxu0 %v789
    %2945 = vmatprep.subr.mxu0 %v798
    %2946 = vmatpush1.msra.mxu0 %v797
    %2947 = vmatprep.subr.mxu0 %v806
    %2948 = vmatpush1.msra.mxu0 %v805
    %2949 = vmatprep.subr.mxu0 %v814
    %2950 = vmatpush1.msra.mxu0 %v813
    %2951 = vmatprep.subr.mxu0 %v822
    %2952 = vmatpush1.msra.mxu0 %v821
    %2953 = vmatprep.subr.mxu0 %v830
    %2954 = vmatpush1.msra.mxu0 %v829
    %2955 = vmatprep.subr.mxu0 %v838
    %2956 = vmatpush1.msra.mxu0 %v837
    %2957 = vmatprep.subr.mxu0 %v846
    %2958 = vmatpush1.msra.mxu0 %v845
    %2959 = vmatprep.subr.mxu0 %v854
    %2960 = vmatpush1.msra.mxu0 %v853
    %2961 = vmatprep.subr.mxu0 %v862
    %2962 = vmatpush1.msra.mxu0 %v861
    %2963 = vmatprep.subr.mxu0 %v870
    %2964 = vmatpush1.msra.mxu0 %v869
    %2965 = vmatprep.subr.mxu0 %v878
    %2966 = vmatpush1.msra.mxu0 %v877
    %2967 = vmatprep.subr.mxu0 %v886
    %2968 = vmatpush1.msra.mxu0 %v885
    %2969 = vmatprep.mubr.f32.mxu0 %v2825
    %2970 = vmatmul.mubr.f32.gmra.mrb[0].mxu0 %v2824
    %v2971 = vpop.f32.mrb[0].mxu0
    %v2972 = vadd.f32 %v2828, %v2971
    %v2973 = vpop.f32.mrb[0].mxu0
    %v2974 = vadd.f32 %v2829, %v2973
    %2975 = vdwg.mxu0
    %2976 = vmatprep.subr.mxu0 %v640
    %2977 = vmatpush1.msra.mxu0 %v639
    %2978 = vmatprep.subr.mxu0 %v648
    %2979 = vmatpush1.msra.mxu0 %v647
    %2980 = vmatprep.subr.mxu0 %v656
    %2981 = vmatpush1.msra.mxu0 %v655
    %2982 = vmatprep.subr.mxu0 %v664
    %2983 = vmatpush1.msra.mxu0 %v663
    %2984 = vmatprep.subr.mxu0 %v672
    %2985 = vmatpush1.msra.mxu0 %v671
    %2986 = vmatprep.subr.mxu0 %v680
    %2987 = vmatpush1.msra.mxu0 %v679
    %2988 = vmatprep.subr.mxu0 %v688
    %2989 = vmatpush1.msra.mxu0 %v687
    %2990 = vmatprep.subr.mxu0 %v696
    %2991 = vmatpush1.msra.mxu0 %v695
    %2992 = vmatprep.subr.mxu0 %v704
    %2993 = vmatpush1.msra.mxu0 %v703
    %2994 = vmatprep.subr.mxu0 %v712
    %2995 = vmatpush1.msra.mxu0 %v711
    %2996 = vmatprep.subr.mxu0 %v720
    %2997 = vmatpush1.msra.mxu0 %v719
    %2998 = vmatprep.subr.mxu0 %v728
    %2999 = vmatpush1.msra.mxu0 %v727
    %3000 = vmatprep.subr.mxu0 %v736
    %3001 = vmatpush1.msra.mxu0 %v735
    %3002 = vmatprep.subr.mxu0 %v744
    %3003 = vmatpush1.msra.mxu0 %v743
    %3004 = vmatprep.subr.mxu0 %v752
    %3005 = vmatpush1.msra.mxu0 %v751
    %3006 = vmatprep.subr.mxu0 %v760
    %3007 = vmatpush1.msra.mxu0 %v759
    %3008 = vmatprep.subr.mxu0 %v768
    %3009 = vmatpush1.msra.mxu0 %v767
    %3010 = vmatprep.subr.mxu0 %v776
    %3011 = vmatpush1.msra.mxu0 %v775
    %3012 = vmatprep.subr.mxu0 %v784
    %3013 = vmatpush1.msra.mxu0 %v783
    %3014 = vmatprep.subr.mxu0 %v792
    %3015 = vmatpush1.msra.mxu0 %v791
    %3016 = vmatprep.subr.mxu0 %v800
    %3017 = vmatpush1.msra.mxu0 %v799
    %3018 = vmatprep.subr.mxu0 %v808
    %3019 = vmatpush1.msra.mxu0 %v807
    %3020 = vmatprep.subr.mxu0 %v816
    %3021 = vmatpush1.msra.mxu0 %v815
    %3022 = vmatprep.subr.mxu0 %v824
    %3023 = vmatpush1.msra.mxu0 %v823
    %3024 = vmatprep.subr.mxu0 %v832
    %3025 = vmatpush1.msra.mxu0 %v831
    %3026 = vmatprep.subr.mxu0 %v840
    %3027 = vmatpush1.msra.mxu0 %v839
    %3028 = vmatprep.subr.mxu0 %v848
    %3029 = vmatpush1.msra.mxu0 %v847
    %3030 = vmatprep.subr.mxu0 %v856
    %3031 = vmatpush1.msra.mxu0 %v855
    %3032 = vmatprep.subr.mxu0 %v864
    %3033 = vmatpush1.msra.mxu0 %v863
    %3034 = vmatprep.subr.mxu0 %v872
    %3035 = vmatpush1.msra.mxu0 %v871
    %3036 = vmatprep.subr.mxu0 %v880
    %3037 = vmatpush1.msra.mxu0 %v879
    %3038 = vmatprep.subr.mxu0 %v888
    %3039 = vmatpush1.msra.mxu0 %v887
    %3040 = vmatprep.mubr.f32.mxu0 %v2825
    %3041 = vmatmul.mubr.f32.gmra.mrb[0].mxu0 %v2824
    %v3042 = vpop.f32.mrb[0].mxu0
    %v3043 = vadd.f32 %v1338, %v3042
    %v3044 = vpop.f32.mrb[0].mxu0
    %v3045 = vadd.f32 %v1339, %v3044
    %3046 = vdwg.mxu0
    %3047 = vmatprep.subr.mxu0 %v642
    %3048 = vmatpush1.msra.mxu0 %v641
    %3049 = vmatprep.subr.mxu0 %v650
    %3050 = vmatpush1.msra.mxu0 %v649
    %3051 = vmatprep.subr.mxu0 %v658
    %3052 = vmatpush1.msra.mxu0 %v657
    %3053 = vmatprep.subr.mxu0 %v666
    %3054 = vmatpush1.msra.mxu0 %v665
    %3055 = vmatprep.subr.mxu0 %v674
    %3056 = vmatpush1.msra.mxu0 %v673
    %3057 = vmatprep.subr.mxu0 %v682
    %3058 = vmatpush1.msra.mxu0 %v681
    %3059 = vmatprep.subr.mxu0 %v690
    %3060 = vmatpush1.msra.mxu0 %v689
    %3061 = vmatprep.subr.mxu0 %v698
    %3062 = vmatpush1.msra.mxu0 %v697
    %3063 = vmatprep.subr.mxu0 %v706
    %3064 = vmatpush1.msra.mxu0 %v705
    %3065 = vmatprep.subr.mxu0 %v714
    %3066 = vmatpush1.msra.mxu0 %v713
    %3067 = vmatprep.subr.mxu0 %v722
    %3068 = vmatpush1.msra.mxu0 %v721
    %3069 = vmatprep.subr.mxu0 %v730
    %3070 = vmatpush1.msra.mxu0 %v729
    %3071 = vmatprep.subr.mxu0 %v738
    %3072 = vmatpush1.msra.mxu0 %v737
    %3073 = vmatprep.subr.mxu0 %v746
    %3074 = vmatpush1.msra.mxu0 %v745
    %3075 = vmatprep.subr.mxu0 %v754
    %3076 = vmatpush1.msra.mxu0 %v753
    %3077 = vmatprep.subr.mxu0 %v762
    %3078 = vmatpush1.msra.mxu0 %v761
    %3079 = vmatprep.subr.mxu0 %v770
    %3080 = vmatpush1.msra.mxu0 %v769
    %3081 = vmatprep.subr.mxu0 %v778
    %3082 = vmatpush1.msra.mxu0 %v777
    %3083 = vmatprep.subr.mxu0 %v786
    %3084 = vmatpush1.msra.mxu0 %v785
    %3085 = vmatprep.subr.mxu0 %v794
    %3086 = vmatpush1.msra.mxu0 %v793
    %3087 = vmatprep.subr.mxu0 %v802
    %3088 = vmatpush1.msra.mxu0 %v801
    %3089 = vmatprep.subr.mxu0 %v810
    %3090 = vmatpush1.msra.mxu0 %v809
    %3091 = vmatprep.subr.mxu0 %v818
    %3092 = vmatpush1.msra.mxu0 %v817
    %3093 = vmatprep.subr.mxu0 %v826
    %3094 = vmatpush1.msra.mxu0 %v825
    %3095 = vmatprep.subr.mxu0 %v834
    %3096 = vmatpush1.msra.mxu0 %v833
    %3097 = vmatprep.subr.mxu0 %v842
    %3098 = vmatpush1.msra.mxu0 %v841
    %3099 = vmatprep.subr.mxu0 %v850
    %3100 = vmatpush1.msra.mxu0 %v849
    %3101 = vmatprep.subr.mxu0 %v858
    %3102 = vmatpush1.msra.mxu0 %v857
    %3103 = vmatprep.subr.mxu0 %v866
    %3104 = vmatpush1.msra.mxu0 %v865
    %3105 = vmatprep.subr.mxu0 %v874
    %3106 = vmatpush1.msra.mxu0 %v873
    %3107 = vmatprep.subr.mxu0 %v882
    %3108 = vmatpush1.msra.mxu0 %v881
    %3109 = vmatprep.subr.mxu0 %v890
    %3110 = vmatpush1.msra.mxu0 %v889
    %3111 = vmatprep.mubr.f32.mxu0 %v2825
    %3112 = vmatmul.mubr.f32.gmra.mrb[0].mxu0 %v2824
    %v3113 = vpop.f32.mrb[0].mxu0
    %v3114 = vadd.f32 %v1340, %v3113
    %v3115 = vpop.f32.mrb[0].mxu0
    %v3116 = vadd.f32 %v1341, %v3115
    %3117 = vdwg.mxu0
    %v3118 = vxor.u32 %v2901, 2147483648
    %v3119 = vxor.u32 %v2903, 2147483648
    %v3120 = vxor.u32 %v2972, 2147483648
    %v3121 = vxor.u32 %v2974, 2147483648
    %v3122 = vxor.u32 %v3043, 2147483648
    %v3123 = vxor.u32 %v3045, 2147483648
    %v3124 = vxor.u32 %v3114, 2147483648
    %v3125 = vxor.u32 %v3116, 2147483648
    %v3126 = vmul.f32 %v3118, 1.442695
    %v3127 = vpow.pop %v3126
    %v3128 = vmul.f32 %v3119, 1.442695
    %v3129 = vpow.pop %v3128
    %v3130 = vmul.f32 %v3120, 1.442695
    %v3131 = vpow.pop %v3130
    %v3132 = vmul.f32 %v3121, 1.442695
    %v3133 = vpow.pop %v3132
    %v3134 = vmul.f32 %v3122, 1.442695
    %v3135 = vpow.pop %v3134
    %v3136 = vmul.f32 %v3123, 1.442695
    %v3137 = vpow.pop %v3136
    %v3138 = vmul.f32 %v3124, 1.442695
    %v3139 = vpow.pop %v3138
    %v3140 = vmul.f32 %v3125, 1.442695
    %v3141 = vpow.pop %v3140
    %v3142 = vadd.f32 %v3127, 1.0
    %v3143 = vadd.f32 %v3129, 1.0
    %v3144 = vadd.f32 %v3131, 1.0
    %v3145 = vadd.f32 %v3133, 1.0
    %v3146 = vadd.f32 %v3135, 1.0
    %v3147 = vadd.f32 %v3137, 1.0
    %v3148 = vadd.f32 %v3139, 1.0
    %v3149 = vadd.f32 %v3141, 1.0
    %v3150 = vrcp.pop %v3142
    %v3151 = vmul.f32 1.0, %v3150
    %v3152 = vrcp.pop %v3143
    %v3153 = vmul.f32 1.0, %v3152
    %v3154 = vrcp.pop %v3144
    %v3155 = vmul.f32 1.0, %v3154
    %v3156 = vrcp.pop %v3145
    %v3157 = vmul.f32 1.0, %v3156
    %v3158 = vrcp.pop %v3146
    %v3159 = vmul.f32 1.0, %v3158
    %v3160 = vrcp.pop %v3147
    %v3161 = vmul.f32 1.0, %v3160
    %v3162 = vrcp.pop %v3148
    %v3163 = vmul.f32 1.0, %v3162
    %v3164 = vrcp.pop %v3149
    %v3165 = vmul.f32 1.0, %v3164
    %v3166 = vmul.f32 %v3155, 2.0
    %v3167 = vsub.f32 %v3166, 1.0
    %v3168 = vmul.f32 %v3163, 2.0
    %v3169 = vsub.f32 %v3168, 1.0
    %v3170 = vmul.f32 %v3153, %v2802
    %v3171 = vmul.f32 %v3151, %v3167
    %v3172 = vadd.f32 %v3170, %v3171
    %v3173 = vmul.f32 %v3161, %v2805
    %v3174 = vmul.f32 %v3159, %v3169
    %v3175 = vadd.f32 %v3173, %v3174
    %v3176 = vmul.f32 %v3172, 2.0
    %v3177 = vmul.f32 %v3175, 2.0
    %v3178 = vxor.u32 %v3176, 2147483648
    %v3179 = vxor.u32 %v3177, 2147483648
    %v3180 = vmul.f32 %v3178, 1.442695
    %v3181 = vpow.pop %v3180
    %v3182 = vmul.f32 %v3179, 1.442695
    %v3183 = vpow.pop %v3182
    %v3184 = vadd.f32 %v3181, 1.0
    %v3185 = vadd.f32 %v3183, 1.0
    %v3186 = vrcp.pop %v3184
    %v3187 = vmul.f32 1.0, %v3186
    %v3188 = vrcp.pop %v3185
    %v3189 = vmul.f32 1.0, %v3188
    %v3190 = vmul.f32 %v3187, 2.0
    %v3191 = vmul.f32 %v3189, 2.0
    %v3192 = vsub.f32 %v3190, 1.0
    %v3193 = vsub.f32 %v3191, 1.0
    %v3194 = vmul.f32 %v3157, %v3192
    %v3195 = vmul.f32 %v3165, %v3193
    %v3196 = vrot.slane %v550, 6
    %v3197 = vrot.slane %v552, 6
    %v3198 = vrot.slane %v627, 6
    %v3199 = vrot.slane %v629, 6
    %3204 = vmatprep.subr.mxu0 %v636
    %3205 = vmatpush1.msra.mxu0 %v635
    %3206 = vmatprep.subr.mxu0 %v644
    %3207 = vmatpush1.msra.mxu0 %v643
    %3208 = vmatprep.subr.mxu0 %v652
    %3209 = vmatpush1.msra.mxu0 %v651
    %3210 = vmatprep.subr.mxu0 %v660
    %3211 = vmatpush1.msra.mxu0 %v659
    %3212 = vmatprep.subr.mxu0 %v668
    %3213 = vmatpush1.msra.mxu0 %v667
    %3214 = vmatprep.subr.mxu0 %v676
    %3215 = vmatpush1.msra.mxu0 %v675
    %3216 = vmatprep.subr.mxu0 %v684
    %3217 = vmatpush1.msra.mxu0 %v683
    %3218 = vmatprep.subr.mxu0 %v692
    %3219 = vmatpush1.msra.mxu0 %v691
    %3220 = vmatprep.subr.mxu0 %v700
    %3221 = vmatpush1.msra.mxu0 %v699
    %3222 = vmatprep.subr.mxu0 %v708
    %3223 = vmatpush1.msra.mxu0 %v707
    %3224 = vmatprep.subr.mxu0 %v716
    %3225 = vmatpush1.msra.mxu0 %v715
    %3226 = vmatprep.subr.mxu0 %v724
    %3227 = vmatpush1.msra.mxu0 %v723
    %3228 = vmatprep.subr.mxu0 %v732
    %3229 = vmatpush1.msra.mxu0 %v731
    %3230 = vmatprep.subr.mxu0 %v740
    %3231 = vmatpush1.msra.mxu0 %v739
    %3232 = vmatprep.subr.mxu0 %v748
    %3233 = vmatpush1.msra.mxu0 %v747
    %3234 = vmatprep.subr.mxu0 %v756
    %3235 = vmatpush1.msra.mxu0 %v755
    %3236 = vmatprep.subr.mxu0 %v764
    %3237 = vmatpush1.msra.mxu0 %v763
    %3238 = vmatprep.subr.mxu0 %v772
    %3239 = vmatpush1.msra.mxu0 %v771
    %3240 = vmatprep.subr.mxu0 %v780
    %3241 = vmatpush1.msra.mxu0 %v779
    %3242 = vmatprep.subr.mxu0 %v788
    %3243 = vmatpush1.msra.mxu0 %v787
    %3244 = vmatprep.subr.mxu0 %v796
    %3245 = vmatpush1.msra.mxu0 %v795
    %3246 = vmatprep.subr.mxu0 %v804
    %3247 = vmatpush1.msra.mxu0 %v803
    %3248 = vmatprep.subr.mxu0 %v812
    %3249 = vmatpush1.msra.mxu0 %v811
    %3250 = vmatprep.subr.mxu0 %v820
    %3251 = vmatpush1.msra.mxu0 %v819
    %3252 = vmatprep.subr.mxu0 %v828
    %3253 = vmatpush1.msra.mxu0 %v827
    %3254 = vmatprep.subr.mxu0 %v836
    %3255 = vmatpush1.msra.mxu0 %v835
    %3256 = vmatprep.subr.mxu0 %v844
    %3257 = vmatpush1.msra.mxu0 %v843
    %3258 = vmatprep.subr.mxu0 %v852
    %3259 = vmatpush1.msra.mxu0 %v851
    %3260 = vmatprep.subr.mxu0 %v860
    %3261 = vmatpush1.msra.mxu0 %v859
    %3262 = vmatprep.subr.mxu0 %v868
    %3263 = vmatpush1.msra.mxu0 %v867
    %3264 = vmatprep.subr.mxu0 %v876
    %3265 = vmatpush1.msra.mxu0 %v875
    %3266 = vmatprep.subr.mxu0 %v884
    %3267 = vmatpush1.msra.mxu0 %v883
    %3268 = vmatprep.mubr.f32.mxu0 %v3195
    %3269 = vmatmul.mubr.f32.gmra.mrb[0].mxu0 %v3194
    %v3270 = vpop.f32.mrb[0].mxu0
    %v3271 = vadd.f32 %v3196, %v3270
    %v3272 = vpop.f32.mrb[0].mxu0
    %v3273 = vadd.f32 %v3197, %v3272
    %3274 = vdwg.mxu0
    %3275 = vmatprep.subr.mxu0 %v638
    %3276 = vmatpush1.msra.mxu0 %v637
    %3277 = vmatprep.subr.mxu0 %v646
    %3278 = vmatpush1.msra.mxu0 %v645
    %3279 = vmatprep.subr.mxu0 %v654
    %3280 = vmatpush1.msra.mxu0 %v653
    %3281 = vmatprep.subr.mxu0 %v662
    %3282 = vmatpush1.msra.mxu0 %v661
    %3283 = vmatprep.subr.mxu0 %v670
    %3284 = vmatpush1.msra.mxu0 %v669
    %3285 = vmatprep.subr.mxu0 %v678
    %3286 = vmatpush1.msra.mxu0 %v677
    %3287 = vmatprep.subr.mxu0 %v686
    %3288 = vmatpush1.msra.mxu0 %v685
    %3289 = vmatprep.subr.mxu0 %v694
    %3290 = vmatpush1.msra.mxu0 %v693
    %3291 = vmatprep.subr.mxu0 %v702
    %3292 = vmatpush1.msra.mxu0 %v701
    %3293 = vmatprep.subr.mxu0 %v710
    %3294 = vmatpush1.msra.mxu0 %v709
    %3295 = vmatprep.subr.mxu0 %v718
    %3296 = vmatpush1.msra.mxu0 %v717
    %3297 = vmatprep.subr.mxu0 %v726
    %3298 = vmatpush1.msra.mxu0 %v725
    %3299 = vmatprep.subr.mxu0 %v734
    %3300 = vmatpush1.msra.mxu0 %v733
    %3301 = vmatprep.subr.mxu0 %v742
    %3302 = vmatpush1.msra.mxu0 %v741
    %3303 = vmatprep.subr.mxu0 %v750
    %3304 = vmatpush1.msra.mxu0 %v749
    %3305 = vmatprep.subr.mxu0 %v758
    %3306 = vmatpush1.msra.mxu0 %v757
    %3307 = vmatprep.subr.mxu0 %v766
    %3308 = vmatpush1.msra.mxu0 %v765
    %3309 = vmatprep.subr.mxu0 %v774
    %3310 = vmatpush1.msra.mxu0 %v773
    %3311 = vmatprep.subr.mxu0 %v782
    %3312 = vmatpush1.msra.mxu0 %v781
    %3313 = vmatprep.subr.mxu0 %v790
    %3314 = vmatpush1.msra.mxu0 %v789
    %3315 = vmatprep.subr.mxu0 %v798
    %3316 = vmatpush1.msra.mxu0 %v797
    %3317 = vmatprep.subr.mxu0 %v806
    %3318 = vmatpush1.msra.mxu0 %v805
    %3319 = vmatprep.subr.mxu0 %v814
    %3320 = vmatpush1.msra.mxu0 %v813
    %3321 = vmatprep.subr.mxu0 %v822
    %3322 = vmatpush1.msra.mxu0 %v821
    %3323 = vmatprep.subr.mxu0 %v830
    %3324 = vmatpush1.msra.mxu0 %v829
    %3325 = vmatprep.subr.mxu0 %v838
    %3326 = vmatpush1.msra.mxu0 %v837
    %3327 = vmatprep.subr.mxu0 %v846
    %3328 = vmatpush1.msra.mxu0 %v845
    %3329 = vmatprep.subr.mxu0 %v854
    %3330 = vmatpush1.msra.mxu0 %v853
    %3331 = vmatprep.subr.mxu0 %v862
    %3332 = vmatpush1.msra.mxu0 %v861
    %3333 = vmatprep.subr.mxu0 %v870
    %3334 = vmatpush1.msra.mxu0 %v869
    %3335 = vmatprep.subr.mxu0 %v878
    %3336 = vmatpush1.msra.mxu0 %v877
    %3337 = vmatprep.subr.mxu0 %v886
    %3338 = vmatpush1.msra.mxu0 %v885
    %3339 = vmatprep.mubr.f32.mxu0 %v3195
    %3340 = vmatmul.mubr.f32.gmra.mrb[0].mxu0 %v3194
    %v3341 = vpop.f32.mrb[0].mxu0
    %v3342 = vadd.f32 %v3198, %v3341
    %v3343 = vpop.f32.mrb[0].mxu0
    %v3344 = vadd.f32 %v3199, %v3343
    %3345 = vdwg.mxu0
    %3346 = vmatprep.subr.mxu0 %v640
    %3347 = vmatpush1.msra.mxu0 %v639
    %3348 = vmatprep.subr.mxu0 %v648
    %3349 = vmatpush1.msra.mxu0 %v647
    %3350 = vmatprep.subr.mxu0 %v656
    %3351 = vmatpush1.msra.mxu0 %v655
    %3352 = vmatprep.subr.mxu0 %v664
    %3353 = vmatpush1.msra.mxu0 %v663
    %3354 = vmatprep.subr.mxu0 %v672
    %3355 = vmatpush1.msra.mxu0 %v671
    %3356 = vmatprep.subr.mxu0 %v680
    %3357 = vmatpush1.msra.mxu0 %v679
    %3358 = vmatprep.subr.mxu0 %v688
    %3359 = vmatpush1.msra.mxu0 %v687
    %3360 = vmatprep.subr.mxu0 %v696
    %3361 = vmatpush1.msra.mxu0 %v695
    %3362 = vmatprep.subr.mxu0 %v704
    %3363 = vmatpush1.msra.mxu0 %v703
    %3364 = vmatprep.subr.mxu0 %v712
    %3365 = vmatpush1.msra.mxu0 %v711
    %3366 = vmatprep.subr.mxu0 %v720
    %3367 = vmatpush1.msra.mxu0 %v719
    %3368 = vmatprep.subr.mxu0 %v728
    %3369 = vmatpush1.msra.mxu0 %v727
    %3370 = vmatprep.subr.mxu0 %v736
    %3371 = vmatpush1.msra.mxu0 %v735
    %3372 = vmatprep.subr.mxu0 %v744
    %3373 = vmatpush1.msra.mxu0 %v743
    %3374 = vmatprep.subr.mxu0 %v752
    %3375 = vmatpush1.msra.mxu0 %v751
    %3376 = vmatprep.subr.mxu0 %v760
    %3377 = vmatpush1.msra.mxu0 %v759
    %3378 = vmatprep.subr.mxu0 %v768
    %3379 = vmatpush1.msra.mxu0 %v767
    %3380 = vmatprep.subr.mxu0 %v776
    %3381 = vmatpush1.msra.mxu0 %v775
    %3382 = vmatprep.subr.mxu0 %v784
    %3383 = vmatpush1.msra.mxu0 %v783
    %3384 = vmatprep.subr.mxu0 %v792
    %3385 = vmatpush1.msra.mxu0 %v791
    %3386 = vmatprep.subr.mxu0 %v800
    %3387 = vmatpush1.msra.mxu0 %v799
    %3388 = vmatprep.subr.mxu0 %v808
    %3389 = vmatpush1.msra.mxu0 %v807
    %3390 = vmatprep.subr.mxu0 %v816
    %3391 = vmatpush1.msra.mxu0 %v815
    %3392 = vmatprep.subr.mxu0 %v824
    %3393 = vmatpush1.msra.mxu0 %v823
    %3394 = vmatprep.subr.mxu0 %v832
    %3395 = vmatpush1.msra.mxu0 %v831
    %3396 = vmatprep.subr.mxu0 %v840
    %3397 = vmatpush1.msra.mxu0 %v839
    %3398 = vmatprep.subr.mxu0 %v848
    %3399 = vmatpush1.msra.mxu0 %v847
    %3400 = vmatprep.subr.mxu0 %v856
    %3401 = vmatpush1.msra.mxu0 %v855
    %3402 = vmatprep.subr.mxu0 %v864
    %3403 = vmatpush1.msra.mxu0 %v863
    %3404 = vmatprep.subr.mxu0 %v872
    %3405 = vmatpush1.msra.mxu0 %v871
    %3406 = vmatprep.subr.mxu0 %v880
    %3407 = vmatpush1.msra.mxu0 %v879
    %3408 = vmatprep.subr.mxu0 %v888
    %3409 = vmatpush1.msra.mxu0 %v887
    %3410 = vmatprep.mubr.f32.mxu0 %v3195
    %3411 = vmatmul.mubr.f32.gmra.mrb[0].mxu0 %v3194
    %v3412 = vpop.f32.mrb[0].mxu0
    %v3413 = vadd.f32 %v1716, %v3412
    %v3414 = vpop.f32.mrb[0].mxu0
    %v3415 = vadd.f32 %v1717, %v3414
    %3416 = vdwg.mxu0
    %3417 = vmatprep.subr.mxu0 %v642
    %3418 = vmatpush1.msra.mxu0 %v641
    %3419 = vmatprep.subr.mxu0 %v650
    %3420 = vmatpush1.msra.mxu0 %v649
    %3421 = vmatprep.subr.mxu0 %v658
    %3422 = vmatpush1.msra.mxu0 %v657
    %3423 = vmatprep.subr.mxu0 %v666
    %3424 = vmatpush1.msra.mxu0 %v665
    %3425 = vmatprep.subr.mxu0 %v674
    %3426 = vmatpush1.msra.mxu0 %v673
    %3427 = vmatprep.subr.mxu0 %v682
    %3428 = vmatpush1.msra.mxu0 %v681
    %3429 = vmatprep.subr.mxu0 %v690
    %3430 = vmatpush1.msra.mxu0 %v689
    %3431 = vmatprep.subr.mxu0 %v698
    %3432 = vmatpush1.msra.mxu0 %v697
    %3433 = vmatprep.subr.mxu0 %v706
    %3434 = vmatpush1.msra.mxu0 %v705
    %3435 = vmatprep.subr.mxu0 %v714
    %3436 = vmatpush1.msra.mxu0 %v713
    %3437 = vmatprep.subr.mxu0 %v722
    %3438 = vmatpush1.msra.mxu0 %v721
    %3439 = vmatprep.subr.mxu0 %v730
    %3440 = vmatpush1.msra.mxu0 %v729
    %3441 = vmatprep.subr.mxu0 %v738
    %3442 = vmatpush1.msra.mxu0 %v737
    %3443 = vmatprep.subr.mxu0 %v746
    %3444 = vmatpush1.msra.mxu0 %v745
    %3445 = vmatprep.subr.mxu0 %v754
    %3446 = vmatpush1.msra.mxu0 %v753
    %3447 = vmatprep.subr.mxu0 %v762
    %3448 = vmatpush1.msra.mxu0 %v761
    %3449 = vmatprep.subr.mxu0 %v770
    %3450 = vmatpush1.msra.mxu0 %v769
    %3451 = vmatprep.subr.mxu0 %v778
    %3452 = vmatpush1.msra.mxu0 %v777
    %3453 = vmatprep.subr.mxu0 %v786
    %3454 = vmatpush1.msra.mxu0 %v785
    %3455 = vmatprep.subr.mxu0 %v794
    %3456 = vmatpush1.msra.mxu0 %v793
    %3457 = vmatprep.subr.mxu0 %v802
    %3458 = vmatpush1.msra.mxu0 %v801
    %3459 = vmatprep.subr.mxu0 %v810
    %3460 = vmatpush1.msra.mxu0 %v809
    %3461 = vmatprep.subr.mxu0 %v818
    %3462 = vmatpush1.msra.mxu0 %v817
    %3463 = vmatprep.subr.mxu0 %v826
    %3464 = vmatpush1.msra.mxu0 %v825
    %3465 = vmatprep.subr.mxu0 %v834
    %3466 = vmatpush1.msra.mxu0 %v833
    %3467 = vmatprep.subr.mxu0 %v842
    %3468 = vmatpush1.msra.mxu0 %v841
    %3469 = vmatprep.subr.mxu0 %v850
    %3470 = vmatpush1.msra.mxu0 %v849
    %3471 = vmatprep.subr.mxu0 %v858
    %3472 = vmatpush1.msra.mxu0 %v857
    %3473 = vmatprep.subr.mxu0 %v866
    %3474 = vmatpush1.msra.mxu0 %v865
    %3475 = vmatprep.subr.mxu0 %v874
    %3476 = vmatpush1.msra.mxu0 %v873
    %3477 = vmatprep.subr.mxu0 %v882
    %3478 = vmatpush1.msra.mxu0 %v881
    %3479 = vmatprep.subr.mxu0 %v890
    %3480 = vmatpush1.msra.mxu0 %v889
    %3481 = vmatprep.mubr.f32.mxu0 %v3195
    %3482 = vmatmul.mubr.f32.gmra.mrb[0].mxu0 %v3194
    %v3483 = vpop.f32.mrb[0].mxu0
    %v3484 = vadd.f32 %v1718, %v3483
    %v3485 = vpop.f32.mrb[0].mxu0
    %v3486 = vadd.f32 %v1719, %v3485
    %3487 = vdwg.mxu0
    %v3488 = vxor.u32 %v3271, 2147483648
    %v3489 = vxor.u32 %v3273, 2147483648
    %v3490 = vxor.u32 %v3342, 2147483648
    %v3491 = vxor.u32 %v3344, 2147483648
    %v3492 = vxor.u32 %v3413, 2147483648
    %v3493 = vxor.u32 %v3415, 2147483648
    %v3494 = vxor.u32 %v3484, 2147483648
    %v3495 = vxor.u32 %v3486, 2147483648
    %v3496 = vmul.f32 %v3488, 1.442695
    %v3497 = vpow.pop %v3496
    %v3498 = vmul.f32 %v3489, 1.442695
    %v3499 = vpow.pop %v3498
    %v3500 = vmul.f32 %v3490, 1.442695
    %v3501 = vpow.pop %v3500
    %v3502 = vmul.f32 %v3491, 1.442695
    %v3503 = vpow.pop %v3502
    %v3504 = vmul.f32 %v3492, 1.442695
    %v3505 = vpow.pop %v3504
    %v3506 = vmul.f32 %v3493, 1.442695
    %v3507 = vpow.pop %v3506
    %v3508 = vmul.f32 %v3494, 1.442695
    %v3509 = vpow.pop %v3508
    %v3510 = vmul.f32 %v3495, 1.442695
    %v3511 = vpow.pop %v3510
    %v3512 = vadd.f32 %v3497, 1.0
    %v3513 = vadd.f32 %v3499, 1.0
    %v3514 = vadd.f32 %v3501, 1.0
    %v3515 = vadd.f32 %v3503, 1.0
    %v3516 = vadd.f32 %v3505, 1.0
    %v3517 = vadd.f32 %v3507, 1.0
    %v3518 = vadd.f32 %v3509, 1.0
    %v3519 = vadd.f32 %v3511, 1.0
    %v3520 = vrcp.pop %v3512
    %v3521 = vmul.f32 1.0, %v3520
    %v3522 = vrcp.pop %v3513
    %v3523 = vmul.f32 1.0, %v3522
    %v3524 = vrcp.pop %v3514
    %v3525 = vmul.f32 1.0, %v3524
    %v3526 = vrcp.pop %v3515
    %v3527 = vmul.f32 1.0, %v3526
    %v3528 = vrcp.pop %v3516
    %v3529 = vmul.f32 1.0, %v3528
    %v3530 = vrcp.pop %v3517
    %v3531 = vmul.f32 1.0, %v3530
    %v3532 = vrcp.pop %v3518
    %v3533 = vmul.f32 1.0, %v3532
    %v3534 = vrcp.pop %v3519
    %v3535 = vmul.f32 1.0, %v3534
    %v3536 = vmul.f32 %v3525, 2.0
    %v3537 = vsub.f32 %v3536, 1.0
    %v3538 = vmul.f32 %v3533, 2.0
    %v3539 = vsub.f32 %v3538, 1.0
    %v3540 = vmul.f32 %v3523, %v3172
    %v3541 = vmul.f32 %v3521, %v3537
    %v3542 = vadd.f32 %v3540, %v3541
    %v3543 = vmul.f32 %v3531, %v3175
    %v3544 = vmul.f32 %v3529, %v3539
    %v3545 = vadd.f32 %v3543, %v3544
    %v3546 = vmul.f32 %v3542, 2.0
    %v3547 = vmul.f32 %v3545, 2.0
    %v3548 = vxor.u32 %v3546, 2147483648
    %v3549 = vxor.u32 %v3547, 2147483648
    %v3550 = vmul.f32 %v3548, 1.442695
    %v3551 = vpow.pop %v3550
    %v3552 = vmul.f32 %v3549, 1.442695
    %v3553 = vpow.pop %v3552
    %v3554 = vadd.f32 %v3551, 1.0
    %v3555 = vadd.f32 %v3553, 1.0
    %v3556 = vrcp.pop %v3554
    %v3557 = vmul.f32 1.0, %v3556
    %v3558 = vrcp.pop %v3555
    %v3559 = vmul.f32 1.0, %v3558
    %v3560 = vmul.f32 %v3557, 2.0
    %v3561 = vmul.f32 %v3559, 2.0
    %v3562 = vsub.f32 %v3560, 1.0
    %v3563 = vsub.f32 %v3561, 1.0
    %v3564 = vmul.f32 %v3527, %v3562
    %v3565 = vmul.f32 %v3535, %v3563
    %3566 = vmatprep.subr.mxu0 %v640
    %3567 = vmatpush1.msra.mxu0 %v639
    %3568 = vmatprep.subr.mxu0 %v648
    %3569 = vmatpush1.msra.mxu0 %v647
    %3570 = vmatprep.subr.mxu0 %v656
    %3571 = vmatpush1.msra.mxu0 %v655
    %3572 = vmatprep.subr.mxu0 %v664
    %3573 = vmatpush1.msra.mxu0 %v663
    %3574 = vmatprep.subr.mxu0 %v672
    %3575 = vmatpush1.msra.mxu0 %v671
    %3576 = vmatprep.subr.mxu0 %v680
    %3577 = vmatpush1.msra.mxu0 %v679
    %3578 = vmatprep.subr.mxu0 %v688
    %3579 = vmatpush1.msra.mxu0 %v687
    %3580 = vmatprep.subr.mxu0 %v696
    %3581 = vmatpush1.msra.mxu0 %v695
    %3582 = vmatprep.subr.mxu0 %v704
    %3583 = vmatpush1.msra.mxu0 %v703
    %3584 = vmatprep.subr.mxu0 %v712
    %3585 = vmatpush1.msra.mxu0 %v711
    %3586 = vmatprep.subr.mxu0 %v720
    %3587 = vmatpush1.msra.mxu0 %v719
    %3588 = vmatprep.subr.mxu0 %v728
    %3589 = vmatpush1.msra.mxu0 %v727
    %3590 = vmatprep.subr.mxu0 %v736
    %3591 = vmatpush1.msra.mxu0 %v735
    %3592 = vmatprep.subr.mxu0 %v744
    %3593 = vmatpush1.msra.mxu0 %v743
    %3594 = vmatprep.subr.mxu0 %v752
    %3595 = vmatpush1.msra.mxu0 %v751
    %3596 = vmatprep.subr.mxu0 %v760
    %3597 = vmatpush1.msra.mxu0 %v759
    %3598 = vmatprep.subr.mxu0 %v768
    %3599 = vmatpush1.msra.mxu0 %v767
    %3600 = vmatprep.subr.mxu0 %v776
    %3601 = vmatpush1.msra.mxu0 %v775
    %3602 = vmatprep.subr.mxu0 %v784
    %3603 = vmatpush1.msra.mxu0 %v783
    %3604 = vmatprep.subr.mxu0 %v792
    %3605 = vmatpush1.msra.mxu0 %v791
    %3606 = vmatprep.subr.mxu0 %v800
    %3607 = vmatpush1.msra.mxu0 %v799
    %3608 = vmatprep.subr.mxu0 %v808
    %3609 = vmatpush1.msra.mxu0 %v807
    %3610 = vmatprep.subr.mxu0 %v816
    %3611 = vmatpush1.msra.mxu0 %v815
    %3612 = vmatprep.subr.mxu0 %v824
    %3613 = vmatpush1.msra.mxu0 %v823
    %3614 = vmatprep.subr.mxu0 %v832
    %3615 = vmatpush1.msra.mxu0 %v831
    %3616 = vmatprep.subr.mxu0 %v840
    %3617 = vmatpush1.msra.mxu0 %v839
    %3618 = vmatprep.subr.mxu0 %v848
    %3619 = vmatpush1.msra.mxu0 %v847
    %3620 = vmatprep.subr.mxu0 %v856
    %3621 = vmatpush1.msra.mxu0 %v855
    %3622 = vmatprep.subr.mxu0 %v864
    %3623 = vmatpush1.msra.mxu0 %v863
    %3624 = vmatprep.subr.mxu0 %v872
    %3625 = vmatpush1.msra.mxu0 %v871
    %3626 = vmatprep.subr.mxu0 %v880
    %3627 = vmatpush1.msra.mxu0 %v879
    %3628 = vmatprep.subr.mxu0 %v888
    %3629 = vmatpush1.msra.mxu0 %v887
    %3630 = vmatprep.mubr.f32.mxu0 %v3565
    %3631 = vmatmul.mubr.f32.gmra.mrb[0].mxu0 %v3564
    %v3632 = vpop.f32.mrb[0].mxu0
    %v3633 = vadd.f32 0.0, %v3632
    %v3634 = vpop.f32.mrb[0].mxu0
    %v3635 = vadd.f32 0.0, %v3634
    %3636 = vdwg.mxu0
    %3637 = vmatprep.subr.mxu0 %v642
    %3638 = vmatpush1.msra.mxu0 %v641
    %3639 = vmatprep.subr.mxu0 %v650
    %3640 = vmatpush1.msra.mxu0 %v649
    %3641 = vmatprep.subr.mxu0 %v658
    %3642 = vmatpush1.msra.mxu0 %v657
    %3643 = vmatprep.subr.mxu0 %v666
    %3644 = vmatpush1.msra.mxu0 %v665
    %3645 = vmatprep.subr.mxu0 %v674
    %3646 = vmatpush1.msra.mxu0 %v673
    %3647 = vmatprep.subr.mxu0 %v682
    %3648 = vmatpush1.msra.mxu0 %v681
    %3649 = vmatprep.subr.mxu0 %v690
    %3650 = vmatpush1.msra.mxu0 %v689
    %3651 = vmatprep.subr.mxu0 %v698
    %3652 = vmatpush1.msra.mxu0 %v697
    %3653 = vmatprep.subr.mxu0 %v706
    %3654 = vmatpush1.msra.mxu0 %v705
    %3655 = vmatprep.subr.mxu0 %v714
    %3656 = vmatpush1.msra.mxu0 %v713
    %3657 = vmatprep.subr.mxu0 %v722
    %3658 = vmatpush1.msra.mxu0 %v721
    %3659 = vmatprep.subr.mxu0 %v730
    %3660 = vmatpush1.msra.mxu0 %v729
    %3661 = vmatprep.subr.mxu0 %v738
    %3662 = vmatpush1.msra.mxu0 %v737
    %3663 = vmatprep.subr.mxu0 %v746
    %3664 = vmatpush1.msra.mxu0 %v745
    %3665 = vmatprep.subr.mxu0 %v754
    %3666 = vmatpush1.msra.mxu0 %v753
    %3667 = vmatprep.subr.mxu0 %v762
    %3668 = vmatpush1.msra.mxu0 %v761
    %3669 = vmatprep.subr.mxu0 %v770
    %3670 = vmatpush1.msra.mxu0 %v769
    %3671 = vmatprep.subr.mxu0 %v778
    %3672 = vmatpush1.msra.mxu0 %v777
    %3673 = vmatprep.subr.mxu0 %v786
    %3674 = vmatpush1.msra.mxu0 %v785
    %3675 = vmatprep.subr.mxu0 %v794
    %3676 = vmatpush1.msra.mxu0 %v793
    %3677 = vmatprep.subr.mxu0 %v802
    %3678 = vmatpush1.msra.mxu0 %v801
    %3679 = vmatprep.subr.mxu0 %v810
    %3680 = vmatpush1.msra.mxu0 %v809
    %3681 = vmatprep.subr.mxu0 %v818
    %3682 = vmatpush1.msra.mxu0 %v817
    %3683 = vmatprep.subr.mxu0 %v826
    %3684 = vmatpush1.msra.mxu0 %v825
    %3685 = vmatprep.subr.mxu0 %v834
    %3686 = vmatpush1.msra.mxu0 %v833
    %3687 = vmatprep.subr.mxu0 %v842
    %3688 = vmatpush1.msra.mxu0 %v841
    %3689 = vmatprep.subr.mxu0 %v850
    %3690 = vmatpush1.msra.mxu0 %v849
    %3691 = vmatprep.subr.mxu0 %v858
    %3692 = vmatpush1.msra.mxu0 %v857
    %3693 = vmatprep.subr.mxu0 %v866
    %3694 = vmatpush1.msra.mxu0 %v865
    %3695 = vmatprep.subr.mxu0 %v874
    %3696 = vmatpush1.msra.mxu0 %v873
    %3697 = vmatprep.subr.mxu0 %v882
    %3698 = vmatpush1.msra.mxu0 %v881
    %3699 = vmatprep.subr.mxu0 %v890
    %3700 = vmatpush1.msra.mxu0 %v889
    %3701 = vmatprep.mubr.f32.mxu0 %v3565
    %3702 = vmatmul.mubr.f32.gmra.mrb[0].mxu0 %v3564
    %v3703 = vpop.f32.mrb[0].mxu0
    %v3704 = vadd.f32 0.0, %v3703
    %v3705 = vpop.f32.mrb[0].mxu0
    %v3706 = vadd.f32 0.0, %v3705
    %3707 = vdwg.mxu0
    %v3708 = vadd.f32 %v3633, %v896
    %v3709 = vadd.f32 %v3635, %v900
    %v3710 = vadd.f32 %v3704, %v904
    %v3711 = vadd.f32 %v3706, %v908
    %v3712 = vxor.u32 %v3708, 2147483648
    %v3713 = vxor.u32 %v3709, 2147483648
    %v3714 = vxor.u32 %v3710, 2147483648
    %v3715 = vxor.u32 %v3711, 2147483648
    %v3716 = vmul.f32 %v3712, 1.442695
    %v3717 = vpow.pop %v3716
    %v3718 = vmul.f32 %v3713, 1.442695
    %v3719 = vpow.pop %v3718
    %v3720 = vmul.f32 %v3714, 1.442695
    %v3721 = vpow.pop %v3720
    %v3722 = vmul.f32 %v3715, 1.442695
    %v3723 = vpow.pop %v3722
    %v3724 = vadd.f32 %v3717, 1.0
    %v3725 = vadd.f32 %v3719, 1.0
    %v3726 = vadd.f32 %v3721, 1.0
    %v3727 = vadd.f32 %v3723, 1.0
    %v3728 = vrcp.pop %v3724
    %v3729 = vmul.f32 1.0, %v3728
    %v3730 = vrcp.pop %v3725
    %v3731 = vmul.f32 1.0, %v3730
    %v3732 = vrcp.pop %v3726
    %v3733 = vmul.f32 1.0, %v3732
    %v3734 = vrcp.pop %v3727
    %v3735 = vmul.f32 1.0, %v3734
    %v3736 = vmul.f32 %v3733, 2.0
    %v3737 = vsub.f32 %v3736, 1.0
    %v3738 = vmul.f32 %v3731, %v3545
    %v3739 = vmul.f32 %v3729, %v3737
    %v3740 = vadd.f32 %v3738, %v3739
    %v3741 = vmul.f32 %v3740, 2.0
    %v3742 = vxor.u32 %v3741, 2147483648
    %v3743 = vmul.f32 %v3742, 1.442695
    %v3744 = vpow.pop %v3743
    %v3745 = vadd.f32 %v3744, 1.0
    %v3746 = vrcp.pop %v3745
    %v3747 = vmul.f32 1.0, %v3746
    %v3748 = vmul.f32 %v3747, 2.0
    %v3749 = vsub.f32 %v3748, 1.0
    %v3750 = vmul.f32 %v3735, %v3749
    %v3751 = vld [vmem:[%s8] sm:$0xff]
    %v3752 = vld [vmem:[%s8 + $0x8] sm:$0xff]
    %v3753 = vld [vmem:[%s8 + $0x10] sm:$0xff]
    %v3754 = vld [vmem:[%s8 + $0x18] sm:$0xff]
    %v3755 = vld [vmem:[%s8 + $0x20] sm:$0xff]
    %v3756 = vld [vmem:[%s8 + $0x28] sm:$0xff]
    %v3757 = vld [vmem:[%s8 + $0x30] sm:$0xff]
    %v3758 = vld [vmem:[%s8 + $0x38] sm:$0xff]
    %v3759 = vld [vmem:[%s8 + $0x40] sm:$0xff]
    %v3760 = vld [vmem:[%s8 + $0x48] sm:$0xff]
    %v3761 = vld [vmem:[%s8 + $0x50] sm:$0xff]
    %v3762 = vld [vmem:[%s8 + $0x58] sm:$0xff]
    %v3763 = vld [vmem:[%s8 + $0x60] sm:$0xff]
    %v3764 = vld [vmem:[%s8 + $0x68] sm:$0xff]
    %v3765 = vld [vmem:[%s8 + $0x70] sm:$0xff]
    %v3766 = vld [vmem:[%s8 + $0x78] sm:$0xff]
    %v3767 = vld [vmem:[%s9] sm:$0x1]
    %v3769 = vlaneseq
    %v3770 = vshrl.u32 %v3769, 7
    %v3771 = vsub.s32 0, %v3770
    %v3772 = vrot.slane %v3767, %v3771
    %3774 = vmatprep.subr.mxu0 0.0
    %3775 = vmatpush1.msra.mxu0 %v3751
    %3776 = vmatprep.subr.mxu0 0.0
    %3777 = vmatpush1.msra.mxu0 %v3752
    %3778 = vmatprep.subr.mxu0 0.0
    %3779 = vmatpush1.msra.mxu0 %v3753
    %3780 = vmatprep.subr.mxu0 0.0
    %3781 = vmatpush1.msra.mxu0 %v3754
    %3782 = vmatprep.subr.mxu0 0.0
    %3783 = vmatpush1.msra.mxu0 %v3755
    %3784 = vmatprep.subr.mxu0 0.0
    %3785 = vmatpush1.msra.mxu0 %v3756
    %3786 = vmatprep.subr.mxu0 0.0
    %3787 = vmatpush1.msra.mxu0 %v3757
    %3788 = vmatprep.subr.mxu0 0.0
    %3789 = vmatpush1.msra.mxu0 %v3758
    %3790 = vmatprep.subr.mxu0 0.0
    %3791 = vmatpush1.msra.mxu0 %v3759
    %3792 = vmatprep.subr.mxu0 0.0
    %3793 = vmatpush1.msra.mxu0 %v3760
    %3794 = vmatprep.subr.mxu0 0.0
    %3795 = vmatpush1.msra.mxu0 %v3761
    %3796 = vmatprep.subr.mxu0 0.0
    %3797 = vmatpush1.msra.mxu0 %v3762
    %3798 = vmatprep.subr.mxu0 0.0
    %3799 = vmatpush1.msra.mxu0 %v3763
    %3800 = vmatprep.subr.mxu0 0.0
    %3801 = vmatpush1.msra.mxu0 %v3764
    %3802 = vmatprep.subr.mxu0 0.0
    %3803 = vmatpush1.msra.mxu0 %v3765
    %3804 = vmatprep.subr.mxu0 0.0
    %3805 = vmatpush1.msra.mxu0 %v3766
    %3806 = vmatprep.subr.mxu0 0.0
    %3807 = vmatpush1.msra.mxu0 0.0
    %3808 = vmatprep.subr.mxu0 0.0
    %3809 = vmatpush1.msra.mxu0 0.0
    %3810 = vmatprep.subr.mxu0 0.0
    %3811 = vmatpush1.msra.mxu0 0.0
    %3812 = vmatprep.subr.mxu0 0.0
    %3813 = vmatpush1.msra.mxu0 0.0
    %3814 = vmatprep.subr.mxu0 0.0
    %3815 = vmatpush1.msra.mxu0 0.0
    %3816 = vmatprep.subr.mxu0 0.0
    %3817 = vmatpush1.msra.mxu0 0.0
    %3818 = vmatprep.subr.mxu0 0.0
    %3819 = vmatpush1.msra.mxu0 0.0
    %3820 = vmatprep.subr.mxu0 0.0
    %3821 = vmatpush1.msra.mxu0 0.0
    %3822 = vmatprep.subr.mxu0 0.0
    %3823 = vmatpush1.msra.mxu0 0.0
    %3824 = vmatprep.subr.mxu0 0.0
    %3825 = vmatpush1.msra.mxu0 0.0
    %3826 = vmatprep.subr.mxu0 0.0
    %3827 = vmatpush1.msra.mxu0 0.0
    %3828 = vmatprep.subr.mxu0 0.0
    %3829 = vmatpush1.msra.mxu0 0.0
    %3830 = vmatprep.subr.mxu0 0.0
    %3831 = vmatpush1.msra.mxu0 0.0
    %3832 = vmatprep.subr.mxu0 0.0
    %3833 = vmatpush1.msra.mxu0 0.0
    %3834 = vmatprep.subr.mxu0 0.0
    %3835 = vmatpush1.msra.mxu0 0.0
    %3836 = vmatprep.subr.mxu0 0.0
    %3837 = vmatpush1.msra.mxu0 0.0
    %3838 = vmatprep.mubr.f32.mxu0 0.0
    %3839 = vmatmul.mubr.f32.gmra.mrb[0].mxu0 %v3750
    %v3840 = vpop.f32.mrb[0].mxu0
    %v3841 = vadd.f32 %v3772, %v3840
    %v3842 = vpop.f32.mrb[0].mxu0
    %3843 = vdwg.mxu0
    %vm3844 = vcmask 50176
    %3845 = vst.msk [vmem:[#allocation5] sm:$0x3] %vm3844, %v3841
    // Predicated region
    $region50: #{hybrid_gnn_rnn_forward.1} parent=1 // pred_check
      _
    $region51: #{hybrid_gnn_rnn_forward.1} parent=1 // pred_check_branch
      %3847 = sbr.rel (0) target = $region53
    $region52: #{hybrid_gnn_rnn_forward.1} parent=1 // pred_region
      %s3849 = ssub.s32 32, 32
      %3850 = vsyncadd [#allocation6], %s3849
      %s3852 = sshll.u32 [#allocation5], 4
      %s3853 = int_to_ptr.vmem [resolvable:$true] %s3852
      %3855 = dma.vmem_to_hbm [thread:$0]  %s3853, 32, %s12, [#allocation6]
    $region53: #{hybrid_gnn_rnn_forward.1} parent=1 // pred_fallthru
      _
    // Predicated region
    $region54: #{hybrid_gnn_rnn_forward.1} parent=1 // pred_check
      _
    $region55: #{hybrid_gnn_rnn_forward.1} parent=1 // pred_check_branch
      %3857 = sbr.rel (0) target = $region57
    $region56: #{hybrid_gnn_rnn_forward.1} parent=1 // pred_region
      %3858 = dma.done [#allocation6], 32
    $region57: #{hybrid_gnn_rnn_forward.1} parent=1 // pred_fallthru
      _
    %3859 = vsyncpa [#allocation6], 1
  %3860 = vsyncmov [#allocation4]
  %s3861 = vpop.sfrf %3860
  %p3862 = scmp.eq.s32.totalorder %s3861, 0
  %p3863 = pneg %p3862
  %3865 = shalt.err (%p3863)
  %s3866 = scalar_lea.sflag [#allocation4], 1
  %3867 = vsyncmov %s3866
  %s3868 = vpop.sfrf %3867
  %p3869 = scmp.eq.s32.totalorder %s3868, 0
  %p3870 = pneg %p3869
  %3872 = shalt.err (%p3870)

</llo_original>
